<compile_context>
chip_gen: v7x
topology: tpu7x:2x2x1
jax: 0.10.0
libtpu: 0.0.40
codegen_flags: <defaults>
</compile_context>

<pallas_src>
import functools

import jax
import jax.numpy as jnp
import numpy as np
from jax.experimental import pallas as pl
from jax.experimental.pallas import tpu as pltpu

# ---------------- model hyper-parameters (small, consistent with the module) ----
B = 2              # batch
NUM_INPUTS = 4     # input channels
TIMESTEPS = 8      # timesteps per dependent
N_DEP = 2          # n_dependents
NUM_CHANNELS = (8, 8)
KSIZE = 3
LL_SIZES = (32, 16, 8)

BT = TIMESTEPS * B                                  # rows of one subnet activation
C_MAX = max(NUM_CHANNELS + (NUM_INPUTS,))
C_LAST = NUM_CHANNELS[-1]
FEAT_W = N_DEP * C_LAST                             # lane width of feature scratch
_MAX_DIL = 2 ** (len(NUM_CHANNELS) - 1)
PAD0 = -(-((KSIZE - 1) * _MAX_DIL * B) // 8) * 8    # zero rows (>= max shift, x8)


def _block_config():
    cfg = []
    cin = NUM_INPUTS
    for i, cout in enumerate(NUM_CHANNELS):
        cfg.append((cin, cout, 2 ** i, cin != cout))
        cin = cout
    return tuple(cfg)


BLOCK_CFG = _block_config()


def _full_spec(shape):
    zeros = (0,) * len(shape)
    return pl.BlockSpec(shape, lambda i, _z=zeros: _z)


# ---------------- the single fused kernel ----------------------------------------
def _make_fused_kernel(block_cfg, n_tail):
    T, K = TIMESTEPS, KSIZE

    def kernel(*refs):
        it = iter(refs)
        x_ref = next(it)                                    # (N_DEP, BT, Cin0)
        subnets = []
        for _ in range(N_DEP):
            blocks = []
            for (_cin, _cout, _dil, has_ds) in block_cfg:
                w1, b1, w2, b2 = next(it), next(it), next(it), next(it)
                wd, bd = (next(it), next(it)) if has_ds else (None, None)
                blocks.append((w1, b1, w2, b2, wd, bd))
            subnets.append(blocks)
        w1t_ref, b1_ref = next(it), next(it)                # (T, FEAT_W, H1), (1, H1)
        tail = [(next(it), next(it)) for _ in range(n_tail)]
        o_ref = next(it)                                    # (B, N_DEP)
        pad_ref = next(it)                                  # (PAD0 + BT, C_MAX)
        feat_ref = next(it)                                 # (BT, FEAT_W)

        f32 = jnp.float32
        # Zero the pad scratch once; rows [0:PAD0] are never written again and
        # provide the implicit causal left zero-padding for every dilated conv.
        pad_ref[...] = jnp.zeros_like(pad_ref)

        def causal_conv(h, cin, w_ref, b_ref, dilation, relu):
            """Causal dilated conv1d on t-major rows: h is (BT, cin), row = t*B + b."""
            cout = b_ref.shape[-1]
            pad_ref[PAD0:PAD0 + BT, 0:cin] = h              # aligned sublane store
            acc = jnp.broadcast_to(b_ref[...], (BT, cout)).astype(f32)
            for k in range(K):
                shift = (K - 1 - k) * dilation * B          # time shift -> row shift
                xs = pad_ref[PAD0 - shift:PAD0 - shift + BT, 0:cin]
                acc = acc + jnp.dot(xs, w_ref[k], preferred_element_type=f32)
            return jnp.maximum(acc, 0.0) if relu else acc

        for n in range(N_DEP):
            h = x_ref[n]                                    # (BT, NUM_INPUTS)
            for bi, (cin, cout, dil, has_ds) in enumerate(block_cfg):
                w1, b1, w2, b2, wd, bd = subnets[n][bi]
                h1 = causal_conv(h, cin, w1, b1, dil, relu=True)   # conv1+chomp+relu
                # dropout1 / dropout2: identity (eval mode)
                if has_ds:                                         # 1x1 downsample
                    res = jnp.dot(h, wd[0], preferred_element_type=f32) + bd[...]
                else:                                              # identity skip
                    res = h
                h2 = causal_conv(h1, cout, w2, b2, dil, relu=True)  # conv2+chomp+relu
                h = jnp.maximum(h2 + res, 0.0)                      # relu(out + res)
            # "flatten": features stay lane-dense in VMEM, never round-trip HBM
            feat_ref[:, n * C_LAST:(n + 1) * C_LAST] = h

        # ---- fused 4-layer linear head ----
        # first layer consumes the t-major features per timestep; W1 rows were
        # re-ordered accordingly in the wrapper so semantics match torch Flatten.
        y = jnp.broadcast_to(b1_ref[...], (B, b1_ref.shape[-1])).astype(f32)
        for t in range(T):
            ft = feat_ref[t * B:(t + 1) * B, :]             # (B, FEAT_W)
            y = y + jnp.dot(ft, w1t_ref[t], preferred_element_type=f32)
        for w_ref, b_ref in tail:
            y = jnp.dot(y, w_ref[...], preferred_element_type=f32) + b_ref[...]
        o_ref[...] = y.astype(o_ref.dtype)

    return kernel


# ---------------- wrapper ---------------------------------------------------------
def res_fork_net(x_ncl, params):
    """x_ncl: (B, num_inputs, n_dependents * timesteps), PyTorch NCL layout."""
    Bb, C0, _ = x_ncl.shape
    T = TIMESTEPS

    # (B, C0, N_DEP*T) -> (N_DEP, T*B, C0), rows ordered (t, b)  [t-major]
    xr = x_ncl.reshape(Bb, C0, N_DEP, T)
    xr = jnp.transpose(xr, (2, 3, 0, 1)).reshape(N_DEP, T * Bb, C0)

    # Re-order W1 rows from torch-Flatten order (n, c, t) to the kernel's
    # per-timestep feature order (t, n, c):  w1t[t, n*C+c, :] = W1[n*C*T + c*T + t, :]
    (w1, b1), tail = params["linears"][0], params["linears"][1:]
    H1 = w1.shape[1]
    w1t = w1.reshape(N_DEP, C_LAST, T, H1).transpose(2, 0, 1, 3)
    w1t = w1t.reshape(T, FEAT_W, H1)

    args = [xr]
    for n in range(N_DEP):
        for blk, (_cin, _cout, _dil, has_ds) in zip(params["subnets"][n], BLOCK_CFG):
            args += [blk["w1"], blk["b1"], blk["w2"], blk["b2"]]
            if has_ds:
                args += [blk["wd"], blk["bd"]]
    args += [w1t, b1]
    for w, b in tail:
        args += [w, b]

    kernel = _make_fused_kernel(BLOCK_CFG, len(tail))

    return pl.pallas_call(
        kernel,
        out_shape=jax.ShapeDtypeStruct((Bb, N_DEP), x_ncl.dtype),
        grid=(1,),
        in_specs=[_full_spec(a.shape) for a in args],
        out_specs=pl.BlockSpec((Bb, N_DEP), lambda i: (0, 0)),
        scratch_shapes=[
            pltpu.VMEM((PAD0 + BT, C_MAX), jnp.float32),   # causal-pad buffer
            pltpu.VMEM((BT, FEAT_W), jnp.float32),         # lane-dense features
        ],
    )(*args)


# ---------------- deterministic parameter init ------------------------------------
def init_params():
    key = jax.random.PRNGKey(42)

    def nrm(k, shape, std):
        return std * jax.random.normal(k, shape, dtype=jnp.float32)

    keys = iter(jax.random.split(key, 256))
    subnets = []
    for _ in range(N_DEP):
        blocks = []
        for i, cout in enumerate(NUM_CHANNELS):
            cin = NUM_INPUTS if i == 0 else NUM_CHANNELS[i - 1]
            blk = {
                # conv weights stored as (K, Cin, Cout) for channels-last matmuls
                "w1": nrm(next(keys), (KSIZE, cin, cout), 0.01),
                "b1": nrm(next(keys), (1, cout), 0.01),
                "w2": nrm(next(keys), (KSIZE, cout, cout), 0.01),
                "b2": nrm(next(keys), (1, cout), 0.01),
            }
            if cin != cout:
                blk["wd"] = nrm(next(keys), (1, cin, cout), 0.01)
                blk["bd"] = nrm(next(keys), (1, cout), 0.01)
            blocks.append(blk)
        subnets.append(blocks)

    feature_dim = NUM_CHANNELS[-1] * TIMESTEPS * N_DEP
    dims = (feature_dim,) + LL_SIZES + (N_DEP,)
    linears = []
    for din, dout in zip(dims[:-1], dims[1:]):
        # stored transposed: (in, out) so the kernel does y @ W
        w = nrm(next(keys), (din, dout), 1.0 / np.sqrt(din))
        b = nrm(next(keys), (1, dout), 0.01)
        linears.append((w, b))

    return {"subnets": subnets, "linears": linears}


# ---------------- pure-JAX reference (mirrors the PyTorch forward) ----------------
def _ref_conv1d(x_ncl, w_kio, b, dilation, padding):
    w_oik = jnp.transpose(w_kio, (2, 1, 0))  # -> (Cout, Cin, K) torch layout
    out = jax.lax.conv_general_dilated(
        x_ncl, w_oik, window_strides=(1,), padding=[(padding, padding)],
        rhs_dilation=(dilation,), dimension_numbers=("NCH", "OIH", "NCH"))
    return out + b.reshape(1, -1, 1)


def ref_forward(x_ncl, params):
    def ref_block(x, p, dilation):
        T = x.shape[2]
        pad = dilation * (KSIZE - 1)
        h = _ref_conv1d(x, p["w1"], p["b1"], dilation, pad)[:, :, :T]
        h = jax.nn.relu(h)
        h = _ref_conv1d(h, p["w2"], p["b2"], dilation, pad)[:, :, :T]
        h = jax.nn.relu(h)
        res = _ref_conv1d(x, p["wd"], p["bd"], 1, 0) if "wd" in p else x
        return jax.nn.relu(h + res)

    feats = []
    for n in range(N_DEP):
        h = x_ncl[:, :, n * TIMESTEPS:(n + 1) * TIMESTEPS]
        for i, bp in enumerate(params["subnets"][n]):
            h = ref_block(h, bp, 2 ** i)
        feats.append(h.reshape(h.shape[0], -1))
    y = jnp.concatenate(feats, axis=1)
    for w, b in params["linears"]:
        y = y @ w + b
    return y


# ---------------- main -------------------------------------------------------------
if __name__ == "__main__":
    params = init_params()
    x = jax.random.normal(jax.random.PRNGKey(0),
                          (B, NUM_INPUTS, N_DEP * TIMESTEPS), dtype=jnp.float32)

    fwd = jax.jit(functools.partial(res_fork_net, params=params))
    out = jax.block_until_ready(fwd(x))

    ref = ref_forward(x, params)
    np.testing.assert_allclose(np.asarray(out), np.asarray(ref),
                               rtol=1e-4, atol=1e-5)
    assert out.shape == (B, N_DEP)
    print("KERNEL_OK")
</pallas_src>

<mosaic_0001>
module attributes {stable_mosaic.version = 11 : i64} {
  func.func @kernel(%arg0: i32, %arg1: memref<2x16x4xf32, #tpu.memory_space<vmem>>, %arg2: memref<3x4x8xf32, #tpu.memory_space<vmem>>, %arg3: memref<1x8xf32, #tpu.memory_space<vmem>>, %arg4: memref<3x8x8xf32, #tpu.memory_space<vmem>>, %arg5: memref<1x8xf32, #tpu.memory_space<vmem>>, %arg6: memref<1x4x8xf32, #tpu.memory_space<vmem>>, %arg7: memref<1x8xf32, #tpu.memory_space<vmem>>, %arg8: memref<3x8x8xf32, #tpu.memory_space<vmem>>, %arg9: memref<1x8xf32, #tpu.memory_space<vmem>>, %arg10: memref<3x8x8xf32, #tpu.memory_space<vmem>>, %arg11: memref<1x8xf32, #tpu.memory_space<vmem>>, %arg12: memref<3x4x8xf32, #tpu.memory_space<vmem>>, %arg13: memref<1x8xf32, #tpu.memory_space<vmem>>, %arg14: memref<3x8x8xf32, #tpu.memory_space<vmem>>, %arg15: memref<1x8xf32, #tpu.memory_space<vmem>>, %arg16: memref<1x4x8xf32, #tpu.memory_space<vmem>>, %arg17: memref<1x8xf32, #tpu.memory_space<vmem>>, %arg18: memref<3x8x8xf32, #tpu.memory_space<vmem>>, %arg19: memref<1x8xf32, #tpu.memory_space<vmem>>, %arg20: memref<3x8x8xf32, #tpu.memory_space<vmem>>, %arg21: memref<1x8xf32, #tpu.memory_space<vmem>>, %arg22: memref<8x16x32xf32, #tpu.memory_space<vmem>>, %arg23: memref<1x32xf32, #tpu.memory_space<vmem>>, %arg24: memref<32x16xf32, #tpu.memory_space<vmem>>, %arg25: memref<1x16xf32, #tpu.memory_space<vmem>>, %arg26: memref<16x8xf32, #tpu.memory_space<vmem>>, %arg27: memref<1x8xf32, #tpu.memory_space<vmem>>, %arg28: memref<8x2xf32, #tpu.memory_space<vmem>>, %arg29: memref<1x2xf32, #tpu.memory_space<vmem>>, %arg30: memref<2x2xf32, #tpu.memory_space<vmem>>, %arg31: memref<24x8xf32, #tpu.memory_space<vmem>>, %arg32: memref<16x16xf32, #tpu.memory_space<vmem>>) attributes {dimension_semantics = [#tpu.dimension_semantics<arbitrary>], iteration_bounds = array<i64: 1>, scalar_prefetch = 0 : i64, scratch_operands = 2 : i64, tpu.core_type = #tpu.core_type<tc>, window_params = [{pipeline_mode = #tpu.pipeline_mode<synchronous>, transform_indices = @transform_0, window_bounds = array<i64: 2, 16, 4>}, {pipeline_mode = #tpu.pipeline_mode<synchronous>, transform_indices = @transform_1, window_bounds = array<i64: 3, 4, 8>}, {pipeline_mode = #tpu.pipeline_mode<synchronous>, transform_indices = @transform_2, window_bounds = array<i64: 1, 8>}, {pipeline_mode = #tpu.pipeline_mode<synchronous>, transform_indices = @transform_3, window_bounds = array<i64: 3, 8, 8>}, {pipeline_mode = #tpu.pipeline_mode<synchronous>, transform_indices = @transform_4, window_bounds = array<i64: 1, 8>}, {pipeline_mode = #tpu.pipeline_mode<synchronous>, transform_indices = @transform_5, window_bounds = array<i64: 1, 4, 8>}, {pipeline_mode = #tpu.pipeline_mode<synchronous>, transform_indices = @transform_6, window_bounds = array<i64: 1, 8>}, {pipeline_mode = #tpu.pipeline_mode<synchronous>, transform_indices = @transform_7, window_bounds = array<i64: 3, 8, 8>}, {pipeline_mode = #tpu.pipeline_mode<synchronous>, transform_indices = @transform_8, window_bounds = array<i64: 1, 8>}, {pipeline_mode = #tpu.pipeline_mode<synchronous>, transform_indices = @transform_9, window_bounds = array<i64: 3, 8, 8>}, {pipeline_mode = #tpu.pipeline_mode<synchronous>, transform_indices = @transform_10, window_bounds = array<i64: 1, 8>}, {pipeline_mode = #tpu.pipeline_mode<synchronous>, transform_indices = @transform_11, window_bounds = array<i64: 3, 4, 8>}, {pipeline_mode = #tpu.pipeline_mode<synchronous>, transform_indices = @transform_12, window_bounds = array<i64: 1, 8>}, {pipeline_mode = #tpu.pipeline_mode<synchronous>, transform_indices = @transform_13, window_bounds = array<i64: 3, 8, 8>}, {pipeline_mode = #tpu.pipeline_mode<synchronous>, transform_indices = @transform_14, window_bounds = array<i64: 1, 8>}, {pipeline_mode = #tpu.pipeline_mode<synchronous>, transform_indices = @transform_15, window_bounds = array<i64: 1, 4, 8>}, {pipeline_mode = #tpu.pipeline_mode<synchronous>, transform_indices = @transform_16, window_bounds = array<i64: 1, 8>}, {pipeline_mode = #tpu.pipeline_mode<synchronous>, transform_indices = @transform_17, window_bounds = array<i64: 3, 8, 8>}, {pipeline_mode = #tpu.pipeline_mode<synchronous>, transform_indices = @transform_18, window_bounds = array<i64: 1, 8>}, {pipeline_mode = #tpu.pipeline_mode<synchronous>, transform_indices = @transform_19, window_bounds = array<i64: 3, 8, 8>}, {pipeline_mode = #tpu.pipeline_mode<synchronous>, transform_indices = @transform_20, window_bounds = array<i64: 1, 8>}, {pipeline_mode = #tpu.pipeline_mode<synchronous>, transform_indices = @transform_21, window_bounds = array<i64: 8, 16, 32>}, {pipeline_mode = #tpu.pipeline_mode<synchronous>, transform_indices = @transform_22, window_bounds = array<i64: 1, 32>}, {pipeline_mode = #tpu.pipeline_mode<synchronous>, transform_indices = @transform_23, window_bounds = array<i64: 32, 16>}, {pipeline_mode = #tpu.pipeline_mode<synchronous>, transform_indices = @transform_24, window_bounds = array<i64: 1, 16>}, {pipeline_mode = #tpu.pipeline_mode<synchronous>, transform_indices = @transform_25, window_bounds = array<i64: 16, 8>}, {pipeline_mode = #tpu.pipeline_mode<synchronous>, transform_indices = @transform_26, window_bounds = array<i64: 1, 8>}, {pipeline_mode = #tpu.pipeline_mode<synchronous>, transform_indices = @transform_27, window_bounds = array<i64: 8, 2>}, {pipeline_mode = #tpu.pipeline_mode<synchronous>, transform_indices = @transform_28, window_bounds = array<i64: 1, 2>}, {pipeline_mode = #tpu.pipeline_mode<synchronous>, transform_indices = @transform_29, window_bounds = array<i64: 2, 2>}]} {
    %cst = arith.constant 0.000000e+00 : f32
    %0 = vector.broadcast %cst : f32 to vector<24x8xf32>
    %c0 = arith.constant 0 : index
    %c0_0 = arith.constant 0 : index
    %1 = vector.load %arg31[%c0, %c0_0] : memref<24x8xf32, #tpu.memory_space<vmem>>, vector<24x8xf32>
    tpu.vector_store %arg31[%c0, %c0_0], %0 {strides = array<i32>} : memref<24x8xf32, #tpu.memory_space<vmem>>, vector<24x8xf32>,
    %c0_1 = arith.constant 0 : index
    %c0_2 = arith.constant 0 : index
    %c0_3 = arith.constant 0 : index
    %2 = vector.load %arg1[%c0_1, %c0_2, %c0_3] : memref<2x16x4xf32, #tpu.memory_space<vmem>>, vector<1x16x4xf32>
    %3 = vector.shape_cast %2 : vector<1x16x4xf32> to vector<16x4xf32>
    %c8 = arith.constant 8 : index
    %c0_4 = arith.constant 0 : index
    %4 = vector.load %arg31[%c8, %c0_4] : memref<24x8xf32, #tpu.memory_space<vmem>>, vector<16x4xf32>
    tpu.vector_store %arg31[%c8, %c0_4], %3 {strides = array<i32>} : memref<24x8xf32, #tpu.memory_space<vmem>>, vector<16x4xf32>,
    %c0_5 = arith.constant 0 : index
    %c0_6 = arith.constant 0 : index
    %5 = vector.load %arg3[%c0_5, %c0_6] : memref<1x8xf32, #tpu.memory_space<vmem>>, vector<1x8xf32>
    %6 = vector.shape_cast %5 : vector<1x8xf32> to vector<1x8xf32>
    %7 = vector.broadcast %6 : vector<1x8xf32> to vector<16x8xf32>
    %c4 = arith.constant 4 : index
    %c0_7 = arith.constant 0 : index
    %8 = vector.load %arg31[%c4, %c0_7] : memref<24x8xf32, #tpu.memory_space<vmem>>, vector<16x4xf32>
    %c0_8 = arith.constant 0 : index
    %c0_9 = arith.constant 0 : index
    %c0_10 = arith.constant 0 : index
    %9 = vector.load %arg2[%c0_8, %c0_9, %c0_10] : memref<3x4x8xf32, #tpu.memory_space<vmem>>, vector<1x4x8xf32>
    %10 = vector.shape_cast %9 : vector<1x4x8xf32> to vector<4x8xf32>
    %cst_11 = arith.constant dense<0.000000e+00> : vector<16x8xf32>
    %11 = tpu.matmul %8, %10, %cst_11 {dimension_numbers = #tpu.dot_dimension_numbers<[1], [0], [0], [1], [0, 0, 1, 1], [], []>} : vector<16x4xf32>, vector<4x8xf32>, vector<16x8xf32> -> vector<16x8xf32>
    %12 = arith.addf %7, %11 : vector<16x8xf32>
    %c6 = arith.constant 6 : index
    %c0_12 = arith.constant 0 : index
    %13 = vector.load %arg31[%c6, %c0_12] : memref<24x8xf32, #tpu.memory_space<vmem>>, vector<16x4xf32>
    %c1 = arith.constant 1 : index
    %c0_13 = arith.constant 0 : index
    %c0_14 = arith.constant 0 : index
    %14 = vector.load %arg2[%c1, %c0_13, %c0_14] : memref<3x4x8xf32, #tpu.memory_space<vmem>>, vector<1x4x8xf32>
    %15 = vector.shape_cast %14 : vector<1x4x8xf32> to vector<4x8xf32>
    %cst_15 = arith.constant dense<0.000000e+00> : vector<16x8xf32>
    %16 = tpu.matmul %13, %15, %cst_15 {dimension_numbers = #tpu.dot_dimension_numbers<[1], [0], [0], [1], [0, 0, 1, 1], [], []>} : vector<16x4xf32>, vector<4x8xf32>, vector<16x8xf32> -> vector<16x8xf32>
    %17 = arith.addf %12, %16 : vector<16x8xf32>
    %c8_16 = arith.constant 8 : index
    %c0_17 = arith.constant 0 : index
    %18 = vector.load %arg31[%c8_16, %c0_17] : memref<24x8xf32, #tpu.memory_space<vmem>>, vector<16x4xf32>
    %c2 = arith.constant 2 : index
    %c0_18 = arith.constant 0 : index
    %c0_19 = arith.constant 0 : index
    %19 = vector.load %arg2[%c2, %c0_18, %c0_19] : memref<3x4x8xf32, #tpu.memory_space<vmem>>, vector<1x4x8xf32>
    %20 = vector.shape_cast %19 : vector<1x4x8xf32> to vector<4x8xf32>
    %cst_20 = arith.constant dense<0.000000e+00> : vector<16x8xf32>
    %21 = tpu.matmul %18, %20, %cst_20 {dimension_numbers = #tpu.dot_dimension_numbers<[1], [0], [0], [1], [0, 0, 1, 1], [], []>} : vector<16x4xf32>, vector<4x8xf32>, vector<16x8xf32> -> vector<16x8xf32>
    %22 = arith.addf %17, %21 : vector<16x8xf32>
    %cst_21 = arith.constant 0.000000e+00 : f32
    %23 = vector.broadcast %cst_21 : f32 to vector<16x8xf32>
    %24 = arith.maximumf %22, %23 : vector<16x8xf32>
    %c0_22 = arith.constant 0 : index
    %c0_23 = arith.constant 0 : index
    %c0_24 = arith.constant 0 : index
    %25 = vector.load %arg6[%c0_22, %c0_23, %c0_24] : memref<1x4x8xf32, #tpu.memory_space<vmem>>, vector<1x4x8xf32>
    %26 = vector.shape_cast %25 : vector<1x4x8xf32> to vector<4x8xf32>
    %cst_25 = arith.constant dense<0.000000e+00> : vector<16x8xf32>
    %27 = tpu.matmul %3, %26, %cst_25 {dimension_numbers = #tpu.dot_dimension_numbers<[1], [0], [0], [1], [0, 0, 1, 1], [], []>} : vector<16x4xf32>, vector<4x8xf32>, vector<16x8xf32> -> vector<16x8xf32>
    %c0_26 = arith.constant 0 : index
    %c0_27 = arith.constant 0 : index
    %28 = vector.load %arg7[%c0_26, %c0_27] : memref<1x8xf32, #tpu.memory_space<vmem>>, vector<1x8xf32>
    %29 = vector.broadcast %28 : vector<1x8xf32> to vector<16x8xf32>
    %30 = arith.addf %27, %29 : vector<16x8xf32>
    %c8_28 = arith.constant 8 : index
    %c0_29 = arith.constant 0 : index
    %31 = vector.load %arg31[%c8_28, %c0_29] : memref<24x8xf32, #tpu.memory_space<vmem>>, vector<16x8xf32>
    tpu.vector_store %arg31[%c8_28, %c0_29], %24 {strides = array<i32>} : memref<24x8xf32, #tpu.memory_space<vmem>>, vector<16x8xf32>,
    %c0_30 = arith.constant 0 : index
    %c0_31 = arith.constant 0 : index
    %32 = vector.load %arg5[%c0_30, %c0_31] : memref<1x8xf32, #tpu.memory_space<vmem>>, vector<1x8xf32>
    %33 = vector.shape_cast %32 : vector<1x8xf32> to vector<1x8xf32>
    %34 = vector.broadcast %33 : vector<1x8xf32> to vector<16x8xf32>
    %c4_32 = arith.constant 4 : index
    %c0_33 = arith.constant 0 : index
    %35 = vector.load %arg31[%c4_32, %c0_33] : memref<24x8xf32, #tpu.memory_space<vmem>>, vector<16x8xf32>
    %c0_34 = arith.constant 0 : index
    %c0_35 = arith.constant 0 : index
    %c0_36 = arith.constant 0 : index
    %36 = vector.load %arg4[%c0_34, %c0_35, %c0_36] : memref<3x8x8xf32, #tpu.memory_space<vmem>>, vector<1x8x8xf32>
    %37 = vector.shape_cast %36 : vector<1x8x8xf32> to vector<8x8xf32>
    %cst_37 = arith.constant dense<0.000000e+00> : vector<16x8xf32>
    %38 = tpu.matmul %35, %37, %cst_37 {dimension_numbers = #tpu.dot_dimension_numbers<[1], [0], [0], [1], [0, 0, 1, 1], [], []>} : vector<16x8xf32>, vector<8x8xf32>, vector<16x8xf32> -> vector<16x8xf32>
    %39 = arith.addf %34, %38 : vector<16x8xf32>
    %c6_38 = arith.constant 6 : index
    %c0_39 = arith.constant 0 : index
    %40 = vector.load %arg31[%c6_38, %c0_39] : memref<24x8xf32, #tpu.memory_space<vmem>>, vector<16x8xf32>
    %c1_40 = arith.constant 1 : index
    %c0_41 = arith.constant 0 : index
    %c0_42 = arith.constant 0 : index
    %41 = vector.load %arg4[%c1_40, %c0_41, %c0_42] : memref<3x8x8xf32, #tpu.memory_space<vmem>>, vector<1x8x8xf32>
    %42 = vector.shape_cast %41 : vector<1x8x8xf32> to vector<8x8xf32>
    %cst_43 = arith.constant dense<0.000000e+00> : vector<16x8xf32>
    %43 = tpu.matmul %40, %42, %cst_43 {dimension_numbers = #tpu.dot_dimension_numbers<[1], [0], [0], [1], [0, 0, 1, 1], [], []>} : vector<16x8xf32>, vector<8x8xf32>, vector<16x8xf32> -> vector<16x8xf32>
    %44 = arith.addf %39, %43 : vector<16x8xf32>
    %c8_44 = arith.constant 8 : index
    %c0_45 = arith.constant 0 : index
    %45 = vector.load %arg31[%c8_44, %c0_45] : memref<24x8xf32, #tpu.memory_space<vmem>>, vector<16x8xf32>
    %c2_46 = arith.constant 2 : index
    %c0_47 = arith.constant 0 : index
    %c0_48 = arith.constant 0 : index
    %46 = vector.load %arg4[%c2_46, %c0_47, %c0_48] : memref<3x8x8xf32, #tpu.memory_space<vmem>>, vector<1x8x8xf32>
    %47 = vector.shape_cast %46 : vector<1x8x8xf32> to vector<8x8xf32>
    %cst_49 = arith.constant dense<0.000000e+00> : vector<16x8xf32>
    %48 = tpu.matmul %45, %47, %cst_49 {dimension_numbers = #tpu.dot_dimension_numbers<[1], [0], [0], [1], [0, 0, 1, 1], [], []>} : vector<16x8xf32>, vector<8x8xf32>, vector<16x8xf32> -> vector<16x8xf32>
    %49 = arith.addf %44, %48 : vector<16x8xf32>
    %cst_50 = arith.constant 0.000000e+00 : f32
    %50 = vector.broadcast %cst_50 : f32 to vector<16x8xf32>
    %51 = arith.maximumf %49, %50 : vector<16x8xf32>
    %52 = arith.addf %51, %30 : vector<16x8xf32>
    %cst_51 = arith.constant 0.000000e+00 : f32
    %53 = vector.broadcast %cst_51 : f32 to vector<16x8xf32>
    %54 = arith.maximumf %52, %53 : vector<16x8xf32>
    %c8_52 = arith.constant 8 : index
    %c0_53 = arith.constant 0 : index
    %55 = vector.load %arg31[%c8_52, %c0_53] : memref<24x8xf32, #tpu.memory_space<vmem>>, vector<16x8xf32>
    tpu.vector_store %arg31[%c8_52, %c0_53], %54 {strides = array<i32>} : memref<24x8xf32, #tpu.memory_space<vmem>>, vector<16x8xf32>,
    %c0_54 = arith.constant 0 : index
    %c0_55 = arith.constant 0 : index
    %56 = vector.load %arg9[%c0_54, %c0_55] : memref<1x8xf32, #tpu.memory_space<vmem>>, vector<1x8xf32>
    %57 = vector.shape_cast %56 : vector<1x8xf32> to vector<1x8xf32>
    %58 = vector.broadcast %57 : vector<1x8xf32> to vector<16x8xf32>
    %c0_56 = arith.constant 0 : index
    %c0_57 = arith.constant 0 : index
    %59 = vector.load %arg31[%c0_56, %c0_57] : memref<24x8xf32, #tpu.memory_space<vmem>>, vector<16x8xf32>
    %c0_58 = arith.constant 0 : index
    %c0_59 = arith.constant 0 : index
    %c0_60 = arith.constant 0 : index
    %60 = vector.load %arg8[%c0_58, %c0_59, %c0_60] : memref<3x8x8xf32, #tpu.memory_space<vmem>>, vector<1x8x8xf32>
    %61 = vector.shape_cast %60 : vector<1x8x8xf32> to vector<8x8xf32>
    %cst_61 = arith.constant dense<0.000000e+00> : vector<16x8xf32>
    %62 = tpu.matmul %59, %61, %cst_61 {dimension_numbers = #tpu.dot_dimension_numbers<[1], [0], [0], [1], [0, 0, 1, 1], [], []>} : vector<16x8xf32>, vector<8x8xf32>, vector<16x8xf32> -> vector<16x8xf32>
    %63 = arith.addf %58, %62 : vector<16x8xf32>
    %c4_62 = arith.constant 4 : index
    %c0_63 = arith.constant 0 : index
    %64 = vector.load %arg31[%c4_62, %c0_63] : memref<24x8xf32, #tpu.memory_space<vmem>>, vector<16x8xf32>
    %c1_64 = arith.constant 1 : index
    %c0_65 = arith.constant 0 : index
    %c0_66 = arith.constant 0 : index
    %65 = vector.load %arg8[%c1_64, %c0_65, %c0_66] : memref<3x8x8xf32, #tpu.memory_space<vmem>>, vector<1x8x8xf32>
    %66 = vector.shape_cast %65 : vector<1x8x8xf32> to vector<8x8xf32>
    %cst_67 = arith.constant dense<0.000000e+00> : vector<16x8xf32>
    %67 = tpu.matmul %64, %66, %cst_67 {dimension_numbers = #tpu.dot_dimension_numbers<[1], [0], [0], [1], [0, 0, 1, 1], [], []>} : vector<16x8xf32>, vector<8x8xf32>, vector<16x8xf32> -> vector<16x8xf32>
    %68 = arith.addf %63, %67 : vector<16x8xf32>
    %c8_68 = arith.constant 8 : index
    %c0_69 = arith.constant 0 : index
    %69 = vector.load %arg31[%c8_68, %c0_69] : memref<24x8xf32, #tpu.memory_space<vmem>>, vector<16x8xf32>
    %c2_70 = arith.constant 2 : index
    %c0_71 = arith.constant 0 : index
    %c0_72 = arith.constant 0 : index
    %70 = vector.load %arg8[%c2_70, %c0_71, %c0_72] : memref<3x8x8xf32, #tpu.memory_space<vmem>>, vector<1x8x8xf32>
    %71 = vector.shape_cast %70 : vector<1x8x8xf32> to vector<8x8xf32>
    %cst_73 = arith.constant dense<0.000000e+00> : vector<16x8xf32>
    %72 = tpu.matmul %69, %71, %cst_73 {dimension_numbers = #tpu.dot_dimension_numbers<[1], [0], [0], [1], [0, 0, 1, 1], [], []>} : vector<16x8xf32>, vector<8x8xf32>, vector<16x8xf32> -> vector<16x8xf32>
    %73 = arith.addf %68, %72 : vector<16x8xf32>
    %cst_74 = arith.constant 0.000000e+00 : f32
    %74 = vector.broadcast %cst_74 : f32 to vector<16x8xf32>
    %75 = arith.maximumf %73, %74 : vector<16x8xf32>
    %c8_75 = arith.constant 8 : index
    %c0_76 = arith.constant 0 : index
    %76 = vector.load %arg31[%c8_75, %c0_76] : memref<24x8xf32, #tpu.memory_space<vmem>>, vector<16x8xf32>
    tpu.vector_store %arg31[%c8_75, %c0_76], %75 {strides = array<i32>} : memref<24x8xf32, #tpu.memory_space<vmem>>, vector<16x8xf32>,
    %c0_77 = arith.constant 0 : index
    %c0_78 = arith.constant 0 : index
    %77 = vector.load %arg11[%c0_77, %c0_78] : memref<1x8xf32, #tpu.memory_space<vmem>>, vector<1x8xf32>
    %78 = vector.shape_cast %77 : vector<1x8xf32> to vector<1x8xf32>
    %79 = vector.broadcast %78 : vector<1x8xf32> to vector<16x8xf32>
    %c0_79 = arith.constant 0 : index
    %c0_80 = arith.constant 0 : index
    %80 = vector.load %arg31[%c0_79, %c0_80] : memref<24x8xf32, #tpu.memory_space<vmem>>, vector<16x8xf32>
    %c0_81 = arith.constant 0 : index
    %c0_82 = arith.constant 0 : index
    %c0_83 = arith.constant 0 : index
    %81 = vector.load %arg10[%c0_81, %c0_82, %c0_83] : memref<3x8x8xf32, #tpu.memory_space<vmem>>, vector<1x8x8xf32>
    %82 = vector.shape_cast %81 : vector<1x8x8xf32> to vector<8x8xf32>
    %cst_84 = arith.constant dense<0.000000e+00> : vector<16x8xf32>
    %83 = tpu.matmul %80, %82, %cst_84 {dimension_numbers = #tpu.dot_dimension_numbers<[1], [0], [0], [1], [0, 0, 1, 1], [], []>} : vector<16x8xf32>, vector<8x8xf32>, vector<16x8xf32> -> vector<16x8xf32>
    %84 = arith.addf %79, %83 : vector<16x8xf32>
    %c4_85 = arith.constant 4 : index
    %c0_86 = arith.constant 0 : index
    %85 = vector.load %arg31[%c4_85, %c0_86] : memref<24x8xf32, #tpu.memory_space<vmem>>, vector<16x8xf32>
    %c1_87 = arith.constant 1 : index
    %c0_88 = arith.constant 0 : index
    %c0_89 = arith.constant 0 : index
    %86 = vector.load %arg10[%c1_87, %c0_88, %c0_89] : memref<3x8x8xf32, #tpu.memory_space<vmem>>, vector<1x8x8xf32>
    %87 = vector.shape_cast %86 : vector<1x8x8xf32> to vector<8x8xf32>
    %cst_90 = arith.constant dense<0.000000e+00> : vector<16x8xf32>
    %88 = tpu.matmul %85, %87, %cst_90 {dimension_numbers = #tpu.dot_dimension_numbers<[1], [0], [0], [1], [0, 0, 1, 1], [], []>} : vector<16x8xf32>, vector<8x8xf32>, vector<16x8xf32> -> vector<16x8xf32>
    %89 = arith.addf %84, %88 : vector<16x8xf32>
    %c8_91 = arith.constant 8 : index
    %c0_92 = arith.constant 0 : index
    %90 = vector.load %arg31[%c8_91, %c0_92] : memref<24x8xf32, #tpu.memory_space<vmem>>, vector<16x8xf32>
    %c2_93 = arith.constant 2 : index
    %c0_94 = arith.constant 0 : index
    %c0_95 = arith.constant 0 : index
    %91 = vector.load %arg10[%c2_93, %c0_94, %c0_95] : memref<3x8x8xf32, #tpu.memory_space<vmem>>, vector<1x8x8xf32>
    %92 = vector.shape_cast %91 : vector<1x8x8xf32> to vector<8x8xf32>
    %cst_96 = arith.constant dense<0.000000e+00> : vector<16x8xf32>
    %93 = tpu.matmul %90, %92, %cst_96 {dimension_numbers = #tpu.dot_dimension_numbers<[1], [0], [0], [1], [0, 0, 1, 1], [], []>} : vector<16x8xf32>, vector<8x8xf32>, vector<16x8xf32> -> vector<16x8xf32>
    %94 = arith.addf %89, %93 : vector<16x8xf32>
    %cst_97 = arith.constant 0.000000e+00 : f32
    %95 = vector.broadcast %cst_97 : f32 to vector<16x8xf32>
    %96 = arith.maximumf %94, %95 : vector<16x8xf32>
    %97 = arith.addf %96, %54 : vector<16x8xf32>
    %cst_98 = arith.constant 0.000000e+00 : f32
    %98 = vector.broadcast %cst_98 : f32 to vector<16x8xf32>
    %99 = arith.maximumf %97, %98 : vector<16x8xf32>
    %c0_99 = arith.constant 0 : index
    %c0_100 = arith.constant 0 : index
    %100 = vector.load %arg32[%c0_99, %c0_100] : memref<16x16xf32, #tpu.memory_space<vmem>>, vector<16x8xf32>
    tpu.vector_store %arg32[%c0_99, %c0_100], %99 {strides = array<i32>} : memref<16x16xf32, #tpu.memory_space<vmem>>, vector<16x8xf32>,
    %c1_101 = arith.constant 1 : index
    %c0_102 = arith.constant 0 : index
    %c0_103 = arith.constant 0 : index
    %101 = vector.load %arg1[%c1_101, %c0_102, %c0_103] : memref<2x16x4xf32, #tpu.memory_space<vmem>>, vector<1x16x4xf32>
    %102 = vector.shape_cast %101 : vector<1x16x4xf32> to vector<16x4xf32>
    %c8_104 = arith.constant 8 : index
    %c0_105 = arith.constant 0 : index
    %103 = vector.load %arg31[%c8_104, %c0_105] : memref<24x8xf32, #tpu.memory_space<vmem>>, vector<16x4xf32>
    tpu.vector_store %arg31[%c8_104, %c0_105], %102 {strides = array<i32>} : memref<24x8xf32, #tpu.memory_space<vmem>>, vector<16x4xf32>,
    %c0_106 = arith.constant 0 : index
    %c0_107 = arith.constant 0 : index
    %104 = vector.load %arg13[%c0_106, %c0_107] : memref<1x8xf32, #tpu.memory_space<vmem>>, vector<1x8xf32>
    %105 = vector.shape_cast %104 : vector<1x8xf32> to vector<1x8xf32>
    %106 = vector.broadcast %105 : vector<1x8xf32> to vector<16x8xf32>
    %c4_108 = arith.constant 4 : index
    %c0_109 = arith.constant 0 : index
    %107 = vector.load %arg31[%c4_108, %c0_109] : memref<24x8xf32, #tpu.memory_space<vmem>>, vector<16x4xf32>
    %c0_110 = arith.constant 0 : index
    %c0_111 = arith.constant 0 : index
    %c0_112 = arith.constant 0 : index
    %108 = vector.load %arg12[%c0_110, %c0_111, %c0_112] : memref<3x4x8xf32, #tpu.memory_space<vmem>>, vector<1x4x8xf32>
    %109 = vector.shape_cast %108 : vector<1x4x8xf32> to vector<4x8xf32>
    %cst_113 = arith.constant dense<0.000000e+00> : vector<16x8xf32>
    %110 = tpu.matmul %107, %109, %cst_113 {dimension_numbers = #tpu.dot_dimension_numbers<[1], [0], [0], [1], [0, 0, 1, 1], [], []>} : vector<16x4xf32>, vector<4x8xf32>, vector<16x8xf32> -> vector<16x8xf32>
    %111 = arith.addf %106, %110 : vector<16x8xf32>
    %c6_114 = arith.constant 6 : index
    %c0_115 = arith.constant 0 : index
    %112 = vector.load %arg31[%c6_114, %c0_115] : memref<24x8xf32, #tpu.memory_space<vmem>>, vector<16x4xf32>
    %c1_116 = arith.constant 1 : index
    %c0_117 = arith.constant 0 : index
    %c0_118 = arith.constant 0 : index
    %113 = vector.load %arg12[%c1_116, %c0_117, %c0_118] : memref<3x4x8xf32, #tpu.memory_space<vmem>>, vector<1x4x8xf32>
    %114 = vector.shape_cast %113 : vector<1x4x8xf32> to vector<4x8xf32>
    %cst_119 = arith.constant dense<0.000000e+00> : vector<16x8xf32>
    %115 = tpu.matmul %112, %114, %cst_119 {dimension_numbers = #tpu.dot_dimension_numbers<[1], [0], [0], [1], [0, 0, 1, 1], [], []>} : vector<16x4xf32>, vector<4x8xf32>, vector<16x8xf32> -> vector<16x8xf32>
    %116 = arith.addf %111, %115 : vector<16x8xf32>
    %c8_120 = arith.constant 8 : index
    %c0_121 = arith.constant 0 : index
    %117 = vector.load %arg31[%c8_120, %c0_121] : memref<24x8xf32, #tpu.memory_space<vmem>>, vector<16x4xf32>
    %c2_122 = arith.constant 2 : index
    %c0_123 = arith.constant 0 : index
    %c0_124 = arith.constant 0 : index
    %118 = vector.load %arg12[%c2_122, %c0_123, %c0_124] : memref<3x4x8xf32, #tpu.memory_space<vmem>>, vector<1x4x8xf32>
    %119 = vector.shape_cast %118 : vector<1x4x8xf32> to vector<4x8xf32>
    %cst_125 = arith.constant dense<0.000000e+00> : vector<16x8xf32>
    %120 = tpu.matmul %117, %119, %cst_125 {dimension_numbers = #tpu.dot_dimension_numbers<[1], [0], [0], [1], [0, 0, 1, 1], [], []>} : vector<16x4xf32>, vector<4x8xf32>, vector<16x8xf32> -> vector<16x8xf32>
    %121 = arith.addf %116, %120 : vector<16x8xf32>
    %cst_126 = arith.constant 0.000000e+00 : f32
    %122 = vector.broadcast %cst_126 : f32 to vector<16x8xf32>
    %123 = arith.maximumf %121, %122 : vector<16x8xf32>
    %c0_127 = arith.constant 0 : index
    %c0_128 = arith.constant 0 : index
    %c0_129 = arith.constant 0 : index
    %124 = vector.load %arg16[%c0_127, %c0_128, %c0_129] : memref<1x4x8xf32, #tpu.memory_space<vmem>>, vector<1x4x8xf32>
    %125 = vector.shape_cast %124 : vector<1x4x8xf32> to vector<4x8xf32>
    %cst_130 = arith.constant dense<0.000000e+00> : vector<16x8xf32>
    %126 = tpu.matmul %102, %125, %cst_130 {dimension_numbers = #tpu.dot_dimension_numbers<[1], [0], [0], [1], [0, 0, 1, 1], [], []>} : vector<16x4xf32>, vector<4x8xf32>, vector<16x8xf32> -> vector<16x8xf32>
    %c0_131 = arith.constant 0 : index
    %c0_132 = arith.constant 0 : index
    %127 = vector.load %arg17[%c0_131, %c0_132] : memref<1x8xf32, #tpu.memory_space<vmem>>, vector<1x8xf32>
    %128 = vector.broadcast %127 : vector<1x8xf32> to vector<16x8xf32>
    %129 = arith.addf %126, %128 : vector<16x8xf32>
    %c8_133 = arith.constant 8 : index
    %c0_134 = arith.constant 0 : index
    %130 = vector.load %arg31[%c8_133, %c0_134] : memref<24x8xf32, #tpu.memory_space<vmem>>, vector<16x8xf32>
    tpu.vector_store %arg31[%c8_133, %c0_134], %123 {strides = array<i32>} : memref<24x8xf32, #tpu.memory_space<vmem>>, vector<16x8xf32>,
    %c0_135 = arith.constant 0 : index
    %c0_136 = arith.constant 0 : index
    %131 = vector.load %arg15[%c0_135, %c0_136] : memref<1x8xf32, #tpu.memory_space<vmem>>, vector<1x8xf32>
    %132 = vector.shape_cast %131 : vector<1x8xf32> to vector<1x8xf32>
    %133 = vector.broadcast %132 : vector<1x8xf32> to vector<16x8xf32>
    %c4_137 = arith.constant 4 : index
    %c0_138 = arith.constant 0 : index
    %134 = vector.load %arg31[%c4_137, %c0_138] : memref<24x8xf32, #tpu.memory_space<vmem>>, vector<16x8xf32>
    %c0_139 = arith.constant 0 : index
    %c0_140 = arith.constant 0 : index
    %c0_141 = arith.constant 0 : index
    %135 = vector.load %arg14[%c0_139, %c0_140, %c0_141] : memref<3x8x8xf32, #tpu.memory_space<vmem>>, vector<1x8x8xf32>
    %136 = vector.shape_cast %135 : vector<1x8x8xf32> to vector<8x8xf32>
    %cst_142 = arith.constant dense<0.000000e+00> : vector<16x8xf32>
    %137 = tpu.matmul %134, %136, %cst_142 {dimension_numbers = #tpu.dot_dimension_numbers<[1], [0], [0], [1], [0, 0, 1, 1], [], []>} : vector<16x8xf32>, vector<8x8xf32>, vector<16x8xf32> -> vector<16x8xf32>
    %138 = arith.addf %133, %137 : vector<16x8xf32>
    %c6_143 = arith.constant 6 : index
    %c0_144 = arith.constant 0 : index
    %139 = vector.load %arg31[%c6_143, %c0_144] : memref<24x8xf32, #tpu.memory_space<vmem>>, vector<16x8xf32>
    %c1_145 = arith.constant 1 : index
    %c0_146 = arith.constant 0 : index
    %c0_147 = arith.constant 0 : index
    %140 = vector.load %arg14[%c1_145, %c0_146, %c0_147] : memref<3x8x8xf32, #tpu.memory_space<vmem>>, vector<1x8x8xf32>
    %141 = vector.shape_cast %140 : vector<1x8x8xf32> to vector<8x8xf32>
    %cst_148 = arith.constant dense<0.000000e+00> : vector<16x8xf32>
    %142 = tpu.matmul %139, %141, %cst_148 {dimension_numbers = #tpu.dot_dimension_numbers<[1], [0], [0], [1], [0, 0, 1, 1], [], []>} : vector<16x8xf32>, vector<8x8xf32>, vector<16x8xf32> -> vector<16x8xf32>
    %143 = arith.addf %138, %142 : vector<16x8xf32>
    %c8_149 = arith.constant 8 : index
    %c0_150 = arith.constant 0 : index
    %144 = vector.load %arg31[%c8_149, %c0_150] : memref<24x8xf32, #tpu.memory_space<vmem>>, vector<16x8xf32>
    %c2_151 = arith.constant 2 : index
    %c0_152 = arith.constant 0 : index
    %c0_153 = arith.constant 0 : index
    %145 = vector.load %arg14[%c2_151, %c0_152, %c0_153] : memref<3x8x8xf32, #tpu.memory_space<vmem>>, vector<1x8x8xf32>
    %146 = vector.shape_cast %145 : vector<1x8x8xf32> to vector<8x8xf32>
    %cst_154 = arith.constant dense<0.000000e+00> : vector<16x8xf32>
    %147 = tpu.matmul %144, %146, %cst_154 {dimension_numbers = #tpu.dot_dimension_numbers<[1], [0], [0], [1], [0, 0, 1, 1], [], []>} : vector<16x8xf32>, vector<8x8xf32>, vector<16x8xf32> -> vector<16x8xf32>
    %148 = arith.addf %143, %147 : vector<16x8xf32>
    %cst_155 = arith.constant 0.000000e+00 : f32
    %149 = vector.broadcast %cst_155 : f32 to vector<16x8xf32>
    %150 = arith.maximumf %148, %149 : vector<16x8xf32>
    %151 = arith.addf %150, %129 : vector<16x8xf32>
    %cst_156 = arith.constant 0.000000e+00 : f32
    %152 = vector.broadcast %cst_156 : f32 to vector<16x8xf32>
    %153 = arith.maximumf %151, %152 : vector<16x8xf32>
    %c8_157 = arith.constant 8 : index
    %c0_158 = arith.constant 0 : index
    %154 = vector.load %arg31[%c8_157, %c0_158] : memref<24x8xf32, #tpu.memory_space<vmem>>, vector<16x8xf32>
    tpu.vector_store %arg31[%c8_157, %c0_158], %153 {strides = array<i32>} : memref<24x8xf32, #tpu.memory_space<vmem>>, vector<16x8xf32>,
    %c0_159 = arith.constant 0 : index
    %c0_160 = arith.constant 0 : index
    %155 = vector.load %arg19[%c0_159, %c0_160] : memref<1x8xf32, #tpu.memory_space<vmem>>, vector<1x8xf32>
    %156 = vector.shape_cast %155 : vector<1x8xf32> to vector<1x8xf32>
    %157 = vector.broadcast %156 : vector<1x8xf32> to vector<16x8xf32>
    %c0_161 = arith.constant 0 : index
    %c0_162 = arith.constant 0 : index
    %158 = vector.load %arg31[%c0_161, %c0_162] : memref<24x8xf32, #tpu.memory_space<vmem>>, vector<16x8xf32>
    %c0_163 = arith.constant 0 : index
    %c0_164 = arith.constant 0 : index
    %c0_165 = arith.constant 0 : index
    %159 = vector.load %arg18[%c0_163, %c0_164, %c0_165] : memref<3x8x8xf32, #tpu.memory_space<vmem>>, vector<1x8x8xf32>
    %160 = vector.shape_cast %159 : vector<1x8x8xf32> to vector<8x8xf32>
    %cst_166 = arith.constant dense<0.000000e+00> : vector<16x8xf32>
    %161 = tpu.matmul %158, %160, %cst_166 {dimension_numbers = #tpu.dot_dimension_numbers<[1], [0], [0], [1], [0, 0, 1, 1], [], []>} : vector<16x8xf32>, vector<8x8xf32>, vector<16x8xf32> -> vector<16x8xf32>
    %162 = arith.addf %157, %161 : vector<16x8xf32>
    %c4_167 = arith.constant 4 : index
    %c0_168 = arith.constant 0 : index
    %163 = vector.load %arg31[%c4_167, %c0_168] : memref<24x8xf32, #tpu.memory_space<vmem>>, vector<16x8xf32>
    %c1_169 = arith.constant 1 : index
    %c0_170 = arith.constant 0 : index
    %c0_171 = arith.constant 0 : index
    %164 = vector.load %arg18[%c1_169, %c0_170, %c0_171] : memref<3x8x8xf32, #tpu.memory_space<vmem>>, vector<1x8x8xf32>
    %165 = vector.shape_cast %164 : vector<1x8x8xf32> to vector<8x8xf32>
    %cst_172 = arith.constant dense<0.000000e+00> : vector<16x8xf32>
    %166 = tpu.matmul %163, %165, %cst_172 {dimension_numbers = #tpu.dot_dimension_numbers<[1], [0], [0], [1], [0, 0, 1, 1], [], []>} : vector<16x8xf32>, vector<8x8xf32>, vector<16x8xf32> -> vector<16x8xf32>
    %167 = arith.addf %162, %166 : vector<16x8xf32>
    %c8_173 = arith.constant 8 : index
    %c0_174 = arith.constant 0 : index
    %168 = vector.load %arg31[%c8_173, %c0_174] : memref<24x8xf32, #tpu.memory_space<vmem>>, vector<16x8xf32>
    %c2_175 = arith.constant 2 : index
    %c0_176 = arith.constant 0 : index
    %c0_177 = arith.constant 0 : index
    %169 = vector.load %arg18[%c2_175, %c0_176, %c0_177] : memref<3x8x8xf32, #tpu.memory_space<vmem>>, vector<1x8x8xf32>
    %170 = vector.shape_cast %169 : vector<1x8x8xf32> to vector<8x8xf32>
    %cst_178 = arith.constant dense<0.000000e+00> : vector<16x8xf32>
    %171 = tpu.matmul %168, %170, %cst_178 {dimension_numbers = #tpu.dot_dimension_numbers<[1], [0], [0], [1], [0, 0, 1, 1], [], []>} : vector<16x8xf32>, vector<8x8xf32>, vector<16x8xf32> -> vector<16x8xf32>
    %172 = arith.addf %167, %171 : vector<16x8xf32>
    %cst_179 = arith.constant 0.000000e+00 : f32
    %173 = vector.broadcast %cst_179 : f32 to vector<16x8xf32>
    %174 = arith.maximumf %172, %173 : vector<16x8xf32>
    %c8_180 = arith.constant 8 : index
    %c0_181 = arith.constant 0 : index
    %175 = vector.load %arg31[%c8_180, %c0_181] : memref<24x8xf32, #tpu.memory_space<vmem>>, vector<16x8xf32>
    tpu.vector_store %arg31[%c8_180, %c0_181], %174 {strides = array<i32>} : memref<24x8xf32, #tpu.memory_space<vmem>>, vector<16x8xf32>,
    %c0_182 = arith.constant 0 : index
    %c0_183 = arith.constant 0 : index
    %176 = vector.load %arg21[%c0_182, %c0_183] : memref<1x8xf32, #tpu.memory_space<vmem>>, vector<1x8xf32>
    %177 = vector.shape_cast %176 : vector<1x8xf32> to vector<1x8xf32>
    %178 = vector.broadcast %177 : vector<1x8xf32> to vector<16x8xf32>
    %c0_184 = arith.constant 0 : index
    %c0_185 = arith.constant 0 : index
    %179 = vector.load %arg31[%c0_184, %c0_185] : memref<24x8xf32, #tpu.memory_space<vmem>>, vector<16x8xf32>
    %c0_186 = arith.constant 0 : index
    %c0_187 = arith.constant 0 : index
    %c0_188 = arith.constant 0 : index
    %180 = vector.load %arg20[%c0_186, %c0_187, %c0_188] : memref<3x8x8xf32, #tpu.memory_space<vmem>>, vector<1x8x8xf32>
    %181 = vector.shape_cast %180 : vector<1x8x8xf32> to vector<8x8xf32>
    %cst_189 = arith.constant dense<0.000000e+00> : vector<16x8xf32>
    %182 = tpu.matmul %179, %181, %cst_189 {dimension_numbers = #tpu.dot_dimension_numbers<[1], [0], [0], [1], [0, 0, 1, 1], [], []>} : vector<16x8xf32>, vector<8x8xf32>, vector<16x8xf32> -> vector<16x8xf32>
    %183 = arith.addf %178, %182 : vector<16x8xf32>
    %c4_190 = arith.constant 4 : index
    %c0_191 = arith.constant 0 : index
    %184 = vector.load %arg31[%c4_190, %c0_191] : memref<24x8xf32, #tpu.memory_space<vmem>>, vector<16x8xf32>
    %c1_192 = arith.constant 1 : index
    %c0_193 = arith.constant 0 : index
    %c0_194 = arith.constant 0 : index
    %185 = vector.load %arg20[%c1_192, %c0_193, %c0_194] : memref<3x8x8xf32, #tpu.memory_space<vmem>>, vector<1x8x8xf32>
    %186 = vector.shape_cast %185 : vector<1x8x8xf32> to vector<8x8xf32>
    %cst_195 = arith.constant dense<0.000000e+00> : vector<16x8xf32>
    %187 = tpu.matmul %184, %186, %cst_195 {dimension_numbers = #tpu.dot_dimension_numbers<[1], [0], [0], [1], [0, 0, 1, 1], [], []>} : vector<16x8xf32>, vector<8x8xf32>, vector<16x8xf32> -> vector<16x8xf32>
    %188 = arith.addf %183, %187 : vector<16x8xf32>
    %c8_196 = arith.constant 8 : index
    %c0_197 = arith.constant 0 : index
    %189 = vector.load %arg31[%c8_196, %c0_197] : memref<24x8xf32, #tpu.memory_space<vmem>>, vector<16x8xf32>
    %c2_198 = arith.constant 2 : index
    %c0_199 = arith.constant 0 : index
    %c0_200 = arith.constant 0 : index
    %190 = vector.load %arg20[%c2_198, %c0_199, %c0_200] : memref<3x8x8xf32, #tpu.memory_space<vmem>>, vector<1x8x8xf32>
    %191 = vector.shape_cast %190 : vector<1x8x8xf32> to vector<8x8xf32>
    %cst_201 = arith.constant dense<0.000000e+00> : vector<16x8xf32>
    %192 = tpu.matmul %189, %191, %cst_201 {dimension_numbers = #tpu.dot_dimension_numbers<[1], [0], [0], [1], [0, 0, 1, 1], [], []>} : vector<16x8xf32>, vector<8x8xf32>, vector<16x8xf32> -> vector<16x8xf32>
    %193 = arith.addf %188, %192 : vector<16x8xf32>
    %cst_202 = arith.constant 0.000000e+00 : f32
    %194 = vector.broadcast %cst_202 : f32 to vector<16x8xf32>
    %195 = arith.maximumf %193, %194 : vector<16x8xf32>
    %196 = arith.addf %195, %153 : vector<16x8xf32>
    %cst_203 = arith.constant 0.000000e+00 : f32
    %197 = vector.broadcast %cst_203 : f32 to vector<16x8xf32>
    %198 = arith.maximumf %196, %197 : vector<16x8xf32>
    %c0_204 = arith.constant 0 : index
    %c8_205 = arith.constant 8 : index
    %199 = vector.load %arg32[%c0_204, %c8_205] : memref<16x16xf32, #tpu.memory_space<vmem>>, vector<16x8xf32>
    tpu.vector_store %arg32[%c0_204, %c8_205], %198 {strides = array<i32>} : memref<16x16xf32, #tpu.memory_space<vmem>>, vector<16x8xf32>,
    %c0_206 = arith.constant 0 : index
    %c0_207 = arith.constant 0 : index
    %200 = vector.load %arg23[%c0_206, %c0_207] : memref<1x32xf32, #tpu.memory_space<vmem>>, vector<1x32xf32>
    %201 = vector.shape_cast %200 : vector<1x32xf32> to vector<1x32xf32>
    %202 = vector.broadcast %201 : vector<1x32xf32> to vector<2x32xf32>
    %c0_208 = arith.constant 0 : index
    %c0_209 = arith.constant 0 : index
    %203 = vector.load %arg32[%c0_208, %c0_209] : memref<16x16xf32, #tpu.memory_space<vmem>>, vector<2x16xf32>
    %c0_210 = arith.constant 0 : index
    %c0_211 = arith.constant 0 : index
    %c0_212 = arith.constant 0 : index
    %204 = vector.load %arg22[%c0_210, %c0_211, %c0_212] : memref<8x16x32xf32, #tpu.memory_space<vmem>>, vector<1x16x32xf32>
    %205 = vector.shape_cast %204 : vector<1x16x32xf32> to vector<16x32xf32>
    %cst_213 = arith.constant dense<0.000000e+00> : vector<2x32xf32>
    %206 = tpu.matmul %203, %205, %cst_213 {dimension_numbers = #tpu.dot_dimension_numbers<[1], [0], [0], [1], [0, 0, 1, 1], [], []>} : vector<2x16xf32>, vector<16x32xf32>, vector<2x32xf32> -> vector<2x32xf32>
    %207 = arith.addf %202, %206 : vector<2x32xf32>
    %c2_214 = arith.constant 2 : index
    %c0_215 = arith.constant 0 : index
    %208 = vector.load %arg32[%c2_214, %c0_215] : memref<16x16xf32, #tpu.memory_space<vmem>>, vector<2x16xf32>
    %c1_216 = arith.constant 1 : index
    %c0_217 = arith.constant 0 : index
    %c0_218 = arith.constant 0 : index
    %209 = vector.load %arg22[%c1_216, %c0_217, %c0_218] : memref<8x16x32xf32, #tpu.memory_space<vmem>>, vector<1x16x32xf32>
    %210 = vector.shape_cast %209 : vector<1x16x32xf32> to vector<16x32xf32>
    %cst_219 = arith.constant dense<0.000000e+00> : vector<2x32xf32>
    %211 = tpu.matmul %208, %210, %cst_219 {dimension_numbers = #tpu.dot_dimension_numbers<[1], [0], [0], [1], [0, 0, 1, 1], [], []>} : vector<2x16xf32>, vector<16x32xf32>, vector<2x32xf32> -> vector<2x32xf32>
    %212 = arith.addf %207, %211 : vector<2x32xf32>
    %c4_220 = arith.constant 4 : index
    %c0_221 = arith.constant 0 : index
    %213 = vector.load %arg32[%c4_220, %c0_221] : memref<16x16xf32, #tpu.memory_space<vmem>>, vector<2x16xf32>
    %c2_222 = arith.constant 2 : index
    %c0_223 = arith.constant 0 : index
    %c0_224 = arith.constant 0 : index
    %214 = vector.load %arg22[%c2_222, %c0_223, %c0_224] : memref<8x16x32xf32, #tpu.memory_space<vmem>>, vector<1x16x32xf32>
    %215 = vector.shape_cast %214 : vector<1x16x32xf32> to vector<16x32xf32>
    %cst_225 = arith.constant dense<0.000000e+00> : vector<2x32xf32>
    %216 = tpu.matmul %213, %215, %cst_225 {dimension_numbers = #tpu.dot_dimension_numbers<[1], [0], [0], [1], [0, 0, 1, 1], [], []>} : vector<2x16xf32>, vector<16x32xf32>, vector<2x32xf32> -> vector<2x32xf32>
    %217 = arith.addf %212, %216 : vector<2x32xf32>
    %c6_226 = arith.constant 6 : index
    %c0_227 = arith.constant 0 : index
    %218 = vector.load %arg32[%c6_226, %c0_227] : memref<16x16xf32, #tpu.memory_space<vmem>>, vector<2x16xf32>
    %c3 = arith.constant 3 : index
    %c0_228 = arith.constant 0 : index
    %c0_229 = arith.constant 0 : index
    %219 = vector.load %arg22[%c3, %c0_228, %c0_229] : memref<8x16x32xf32, #tpu.memory_space<vmem>>, vector<1x16x32xf32>
    %220 = vector.shape_cast %219 : vector<1x16x32xf32> to vector<16x32xf32>
    %cst_230 = arith.constant dense<0.000000e+00> : vector<2x32xf32>
    %221 = tpu.matmul %218, %220, %cst_230 {dimension_numbers = #tpu.dot_dimension_numbers<[1], [0], [0], [1], [0, 0, 1, 1], [], []>} : vector<2x16xf32>, vector<16x32xf32>, vector<2x32xf32> -> vector<2x32xf32>
    %222 = arith.addf %217, %221 : vector<2x32xf32>
    %c8_231 = arith.constant 8 : index
    %c0_232 = arith.constant 0 : index
    %223 = vector.load %arg32[%c8_231, %c0_232] : memref<16x16xf32, #tpu.memory_space<vmem>>, vector<2x16xf32>
    %c4_233 = arith.constant 4 : index
    %c0_234 = arith.constant 0 : index
    %c0_235 = arith.constant 0 : index
    %224 = vector.load %arg22[%c4_233, %c0_234, %c0_235] : memref<8x16x32xf32, #tpu.memory_space<vmem>>, vector<1x16x32xf32>
    %225 = vector.shape_cast %224 : vector<1x16x32xf32> to vector<16x32xf32>
    %cst_236 = arith.constant dense<0.000000e+00> : vector<2x32xf32>
    %226 = tpu.matmul %223, %225, %cst_236 {dimension_numbers = #tpu.dot_dimension_numbers<[1], [0], [0], [1], [0, 0, 1, 1], [], []>} : vector<2x16xf32>, vector<16x32xf32>, vector<2x32xf32> -> vector<2x32xf32>
    %227 = arith.addf %222, %226 : vector<2x32xf32>
    %c10 = arith.constant 10 : index
    %c0_237 = arith.constant 0 : index
    %228 = vector.load %arg32[%c10, %c0_237] : memref<16x16xf32, #tpu.memory_space<vmem>>, vector<2x16xf32>
    %c5 = arith.constant 5 : index
    %c0_238 = arith.constant 0 : index
    %c0_239 = arith.constant 0 : index
    %229 = vector.load %arg22[%c5, %c0_238, %c0_239] : memref<8x16x32xf32, #tpu.memory_space<vmem>>, vector<1x16x32xf32>
    %230 = vector.shape_cast %229 : vector<1x16x32xf32> to vector<16x32xf32>
    %cst_240 = arith.constant dense<0.000000e+00> : vector<2x32xf32>
    %231 = tpu.matmul %228, %230, %cst_240 {dimension_numbers = #tpu.dot_dimension_numbers<[1], [0], [0], [1], [0, 0, 1, 1], [], []>} : vector<2x16xf32>, vector<16x32xf32>, vector<2x32xf32> -> vector<2x32xf32>
    %232 = arith.addf %227, %231 : vector<2x32xf32>
    %c12 = arith.constant 12 : index
    %c0_241 = arith.constant 0 : index
    %233 = vector.load %arg32[%c12, %c0_241] : memref<16x16xf32, #tpu.memory_space<vmem>>, vector<2x16xf32>
    %c6_242 = arith.constant 6 : index
    %c0_243 = arith.constant 0 : index
    %c0_244 = arith.constant 0 : index
    %234 = vector.load %arg22[%c6_242, %c0_243, %c0_244] : memref<8x16x32xf32, #tpu.memory_space<vmem>>, vector<1x16x32xf32>
    %235 = vector.shape_cast %234 : vector<1x16x32xf32> to vector<16x32xf32>
    %cst_245 = arith.constant dense<0.000000e+00> : vector<2x32xf32>
    %236 = tpu.matmul %233, %235, %cst_245 {dimension_numbers = #tpu.dot_dimension_numbers<[1], [0], [0], [1], [0, 0, 1, 1], [], []>} : vector<2x16xf32>, vector<16x32xf32>, vector<2x32xf32> -> vector<2x32xf32>
    %237 = arith.addf %232, %236 : vector<2x32xf32>
    %c14 = arith.constant 14 : index
    %c0_246 = arith.constant 0 : index
    %238 = vector.load %arg32[%c14, %c0_246] : memref<16x16xf32, #tpu.memory_space<vmem>>, vector<2x16xf32>
    %c7 = arith.constant 7 : index
    %c0_247 = arith.constant 0 : index
    %c0_248 = arith.constant 0 : index
    %239 = vector.load %arg22[%c7, %c0_247, %c0_248] : memref<8x16x32xf32, #tpu.memory_space<vmem>>, vector<1x16x32xf32>
    %240 = vector.shape_cast %239 : vector<1x16x32xf32> to vector<16x32xf32>
    %cst_249 = arith.constant dense<0.000000e+00> : vector<2x32xf32>
    %241 = tpu.matmul %238, %240, %cst_249 {dimension_numbers = #tpu.dot_dimension_numbers<[1], [0], [0], [1], [0, 0, 1, 1], [], []>} : vector<2x16xf32>, vector<16x32xf32>, vector<2x32xf32> -> vector<2x32xf32>
    %242 = arith.addf %237, %241 : vector<2x32xf32>
    %c0_250 = arith.constant 0 : index
    %c0_251 = arith.constant 0 : index
    %243 = vector.load %arg24[%c0_250, %c0_251] : memref<32x16xf32, #tpu.memory_space<vmem>>, vector<32x16xf32>
    %cst_252 = arith.constant dense<0.000000e+00> : vector<2x16xf32>
    %244 = tpu.matmul %242, %243, %cst_252 {dimension_numbers = #tpu.dot_dimension_numbers<[1], [0], [0], [1], [0, 0, 1, 1], [], []>} : vector<2x32xf32>, vector<32x16xf32>, vector<2x16xf32> -> vector<2x16xf32>
    %c0_253 = arith.constant 0 : index
    %c0_254 = arith.constant 0 : index
    %245 = vector.load %arg25[%c0_253, %c0_254] : memref<1x16xf32, #tpu.memory_space<vmem>>, vector<1x16xf32>
    %246 = vector.broadcast %245 : vector<1x16xf32> to vector<2x16xf32>
    %247 = arith.addf %244, %246 : vector<2x16xf32>
    %c0_255 = arith.constant 0 : index
    %c0_256 = arith.constant 0 : index
    %248 = vector.load %arg26[%c0_255, %c0_256] : memref<16x8xf32, #tpu.memory_space<vmem>>, vector<16x8xf32>
    %cst_257 = arith.constant dense<0.000000e+00> : vector<2x8xf32>
    %249 = tpu.matmul %247, %248, %cst_257 {dimension_numbers = #tpu.dot_dimension_numbers<[1], [0], [0], [1], [0, 0, 1, 1], [], []>} : vector<2x16xf32>, vector<16x8xf32>, vector<2x8xf32> -> vector<2x8xf32>
    %c0_258 = arith.constant 0 : index
    %c0_259 = arith.constant 0 : index
    %250 = vector.load %arg27[%c0_258, %c0_259] : memref<1x8xf32, #tpu.memory_space<vmem>>, vector<1x8xf32>
    %251 = vector.broadcast %250 : vector<1x8xf32> to vector<2x8xf32>
    %252 = arith.addf %249, %251 : vector<2x8xf32>
    %c0_260 = arith.constant 0 : index
    %c0_261 = arith.constant 0 : index
    %253 = vector.load %arg28[%c0_260, %c0_261] : memref<8x2xf32, #tpu.memory_space<vmem>>, vector<8x2xf32>
    %cst_262 = arith.constant dense<0.000000e+00> : vector<2x2xf32>
    %254 = tpu.matmul %252, %253, %cst_262 {dimension_numbers = #tpu.dot_dimension_numbers<[1], [0], [0], [1], [0, 0, 1, 1], [], []>} : vector<2x8xf32>, vector<8x2xf32>, vector<2x2xf32> -> vector<2x2xf32>
    %c0_263 = arith.constant 0 : index
    %c0_264 = arith.constant 0 : index
    %255 = vector.load %arg29[%c0_263, %c0_264] : memref<1x2xf32, #tpu.memory_space<vmem>>, vector<1x2xf32>
    %256 = vector.broadcast %255 : vector<1x2xf32> to vector<2x2xf32>
    %257 = arith.addf %254, %256 : vector<2x2xf32>
    %c0_265 = arith.constant 0 : index
    %c0_266 = arith.constant 0 : index
    %258 = vector.load %arg30[%c0_265, %c0_266] : memref<2x2xf32, #tpu.memory_space<vmem>>, vector<2x2xf32>
    tpu.vector_store %arg30[%c0_265, %c0_266], %257 {strides = array<i32>} : memref<2x2xf32, #tpu.memory_space<vmem>>, vector<2x2xf32>,
    return
  }
  func.func @transform_0(%arg0: i32) -> (i32, i32, i32) {
    %c0_i32 = arith.constant 0 : i32
    %c0_i32_0 = arith.constant 0 : i32
    %c0_i32_1 = arith.constant 0 : i32
    %c0_i32_2 = arith.constant 0 : i32
    return %c0_i32, %c0_i32_0, %c0_i32_1 : i32, i32, i32
  }
  func.func @transform_1(%arg0: i32) -> (i32, i32, i32) {
    %c0_i32 = arith.constant 0 : i32
    %c0_i32_0 = arith.constant 0 : i32
    %c0_i32_1 = arith.constant 0 : i32
    %c0_i32_2 = arith.constant 0 : i32
    return %c0_i32, %c0_i32_0, %c0_i32_1 : i32, i32, i32
  }
  func.func @transform_2(%arg0: i32) -> (i32, i32) {
    %c0_i32 = arith.constant 0 : i32
    %c0_i32_0 = arith.constant 0 : i32
    %c0_i32_1 = arith.constant 0 : i32
    return %c0_i32, %c0_i32_0 : i32, i32
  }
  func.func @transform_3(%arg0: i32) -> (i32, i32, i32) {
    %c0_i32 = arith.constant 0 : i32
    %c0_i32_0 = arith.constant 0 : i32
    %c0_i32_1 = arith.constant 0 : i32
    %c0_i32_2 = arith.constant 0 : i32
    return %c0_i32, %c0_i32_0, %c0_i32_1 : i32, i32, i32
  }
  func.func @transform_4(%arg0: i32) -> (i32, i32) {
    %c0_i32 = arith.constant 0 : i32
    %c0_i32_0 = arith.constant 0 : i32
    %c0_i32_1 = arith.constant 0 : i32
    return %c0_i32, %c0_i32_0 : i32, i32
  }
  func.func @transform_5(%arg0: i32) -> (i32, i32, i32) {
    %c0_i32 = arith.constant 0 : i32
    %c0_i32_0 = arith.constant 0 : i32
    %c0_i32_1 = arith.constant 0 : i32
    %c0_i32_2 = arith.constant 0 : i32
    return %c0_i32, %c0_i32_0, %c0_i32_1 : i32, i32, i32
  }
  func.func @transform_6(%arg0: i32) -> (i32, i32) {
    %c0_i32 = arith.constant 0 : i32
    %c0_i32_0 = arith.constant 0 : i32
    %c0_i32_1 = arith.constant 0 : i32
    return %c0_i32, %c0_i32_0 : i32, i32
  }
  func.func @transform_7(%arg0: i32) -> (i32, i32, i32) {
    %c0_i32 = arith.constant 0 : i32
    %c0_i32_0 = arith.constant 0 : i32
    %c0_i32_1 = arith.constant 0 : i32
    %c0_i32_2 = arith.constant 0 : i32
    return %c0_i32, %c0_i32_0, %c0_i32_1 : i32, i32, i32
  }
  func.func @transform_8(%arg0: i32) -> (i32, i32) {
    %c0_i32 = arith.constant 0 : i32
    %c0_i32_0 = arith.constant 0 : i32
    %c0_i32_1 = arith.constant 0 : i32
    return %c0_i32, %c0_i32_0 : i32, i32
  }
  func.func @transform_9(%arg0: i32) -> (i32, i32, i32) {
    %c0_i32 = arith.constant 0 : i32
    %c0_i32_0 = arith.constant 0 : i32
    %c0_i32_1 = arith.constant 0 : i32
    %c0_i32_2 = arith.constant 0 : i32
    return %c0_i32, %c0_i32_0, %c0_i32_1 : i32, i32, i32
  }
  func.func @transform_10(%arg0: i32) -> (i32, i32) {
    %c0_i32 = arith.constant 0 : i32
    %c0_i32_0 = arith.constant 0 : i32
    %c0_i32_1 = arith.constant 0 : i32
    return %c0_i32, %c0_i32_0 : i32, i32
  }
  func.func @transform_11(%arg0: i32) -> (i32, i32, i32) {
    %c0_i32 = arith.constant 0 : i32
    %c0_i32_0 = arith.constant 0 : i32
    %c0_i32_1 = arith.constant 0 : i32
    %c0_i32_2 = arith.constant 0 : i32
    return %c0_i32, %c0_i32_0, %c0_i32_1 : i32, i32, i32
  }
  func.func @transform_12(%arg0: i32) -> (i32, i32) {
    %c0_i32 = arith.constant 0 : i32
    %c0_i32_0 = arith.constant 0 : i32
    %c0_i32_1 = arith.constant 0 : i32
    return %c0_i32, %c0_i32_0 : i32, i32
  }
  func.func @transform_13(%arg0: i32) -> (i32, i32, i32) {
    %c0_i32 = arith.constant 0 : i32
    %c0_i32_0 = arith.constant 0 : i32
    %c0_i32_1 = arith.constant 0 : i32
    %c0_i32_2 = arith.constant 0 : i32
    return %c0_i32, %c0_i32_0, %c0_i32_1 : i32, i32, i32
  }
  func.func @transform_14(%arg0: i32) -> (i32, i32) {
    %c0_i32 = arith.constant 0 : i32
    %c0_i32_0 = arith.constant 0 : i32
    %c0_i32_1 = arith.constant 0 : i32
    return %c0_i32, %c0_i32_0 : i32, i32
  }
  func.func @transform_15(%arg0: i32) -> (i32, i32, i32) {
    %c0_i32 = arith.constant 0 : i32
    %c0_i32_0 = arith.constant 0 : i32
    %c0_i32_1 = arith.constant 0 : i32
    %c0_i32_2 = arith.constant 0 : i32
    return %c0_i32, %c0_i32_0, %c0_i32_1 : i32, i32, i32
  }
  func.func @transform_16(%arg0: i32) -> (i32, i32) {
    %c0_i32 = arith.constant 0 : i32
    %c0_i32_0 = arith.constant 0 : i32
    %c0_i32_1 = arith.constant 0 : i32
    return %c0_i32, %c0_i32_0 : i32, i32
  }
  func.func @transform_17(%arg0: i32) -> (i32, i32, i32) {
    %c0_i32 = arith.constant 0 : i32
    %c0_i32_0 = arith.constant 0 : i32
    %c0_i32_1 = arith.constant 0 : i32
    %c0_i32_2 = arith.constant 0 : i32
    return %c0_i32, %c0_i32_0, %c0_i32_1 : i32, i32, i32
  }
  func.func @transform_18(%arg0: i32) -> (i32, i32) {
    %c0_i32 = arith.constant 0 : i32
    %c0_i32_0 = arith.constant 0 : i32
    %c0_i32_1 = arith.constant 0 : i32
    return %c0_i32, %c0_i32_0 : i32, i32
  }
  func.func @transform_19(%arg0: i32) -> (i32, i32, i32) {
    %c0_i32 = arith.constant 0 : i32
    %c0_i32_0 = arith.constant 0 : i32
    %c0_i32_1 = arith.constant 0 : i32
    %c0_i32_2 = arith.constant 0 : i32
    return %c0_i32, %c0_i32_0, %c0_i32_1 : i32, i32, i32
  }
  func.func @transform_20(%arg0: i32) -> (i32, i32) {
    %c0_i32 = arith.constant 0 : i32
    %c0_i32_0 = arith.constant 0 : i32
    %c0_i32_1 = arith.constant 0 : i32
    return %c0_i32, %c0_i32_0 : i32, i32
  }
  func.func @transform_21(%arg0: i32) -> (i32, i32, i32) {
    %c0_i32 = arith.constant 0 : i32
    %c0_i32_0 = arith.constant 0 : i32
    %c0_i32_1 = arith.constant 0 : i32
    %c0_i32_2 = arith.constant 0 : i32
    return %c0_i32, %c0_i32_0, %c0_i32_1 : i32, i32, i32
  }
  func.func @transform_22(%arg0: i32) -> (i32, i32) {
    %c0_i32 = arith.constant 0 : i32
    %c0_i32_0 = arith.constant 0 : i32
    %c0_i32_1 = arith.constant 0 : i32
    return %c0_i32, %c0_i32_0 : i32, i32
  }
  func.func @transform_23(%arg0: i32) -> (i32, i32) {
    %c0_i32 = arith.constant 0 : i32
    %c0_i32_0 = arith.constant 0 : i32
    %c0_i32_1 = arith.constant 0 : i32
    return %c0_i32, %c0_i32_0 : i32, i32
  }
  func.func @transform_24(%arg0: i32) -> (i32, i32) {
    %c0_i32 = arith.constant 0 : i32
    %c0_i32_0 = arith.constant 0 : i32
    %c0_i32_1 = arith.constant 0 : i32
    return %c0_i32, %c0_i32_0 : i32, i32
  }
  func.func @transform_25(%arg0: i32) -> (i32, i32) {
    %c0_i32 = arith.constant 0 : i32
    %c0_i32_0 = arith.constant 0 : i32
    %c0_i32_1 = arith.constant 0 : i32
    return %c0_i32, %c0_i32_0 : i32, i32
  }
  func.func @transform_26(%arg0: i32) -> (i32, i32) {
    %c0_i32 = arith.constant 0 : i32
    %c0_i32_0 = arith.constant 0 : i32
    %c0_i32_1 = arith.constant 0 : i32
    return %c0_i32, %c0_i32_0 : i32, i32
  }
  func.func @transform_27(%arg0: i32) -> (i32, i32) {
    %c0_i32 = arith.constant 0 : i32
    %c0_i32_0 = arith.constant 0 : i32
    %c0_i32_1 = arith.constant 0 : i32
    return %c0_i32, %c0_i32_0 : i32, i32
  }
  func.func @transform_28(%arg0: i32) -> (i32, i32) {
    %c0_i32 = arith.constant 0 : i32
    %c0_i32_0 = arith.constant 0 : i32
    %c0_i32_1 = arith.constant 0 : i32
    return %c0_i32, %c0_i32_0 : i32, i32
  }
  func.func @transform_29(%arg0: i32) -> (i32, i32) {
    %c0_i32 = arith.constant 0 : i32
    %c0_i32_0 = arith.constant 0 : i32
    %c0_i32_1 = arith.constant 0 : i32
    return %c0_i32, %c0_i32_0 : i32, i32
  }
}

</mosaic_0001>

<llo_original>
// kernel: res_fork_net.1
$region0: #{res_fork_net.1}
  #allocation0 [shape = 'u32[]', space=smem, size = 0x4, offset = 0x4, fixed_abs, tag = 'smem constant byte address 0x4 - core index']
  #allocation1 [shape = 'u32[144,128]{1,0:T(1,128)}', space=vmem, size = 0x12000, scoped, tag = 'internal scratch']
  #allocation2 [shape = 'f32[24,8]{1,0:T(8,128)}', space=vmem, size = 0x3000, scoped, tag = 'scratch operand']
  #allocation3 [shape = 'f32[16,16]{1,0:T(8,128)}', space=vmem, size = 0x2000, scoped, tag = 'scratch operand']
  %s0 = inlined_call_operand.smem [shape: u32[30], index: -1, kind: input, shape index: {}]
  %s1 = sld [smem:[%s0]]
  %s2 = scalar_lea.smem %s0, 1
  %s3 = sld [smem:[%s2]]
  %s4 = scalar_lea.smem %s0, 2
  %s5 = sld [smem:[%s4]]
  %s6 = scalar_lea.smem %s0, 3
  %s7 = sld [smem:[%s6]]
  %s8 = scalar_lea.smem %s0, 4
  %s9 = sld [smem:[%s8]]
  %s10 = scalar_lea.smem %s0, 5
  %s11 = sld [smem:[%s10]]
  %s12 = scalar_lea.smem %s0, 6
  %s13 = sld [smem:[%s12]]
  %s14 = scalar_lea.smem %s0, 7
  %s15 = sld [smem:[%s14]]
  %s16 = scalar_lea.smem %s0, 8
  %s17 = sld [smem:[%s16]]
  %s18 = scalar_lea.smem %s0, 9
  %s19 = sld [smem:[%s18]]
  %s20 = scalar_lea.smem %s0, 10
  %s21 = sld [smem:[%s20]]
  %s22 = scalar_lea.smem %s0, 11
  %s23 = sld [smem:[%s22]]
  %s24 = scalar_lea.smem %s0, 12
  %s25 = sld [smem:[%s24]]
  %s26 = scalar_lea.smem %s0, 13
  %s27 = sld [smem:[%s26]]
  %s28 = scalar_lea.smem %s0, 14
  %s29 = sld [smem:[%s28]]
  %s30 = scalar_lea.smem %s0, 15
  %s31 = sld [smem:[%s30]]
  %s32 = scalar_lea.smem %s0, 16
  %s33 = sld [smem:[%s32]]
  %s34 = scalar_lea.smem %s0, 17
  %s35 = sld [smem:[%s34]]
  %s36 = scalar_lea.smem %s0, 18
  %s37 = sld [smem:[%s36]]
  %s38 = scalar_lea.smem %s0, 19
  %s39 = sld [smem:[%s38]]
  %s40 = scalar_lea.smem %s0, 20
  %s41 = sld [smem:[%s40]]
  %s42 = scalar_lea.smem %s0, 21
  %s43 = sld [smem:[%s42]]
  %s44 = scalar_lea.smem %s0, 22
  %s45 = sld [smem:[%s44]]
  %s46 = scalar_lea.smem %s0, 23
  %s47 = sld [smem:[%s46]]
  %s48 = scalar_lea.smem %s0, 24
  %s49 = sld [smem:[%s48]]
  %s50 = scalar_lea.smem %s0, 25
  %s51 = sld [smem:[%s50]]
  %s52 = scalar_lea.smem %s0, 26
  %s53 = sld [smem:[%s52]]
  %s54 = scalar_lea.smem %s0, 27
  %s55 = sld [smem:[%s54]]
  %s56 = scalar_lea.smem %s0, 28
  %s57 = sld [smem:[%s56]]
  %s58 = scalar_lea.smem %s0, 29
  %s59 = sld [smem:[%s58]]
  %s60 = sld [smem:[#allocation0]]
  $region182: #{res_fork_net.1} parent=0
    _
  %s62 = ssub.s32 1, %s60
  %s63 = scalar_select 0, %s62, %s60
  $region1: #{res_fork_net.1} parent=0
    #allocation4 [shape = 'u8[6144]{0}', space=vmem, size = 0x1800, scoped, tag = 'input window, operand 1, single buffered']
    #allocation5 [shape = 's32[1]{0}', space=sflag, size = 0x4, scoped, tag = 'scoped memory for res_fork_net.1']
    #allocation6 [shape = 's32[1]{0}', space=sflag, size = 0x4, scoped, tag = 'scoped memory for res_fork_net.1']
    #allocation7 [shape = 'u8[512]{0}', space=vmem, size = 0x400, scoped, tag = 'input window, operand 2, single buffered']
    #allocation8 [shape = 's32[1]{0}', space=sflag, size = 0x4, scoped, tag = 'scoped memory for res_fork_net.1']
    #allocation9 [shape = 'u8[12288]{0}', space=vmem, size = 0x3000, scoped, tag = 'input window, operand 3, single buffered']
    #allocation10 [shape = 'u8[512]{0}', space=vmem, size = 0x400, scoped, tag = 'input window, operand 4, single buffered']
    #allocation11 [shape = 's32[1]{0}', space=sflag, size = 0x4, scoped, tag = 'scoped memory for res_fork_net.1']
    #allocation12 [shape = 'u8[2048]{0}', space=vmem, size = 0x800, scoped, tag = 'input window, operand 5, single buffered']
    #allocation13 [shape = 'u8[512]{0}', space=vmem, size = 0x400, scoped, tag = 'input window, operand 6, single buffered']
    #allocation14 [shape = 's32[1]{0}', space=sflag, size = 0x4, scoped, tag = 'scoped memory for res_fork_net.1']
    #allocation15 [shape = 'u8[12288]{0}', space=vmem, size = 0x3000, scoped, tag = 'input window, operand 7, single buffered']
    #allocation16 [shape = 'u8[512]{0}', space=vmem, size = 0x400, scoped, tag = 'input window, operand 8, single buffered']
    #allocation17 [shape = 's32[1]{0}', space=sflag, size = 0x4, scoped, tag = 'scoped memory for res_fork_net.1']
    #allocation18 [shape = 'u8[12288]{0}', space=vmem, size = 0x3000, scoped, tag = 'input window, operand 9, single buffered']
    #allocation19 [shape = 'u8[512]{0}', space=vmem, size = 0x400, scoped, tag = 'input window, operand 10, single buffered']
    #allocation20 [shape = 's32[1]{0}', space=sflag, size = 0x4, scoped, tag = 'scoped memory for res_fork_net.1']
    #allocation21 [shape = 'u8[6144]{0}', space=vmem, size = 0x1800, scoped, tag = 'input window, operand 11, single buffered']
    #allocation22 [shape = 'u8[512]{0}', space=vmem, size = 0x400, scoped, tag = 'input window, operand 12, single buffered']
    #allocation23 [shape = 's32[1]{0}', space=sflag, size = 0x4, scoped, tag = 'scoped memory for res_fork_net.1']
    #allocation24 [shape = 'u8[512]{0}', space=vmem, size = 0x400, scoped, tag = 'input window, operand 14, single buffered']
    #allocation25 [shape = 'u8[65536]{0}', space=vmem, size = 0x10000, scoped, tag = 'input window, operand 21, single buffered']
    #allocation26 [shape = 's32[1]{0}', space=sflag, size = 0x4, scoped, tag = 'scoped memory for res_fork_net.1']
    #allocation27 [shape = 'u8[1024]{0}', space=vmem, size = 0x400, scoped, tag = 'output window, operand 0, single buffered']
    %64 = vsyncpa [#allocation5], 0
    %65 = vsyncpa [#allocation8], 0
    %66 = vsyncpa [#allocation11], 0
    %67 = vsyncpa [#allocation14], 0
    %68 = vsyncpa [#allocation17], 0
    %69 = vsyncpa [#allocation20], 0
    %70 = vsyncpa [#allocation23], 0
    %71 = vsyncpa [#allocation26], 0
    %72 = vsyncpa [#allocation6], 0
    // Predicated region
    $region2: #{res_fork_net.1} parent=1 // pred_check
      _
    $region3: #{res_fork_net.1} parent=1 // pred_check_branch
      %74 = sbr.rel (0) target = $region5
    $region4: #{res_fork_net.1} parent=1 // pred_region
      _
    $region5: #{res_fork_net.1} parent=1 // pred_fallthru
      _
    // Predicated region
    $region6: #{res_fork_net.1} parent=1 // pred_check
      _
    $region7: #{res_fork_net.1} parent=1 // pred_check_branch
      %76 = sbr.rel (0) target = $region9
    $region8: #{res_fork_net.1} parent=1 // pred_region
      %s78 = ssub.s32 192, 192
      %79 = vsyncadd [#allocation5], %s78
      %s80 = sshll.u32 [#allocation4], 4
      %s81 = int_to_ptr.vmem [resolvable:$true] %s80
      %86 = dma.hbm_to_vmem [thread:$0]  %s3, 192, %s81, [#allocation5], 64, 64, 4
    $region9: #{res_fork_net.1} parent=1 // pred_fallthru
      _
    // Predicated region
    $region10: #{res_fork_net.1} parent=1 // pred_check
      _
    $region11: #{res_fork_net.1} parent=1 // pred_check_branch
      %88 = sbr.rel (0) target = $region13
    $region12: #{res_fork_net.1} parent=1 // pred_region
      %s90 = ssub.s32 16, 16
      %91 = vsyncadd [#allocation8], %s90
      %s93 = sshll.u32 [#allocation7], 4
      %s94 = int_to_ptr.vmem [resolvable:$true] %s93
      %96 = dma.hbm_to_vmem [thread:$0]  %s5, 16, %s94, [#allocation8]
    $region13: #{res_fork_net.1} parent=1 // pred_fallthru
      _
    // Predicated region
    $region14: #{res_fork_net.1} parent=1 // pred_check
      _
    $region15: #{res_fork_net.1} parent=1 // pred_check_branch
      %98 = sbr.rel (0) target = $region17
    $region16: #{res_fork_net.1} parent=1 // pred_region
      %s100 = ssub.s32 384, 384
      %101 = vsyncadd [#allocation8], %s100
      %s102 = sshll.u32 [#allocation9], 4
      %s103 = int_to_ptr.vmem [resolvable:$true] %s102
      %108 = dma.hbm_to_vmem [thread:$0]  %s7, 384, %s103, [#allocation8], 128, 128, 8
    $region17: #{res_fork_net.1} parent=1 // pred_fallthru
      _
    // Predicated region
    $region18: #{res_fork_net.1} parent=1 // pred_check
      _
    $region19: #{res_fork_net.1} parent=1 // pred_check_branch
      %110 = sbr.rel (0) target = $region21
    $region20: #{res_fork_net.1} parent=1 // pred_region
      %s112 = ssub.s32 16, 16
      %113 = vsyncadd [#allocation11], %s112
      %s115 = sshll.u32 [#allocation10], 4
      %s116 = int_to_ptr.vmem [resolvable:$true] %s115
      %118 = dma.hbm_to_vmem [thread:$0]  %s9, 16, %s116, [#allocation11]
    $region21: #{res_fork_net.1} parent=1 // pred_fallthru
      _
    // Predicated region
    $region22: #{res_fork_net.1} parent=1 // pred_check
      _
    $region23: #{res_fork_net.1} parent=1 // pred_check_branch
      %120 = sbr.rel (0) target = $region25
    $region24: #{res_fork_net.1} parent=1 // pred_region
      %s122 = ssub.s32 64, 64
      %123 = vsyncadd [#allocation11], %s122
      %s125 = sshll.u32 [#allocation12], 4
      %s126 = int_to_ptr.vmem [resolvable:$true] %s125
      %128 = dma.hbm_to_vmem [thread:$0]  %s11, 64, %s126, [#allocation11]
    $region25: #{res_fork_net.1} parent=1 // pred_fallthru
      _
    // Predicated region
    $region26: #{res_fork_net.1} parent=1 // pred_check
      _
    $region27: #{res_fork_net.1} parent=1 // pred_check_branch
      %130 = sbr.rel (0) target = $region29
    $region28: #{res_fork_net.1} parent=1 // pred_region
      %s132 = ssub.s32 16, 16
      %133 = vsyncadd [#allocation14], %s132
      %s135 = sshll.u32 [#allocation13], 4
      %s136 = int_to_ptr.vmem [resolvable:$true] %s135
      %138 = dma.hbm_to_vmem [thread:$0]  %s13, 16, %s136, [#allocation14]
    $region29: #{res_fork_net.1} parent=1 // pred_fallthru
      _
    // Predicated region
    $region30: #{res_fork_net.1} parent=1 // pred_check
      _
    $region31: #{res_fork_net.1} parent=1 // pred_check_branch
      %140 = sbr.rel (0) target = $region33
    $region32: #{res_fork_net.1} parent=1 // pred_region
      %s142 = ssub.s32 384, 384
      %143 = vsyncadd [#allocation14], %s142
      %s144 = sshll.u32 [#allocation15], 4
      %s145 = int_to_ptr.vmem [resolvable:$true] %s144
      %150 = dma.hbm_to_vmem [thread:$0]  %s15, 384, %s145, [#allocation14], 128, 128, 8
    $region33: #{res_fork_net.1} parent=1 // pred_fallthru
      _
    // Predicated region
    $region34: #{res_fork_net.1} parent=1 // pred_check
      _
    $region35: #{res_fork_net.1} parent=1 // pred_check_branch
      %152 = sbr.rel (0) target = $region37
    $region36: #{res_fork_net.1} parent=1 // pred_region
      %s154 = ssub.s32 16, 16
      %155 = vsyncadd [#allocation17], %s154
      %s157 = sshll.u32 [#allocation16], 4
      %s158 = int_to_ptr.vmem [resolvable:$true] %s157
      %160 = dma.hbm_to_vmem [thread:$0]  %s17, 16, %s158, [#allocation17]
    $region37: #{res_fork_net.1} parent=1 // pred_fallthru
      _
    // Predicated region
    $region38: #{res_fork_net.1} parent=1 // pred_check
      _
    $region39: #{res_fork_net.1} parent=1 // pred_check_branch
      %162 = sbr.rel (0) target = $region41
    $region40: #{res_fork_net.1} parent=1 // pred_region
      %s164 = ssub.s32 384, 384
      %165 = vsyncadd [#allocation17], %s164
      %s166 = sshll.u32 [#allocation18], 4
      %s167 = int_to_ptr.vmem [resolvable:$true] %s166
      %172 = dma.hbm_to_vmem [thread:$0]  %s19, 384, %s167, [#allocation17], 128, 128, 8
    $region41: #{res_fork_net.1} parent=1 // pred_fallthru
      _
    // Predicated region
    $region42: #{res_fork_net.1} parent=1 // pred_check
      _
    $region43: #{res_fork_net.1} parent=1 // pred_check_branch
      %174 = sbr.rel (0) target = $region45
    $region44: #{res_fork_net.1} parent=1 // pred_region
      %s176 = ssub.s32 16, 16
      %177 = vsyncadd [#allocation20], %s176
      %s179 = sshll.u32 [#allocation19], 4
      %s180 = int_to_ptr.vmem [resolvable:$true] %s179
      %182 = dma.hbm_to_vmem [thread:$0]  %s21, 16, %s180, [#allocation20]
    $region45: #{res_fork_net.1} parent=1 // pred_fallthru
      _
    // Predicated region
    $region46: #{res_fork_net.1} parent=1 // pred_check
      _
    $region47: #{res_fork_net.1} parent=1 // pred_check_branch
      %184 = sbr.rel (0) target = $region49
    $region48: #{res_fork_net.1} parent=1 // pred_region
      %s186 = ssub.s32 192, 192
      %187 = vsyncadd [#allocation20], %s186
      %s188 = sshll.u32 [#allocation21], 4
      %s189 = int_to_ptr.vmem [resolvable:$true] %s188
      %194 = dma.hbm_to_vmem [thread:$0]  %s23, 192, %s189, [#allocation20], 64, 64, 4
    $region49: #{res_fork_net.1} parent=1 // pred_fallthru
      _
    // Predicated region
    $region50: #{res_fork_net.1} parent=1 // pred_check
      _
    $region51: #{res_fork_net.1} parent=1 // pred_check_branch
      %196 = sbr.rel (0) target = $region53
    $region52: #{res_fork_net.1} parent=1 // pred_region
      %s198 = ssub.s32 16, 16
      %199 = vsyncadd [#allocation23], %s198
      %s201 = sshll.u32 [#allocation22], 4
      %s202 = int_to_ptr.vmem [resolvable:$true] %s201
      %204 = dma.hbm_to_vmem [thread:$0]  %s25, 16, %s202, [#allocation23]
    $region53: #{res_fork_net.1} parent=1 // pred_fallthru
      _
    // Predicated region
    $region54: #{res_fork_net.1} parent=1 // pred_check
      _
    $region55: #{res_fork_net.1} parent=1 // pred_check_branch
      %206 = sbr.rel (0) target = $region57
    $region56: #{res_fork_net.1} parent=1 // pred_region
      _
    $region57: #{res_fork_net.1} parent=1 // pred_fallthru
      _
    // Predicated region
    $region58: #{res_fork_net.1} parent=1 // pred_check
      _
    $region59: #{res_fork_net.1} parent=1 // pred_check_branch
      %208 = sbr.rel (0) target = $region61
    $region60: #{res_fork_net.1} parent=1 // pred_region
      %s210 = ssub.s32 16, 16
      %211 = vsyncadd [#allocation23], %s210
      %s213 = sshll.u32 [#allocation24], 4
      %s214 = int_to_ptr.vmem [resolvable:$true] %s213
      %216 = dma.hbm_to_vmem [thread:$0]  %s29, 16, %s214, [#allocation23]
    $region61: #{res_fork_net.1} parent=1 // pred_fallthru
      _
    // Predicated region
    $region62: #{res_fork_net.1} parent=1 // pred_check
      _
    $region63: #{res_fork_net.1} parent=1 // pred_check_branch
      %218 = sbr.rel (0) target = $region65
    $region64: #{res_fork_net.1} parent=1 // pred_region
      _
    $region65: #{res_fork_net.1} parent=1 // pred_fallthru
      _
    // Predicated region
    $region66: #{res_fork_net.1} parent=1 // pred_check
      _
    $region67: #{res_fork_net.1} parent=1 // pred_check_branch
      %220 = sbr.rel (0) target = $region69
    $region68: #{res_fork_net.1} parent=1 // pred_region
      _
    $region69: #{res_fork_net.1} parent=1 // pred_fallthru
      _
    // Predicated region
    $region70: #{res_fork_net.1} parent=1 // pred_check
      _
    $region71: #{res_fork_net.1} parent=1 // pred_check_branch
      %222 = sbr.rel (0) target = $region73
    $region72: #{res_fork_net.1} parent=1 // pred_region
      _
    $region73: #{res_fork_net.1} parent=1 // pred_fallthru
      _
    // Predicated region
    $region74: #{res_fork_net.1} parent=1 // pred_check
      _
    $region75: #{res_fork_net.1} parent=1 // pred_check_branch
      %224 = sbr.rel (0) target = $region77
    $region76: #{res_fork_net.1} parent=1 // pred_region
      _
    $region77: #{res_fork_net.1} parent=1 // pred_fallthru
      _
    // Predicated region
    $region78: #{res_fork_net.1} parent=1 // pred_check
      _
    $region79: #{res_fork_net.1} parent=1 // pred_check_branch
      %226 = sbr.rel (0) target = $region81
    $region80: #{res_fork_net.1} parent=1 // pred_region
      _
    $region81: #{res_fork_net.1} parent=1 // pred_fallthru
      _
    // Predicated region
    $region82: #{res_fork_net.1} parent=1 // pred_check
      _
    $region83: #{res_fork_net.1} parent=1 // pred_check_branch
      %228 = sbr.rel (0) target = $region85
    $region84: #{res_fork_net.1} parent=1 // pred_region
      _
    $region85: #{res_fork_net.1} parent=1 // pred_fallthru
      _
    // Predicated region
    $region86: #{res_fork_net.1} parent=1 // pred_check
      _
    $region87: #{res_fork_net.1} parent=1 // pred_check_branch
      %230 = sbr.rel (0) target = $region89
    $region88: #{res_fork_net.1} parent=1 // pred_region
      %s232 = ssub.s32 2048, 2048
      %233 = vsyncadd [#allocation26], %s232
      %s234 = sshll.u32 [#allocation25], 4
      %s235 = int_to_ptr.vmem [resolvable:$true] %s234
      %240 = dma.hbm_to_vmem [thread:$0]  %s43, 2048, %s235, [#allocation26], 128, 128, 8
    $region89: #{res_fork_net.1} parent=1 // pred_fallthru
      _
    // Predicated region
    $region90: #{res_fork_net.1} parent=1 // pred_check
      _
    $region91: #{res_fork_net.1} parent=1 // pred_check_branch
      %242 = sbr.rel (0) target = $region93
    $region92: #{res_fork_net.1} parent=1 // pred_region
      _
    $region93: #{res_fork_net.1} parent=1 // pred_fallthru
      _
    // Predicated region
    $region94: #{res_fork_net.1} parent=1 // pred_check
      _
    $region95: #{res_fork_net.1} parent=1 // pred_check_branch
      %244 = sbr.rel (0) target = $region97
    $region96: #{res_fork_net.1} parent=1 // pred_region
      _
    $region97: #{res_fork_net.1} parent=1 // pred_fallthru
      _
    // Predicated region
    $region98: #{res_fork_net.1} parent=1 // pred_check
      _
    $region99: #{res_fork_net.1} parent=1 // pred_check_branch
      %246 = sbr.rel (0) target = $region101
    $region100: #{res_fork_net.1} parent=1 // pred_region
      _
    $region101: #{res_fork_net.1} parent=1 // pred_fallthru
      _
    // Predicated region
    $region102: #{res_fork_net.1} parent=1 // pred_check
      _
    $region103: #{res_fork_net.1} parent=1 // pred_check_branch
      %248 = sbr.rel (0) target = $region105
    $region104: #{res_fork_net.1} parent=1 // pred_region
      _
    $region105: #{res_fork_net.1} parent=1 // pred_fallthru
      _
    // Predicated region
    $region106: #{res_fork_net.1} parent=1 // pred_check
      _
    $region107: #{res_fork_net.1} parent=1 // pred_check_branch
      %250 = sbr.rel (0) target = $region109
    $region108: #{res_fork_net.1} parent=1 // pred_region
      _
    $region109: #{res_fork_net.1} parent=1 // pred_fallthru
      _
    // Predicated region
    $region110: #{res_fork_net.1} parent=1 // pred_check
      _
    $region111: #{res_fork_net.1} parent=1 // pred_check_branch
      %252 = sbr.rel (0) target = $region113
    $region112: #{res_fork_net.1} parent=1 // pred_region
      _
    $region113: #{res_fork_net.1} parent=1 // pred_fallthru
      _
    // Predicated region
    $region114: #{res_fork_net.1} parent=1 // pred_check
      _
    $region115: #{res_fork_net.1} parent=1 // pred_check_branch
      %254 = sbr.rel (0) target = $region117
    $region116: #{res_fork_net.1} parent=1 // pred_region
      _
    $region117: #{res_fork_net.1} parent=1 // pred_fallthru
      _
    // Predicated region
    $region118: #{res_fork_net.1} parent=1 // pred_check
      _
    $region119: #{res_fork_net.1} parent=1 // pred_check_branch
      %256 = sbr.rel (0) target = $region121
    $region120: #{res_fork_net.1} parent=1 // pred_region
      %257 = dma.done [#allocation5], 192
    $region121: #{res_fork_net.1} parent=1 // pred_fallthru
      _
    // Predicated region
    $region122: #{res_fork_net.1} parent=1 // pred_check
      _
    $region123: #{res_fork_net.1} parent=1 // pred_check_branch
      %259 = sbr.rel (0) target = $region125
    $region124: #{res_fork_net.1} parent=1 // pred_region
      %260 = dma.done [#allocation8], 16
    $region125: #{res_fork_net.1} parent=1 // pred_fallthru
      _
    // Predicated region
    $region126: #{res_fork_net.1} parent=1 // pred_check
      _
    $region127: #{res_fork_net.1} parent=1 // pred_check_branch
      %262 = sbr.rel (0) target = $region129
    $region128: #{res_fork_net.1} parent=1 // pred_region
      %263 = dma.done [#allocation8], 384
    $region129: #{res_fork_net.1} parent=1 // pred_fallthru
      _
    // Predicated region
    $region130: #{res_fork_net.1} parent=1 // pred_check
      _
    $region131: #{res_fork_net.1} parent=1 // pred_check_branch
      %265 = sbr.rel (0) target = $region133
    $region132: #{res_fork_net.1} parent=1 // pred_region
      %266 = dma.done [#allocation11], 16
    $region133: #{res_fork_net.1} parent=1 // pred_fallthru
      _
    // Predicated region
    $region134: #{res_fork_net.1} parent=1 // pred_check
      _
    $region135: #{res_fork_net.1} parent=1 // pred_check_branch
      %268 = sbr.rel (0) target = $region137
    $region136: #{res_fork_net.1} parent=1 // pred_region
      %269 = dma.done [#allocation11], 64
    $region137: #{res_fork_net.1} parent=1 // pred_fallthru
      _
    // Predicated region
    $region138: #{res_fork_net.1} parent=1 // pred_check
      _
    $region139: #{res_fork_net.1} parent=1 // pred_check_branch
      %271 = sbr.rel (0) target = $region141
    $region140: #{res_fork_net.1} parent=1 // pred_region
      %272 = dma.done [#allocation14], 16
    $region141: #{res_fork_net.1} parent=1 // pred_fallthru
      _
    // Predicated region
    $region142: #{res_fork_net.1} parent=1 // pred_check
      _
    $region143: #{res_fork_net.1} parent=1 // pred_check_branch
      %274 = sbr.rel (0) target = $region145
    $region144: #{res_fork_net.1} parent=1 // pred_region
      %275 = dma.done [#allocation14], 384
    $region145: #{res_fork_net.1} parent=1 // pred_fallthru
      _
    // Predicated region
    $region146: #{res_fork_net.1} parent=1 // pred_check
      _
    $region147: #{res_fork_net.1} parent=1 // pred_check_branch
      %277 = sbr.rel (0) target = $region149
    $region148: #{res_fork_net.1} parent=1 // pred_region
      %278 = dma.done [#allocation17], 16
    $region149: #{res_fork_net.1} parent=1 // pred_fallthru
      _
    // Predicated region
    $region150: #{res_fork_net.1} parent=1 // pred_check
      _
    $region151: #{res_fork_net.1} parent=1 // pred_check_branch
      %280 = sbr.rel (0) target = $region153
    $region152: #{res_fork_net.1} parent=1 // pred_region
      %281 = dma.done [#allocation17], 384
    $region153: #{res_fork_net.1} parent=1 // pred_fallthru
      _
    // Predicated region
    $region154: #{res_fork_net.1} parent=1 // pred_check
      _
    $region155: #{res_fork_net.1} parent=1 // pred_check_branch
      %283 = sbr.rel (0) target = $region157
    $region156: #{res_fork_net.1} parent=1 // pred_region
      %284 = dma.done [#allocation20], 16
    $region157: #{res_fork_net.1} parent=1 // pred_fallthru
      _
    // Predicated region
    $region158: #{res_fork_net.1} parent=1 // pred_check
      _
    $region159: #{res_fork_net.1} parent=1 // pred_check_branch
      %286 = sbr.rel (0) target = $region161
    $region160: #{res_fork_net.1} parent=1 // pred_region
      %287 = dma.done [#allocation20], 192
    $region161: #{res_fork_net.1} parent=1 // pred_fallthru
      _
    // Predicated region
    $region162: #{res_fork_net.1} parent=1 // pred_check
      _
    $region163: #{res_fork_net.1} parent=1 // pred_check_branch
      %289 = sbr.rel (0) target = $region165
    $region164: #{res_fork_net.1} parent=1 // pred_region
      %290 = dma.done [#allocation23], 16
    $region165: #{res_fork_net.1} parent=1 // pred_fallthru
      _
    // Predicated region
    $region166: #{res_fork_net.1} parent=1 // pred_check
      _
    $region167: #{res_fork_net.1} parent=1 // pred_check_branch
      %292 = sbr.rel (0) target = $region169
    $region168: #{res_fork_net.1} parent=1 // pred_region
      %293 = dma.done [#allocation23], 16
    $region169: #{res_fork_net.1} parent=1 // pred_fallthru
      _
    // Predicated region
    $region170: #{res_fork_net.1} parent=1 // pred_check
      _
    $region171: #{res_fork_net.1} parent=1 // pred_check_branch
      %295 = sbr.rel (0) target = $region173
    $region172: #{res_fork_net.1} parent=1 // pred_region
      %296 = dma.done [#allocation26], 2048
    $region173: #{res_fork_net.1} parent=1 // pred_fallthru
      _
    %vm297 = vcmask 64512
    %298 = vst.msk [vmem:[#allocation2] sm:$0xff] %vm297, 0.0
    %299 = vst.msk [vmem:[#allocation2 + $0x8] sm:$0xff] %vm297, 0.0
    %300 = vst.msk [vmem:[#allocation2 + $0x10] sm:$0xff] %vm297, 0.0
    %v301 = vld [vmem:[%s1] sm:$0xff]
    %v302 = vld [vmem:[%s1 + $0x8] sm:$0xff]
    %vm303 = vcmask 31744
    %304 = vst.msk [vmem:[#allocation2 + $0x8] sm:$0xff] %vm303, %v301
    %305 = vst.msk [vmem:[#allocation2 + $0x10] sm:$0xff] %vm303, %v302
    %v306 = vld [vmem:[#allocation7] sm:$0x1]
    %v308 = vlaneseq
    %v309 = vshrl.u32 %v308, 7
    %v310 = vsub.s32 0, %v309
    %v311 = vrot.slane %v306, %v310
    %v313 = vld [vmem:[#allocation2 + $0x4] sm:$0xff]
    %v314 = vld [vmem:[#allocation2 + $0xc] sm:$0xff]
    %v315 = vld [vmem:[#allocation4] sm:$0xf]
    %v317 = vsel %vm303, %v313, 0
    %v320 = vsel %vm303, %v314, 0
    %vm322 = vcmask 1043456
    %v324 = vsel %vm322, %v315, 0
    %326 = vmatprep.subr.mxu0 0.0
    %327 = vmatpush1.msra.mxu0 %v324
    %328 = vmatprep.subr.mxu0 0.0
    %329 = vmatpush1.msra.mxu0 0.0
    %330 = vmatprep.subr.mxu0 0.0
    %331 = vmatpush1.msra.mxu0 0.0
    %332 = vmatprep.subr.mxu0 0.0
    %333 = vmatpush1.msra.mxu0 0.0
    %334 = vmatprep.subr.mxu0 0.0
    %335 = vmatpush1.msra.mxu0 0.0
    %336 = vmatprep.subr.mxu0 0.0
    %337 = vmatpush1.msra.mxu0 0.0
    %338 = vmatprep.subr.mxu0 0.0
    %339 = vmatpush1.msra.mxu0 0.0
    %340 = vmatprep.subr.mxu0 0.0
    %341 = vmatpush1.msra.mxu0 0.0
    %342 = vmatprep.subr.mxu0 0.0
    %343 = vmatpush1.msra.mxu0 0.0
    %344 = vmatprep.subr.mxu0 0.0
    %345 = vmatpush1.msra.mxu0 0.0
    %346 = vmatprep.subr.mxu0 0.0
    %347 = vmatpush1.msra.mxu0 0.0
    %348 = vmatprep.subr.mxu0 0.0
    %349 = vmatpush1.msra.mxu0 0.0
    %350 = vmatprep.subr.mxu0 0.0
    %351 = vmatpush1.msra.mxu0 0.0
    %352 = vmatprep.subr.mxu0 0.0
    %353 = vmatpush1.msra.mxu0 0.0
    %354 = vmatprep.subr.mxu0 0.0
    %355 = vmatpush1.msra.mxu0 0.0
    %356 = vmatprep.subr.mxu0 0.0
    %357 = vmatpush1.msra.mxu0 0.0
    %358 = vmatprep.subr.mxu0 0.0
    %359 = vmatpush1.msra.mxu0 0.0
    %360 = vmatprep.subr.mxu0 0.0
    %361 = vmatpush1.msra.mxu0 0.0
    %362 = vmatprep.subr.mxu0 0.0
    %363 = vmatpush1.msra.mxu0 0.0
    %364 = vmatprep.subr.mxu0 0.0
    %365 = vmatpush1.msra.mxu0 0.0
    %366 = vmatprep.subr.mxu0 0.0
    %367 = vmatpush1.msra.mxu0 0.0
    %368 = vmatprep.subr.mxu0 0.0
    %369 = vmatpush1.msra.mxu0 0.0
    %370 = vmatprep.subr.mxu0 0.0
    %371 = vmatpush1.msra.mxu0 0.0
    %372 = vmatprep.subr.mxu0 0.0
    %373 = vmatpush1.msra.mxu0 0.0
    %374 = vmatprep.subr.mxu0 0.0
    %375 = vmatpush1.msra.mxu0 0.0
    %376 = vmatprep.subr.mxu0 0.0
    %377 = vmatpush1.msra.mxu0 0.0
    %378 = vmatprep.subr.mxu0 0.0
    %379 = vmatpush1.msra.mxu0 0.0
    %380 = vmatprep.subr.mxu0 0.0
    %381 = vmatpush1.msra.mxu0 0.0
    %382 = vmatprep.subr.mxu0 0.0
    %383 = vmatpush1.msra.mxu0 0.0
    %384 = vmatprep.subr.mxu0 0.0
    %385 = vmatpush1.msra.mxu0 0.0
    %386 = vmatprep.subr.mxu0 0.0
    %387 = vmatpush1.msra.mxu0 0.0
    %388 = vmatprep.subr.mxu0 0.0
    %389 = vmatpush1.msra.mxu0 0.0
    %390 = vmatprep.mubr.f32.mxu0 0.0
    %391 = vmatmul.mubr.f32.gmra.mrb[0].mxu0 %v317
    %v392 = vpop.f32.mrb[0].mxu0
    %v393 = vadd.f32 0.0, %v392
    %v394 = vpop.f32.mrb[0].mxu0
    %395 = vmatprep.mubr.f32.mxu0 0.0
    %396 = vmatmul.mubr.f32.gmra.mrb[0].mxu0 %v320
    %v397 = vpop.f32.mrb[0].mxu0
    %v398 = vadd.f32 0.0, %v397
    %v399 = vpop.f32.mrb[0].mxu0
    %400 = vdwg.mxu0
    %v401 = vadd.f32 %v311, %v393
    %v402 = vadd.f32 %v311, %v398
    %v403 = vld [vmem:[#allocation2 + $0x6] sm:$0xff]
    %v404 = vld [vmem:[#allocation2 + $0xe] sm:$0xff]
    %s405 = scalar_lea.vmem [#allocation4], 4
    %v406 = vld [vmem:[%s405] sm:$0xf]
    %v408 = vsel %vm303, %v403, 0
    %v411 = vsel %vm303, %v404, 0
    %v414 = vsel %vm322, %v406, 0
    %416 = vmatprep.subr.mxu0 0.0
    %417 = vmatpush1.msra.mxu0 %v414
    %418 = vmatprep.subr.mxu0 0.0
    %419 = vmatpush1.msra.mxu0 0.0
    %420 = vmatprep.subr.mxu0 0.0
    %421 = vmatpush1.msra.mxu0 0.0
    %422 = vmatprep.subr.mxu0 0.0
    %423 = vmatpush1.msra.mxu0 0.0
    %424 = vmatprep.subr.mxu0 0.0
    %425 = vmatpush1.msra.mxu0 0.0
    %426 = vmatprep.subr.mxu0 0.0
    %427 = vmatpush1.msra.mxu0 0.0
    %428 = vmatprep.subr.mxu0 0.0
    %429 = vmatpush1.msra.mxu0 0.0
    %430 = vmatprep.subr.mxu0 0.0
    %431 = vmatpush1.msra.mxu0 0.0
    %432 = vmatprep.subr.mxu0 0.0
    %433 = vmatpush1.msra.mxu0 0.0
    %434 = vmatprep.subr.mxu0 0.0
    %435 = vmatpush1.msra.mxu0 0.0
    %436 = vmatprep.subr.mxu0 0.0
    %437 = vmatpush1.msra.mxu0 0.0
    %438 = vmatprep.subr.mxu0 0.0
    %439 = vmatpush1.msra.mxu0 0.0
    %440 = vmatprep.subr.mxu0 0.0
    %441 = vmatpush1.msra.mxu0 0.0
    %442 = vmatprep.subr.mxu0 0.0
    %443 = vmatpush1.msra.mxu0 0.0
    %444 = vmatprep.subr.mxu0 0.0
    %445 = vmatpush1.msra.mxu0 0.0
    %446 = vmatprep.subr.mxu0 0.0
    %447 = vmatpush1.msra.mxu0 0.0
    %448 = vmatprep.subr.mxu0 0.0
    %449 = vmatpush1.msra.mxu0 0.0
    %450 = vmatprep.subr.mxu0 0.0
    %451 = vmatpush1.msra.mxu0 0.0
    %452 = vmatprep.subr.mxu0 0.0
    %453 = vmatpush1.msra.mxu0 0.0
    %454 = vmatprep.subr.mxu0 0.0
    %455 = vmatpush1.msra.mxu0 0.0
    %456 = vmatprep.subr.mxu0 0.0
    %457 = vmatpush1.msra.mxu0 0.0
    %458 = vmatprep.subr.mxu0 0.0
    %459 = vmatpush1.msra.mxu0 0.0
    %460 = vmatprep.subr.mxu0 0.0
    %461 = vmatpush1.msra.mxu0 0.0
    %462 = vmatprep.subr.mxu0 0.0
    %463 = vmatpush1.msra.mxu0 0.0
    %464 = vmatprep.subr.mxu0 0.0
    %465 = vmatpush1.msra.mxu0 0.0
    %466 = vmatprep.subr.mxu0 0.0
    %467 = vmatpush1.msra.mxu0 0.0
    %468 = vmatprep.subr.mxu0 0.0
    %469 = vmatpush1.msra.mxu0 0.0
    %470 = vmatprep.subr.mxu0 0.0
    %471 = vmatpush1.msra.mxu0 0.0
    %472 = vmatprep.subr.mxu0 0.0
    %473 = vmatpush1.msra.mxu0 0.0
    %474 = vmatprep.subr.mxu0 0.0
    %475 = vmatpush1.msra.mxu0 0.0
    %476 = vmatprep.subr.mxu0 0.0
    %477 = vmatpush1.msra.mxu0 0.0
    %478 = vmatprep.subr.mxu0 0.0
    %479 = vmatpush1.msra.mxu0 0.0
    %480 = vmatprep.mubr.f32.mxu0 0.0
    %481 = vmatmul.mubr.f32.gmra.mrb[0].mxu0 %v408
    %v482 = vpop.f32.mrb[0].mxu0
    %v483 = vadd.f32 0.0, %v482
    %v484 = vpop.f32.mrb[0].mxu0
    %485 = vmatprep.mubr.f32.mxu0 0.0
    %486 = vmatmul.mubr.f32.gmra.mrb[0].mxu0 %v411
    %v487 = vpop.f32.mrb[0].mxu0
    %v488 = vadd.f32 0.0, %v487
    %v489 = vpop.f32.mrb[0].mxu0
    %490 = vdwg.mxu0
    %v491 = vadd.f32 %v401, %v483
    %v492 = vadd.f32 %v402, %v488
    %v493 = vld [vmem:[#allocation2 + $0x8] sm:$0xff]
    %v494 = vld [vmem:[#allocation2 + $0x10] sm:$0xff]
    %s495 = scalar_lea.vmem [#allocation4], 8
    %v496 = vld [vmem:[%s495] sm:$0xf]
    %v498 = vsel %vm303, %v493, 0
    %v501 = vsel %vm303, %v494, 0
    %v504 = vsel %vm322, %v496, 0
    %506 = vmatprep.subr.mxu0 0.0
    %507 = vmatpush1.msra.mxu0 %v504
    %508 = vmatprep.subr.mxu0 0.0
    %509 = vmatpush1.msra.mxu0 0.0
    %510 = vmatprep.subr.mxu0 0.0
    %511 = vmatpush1.msra.mxu0 0.0
    %512 = vmatprep.subr.mxu0 0.0
    %513 = vmatpush1.msra.mxu0 0.0
    %514 = vmatprep.subr.mxu0 0.0
    %515 = vmatpush1.msra.mxu0 0.0
    %516 = vmatprep.subr.mxu0 0.0
    %517 = vmatpush1.msra.mxu0 0.0
    %518 = vmatprep.subr.mxu0 0.0
    %519 = vmatpush1.msra.mxu0 0.0
    %520 = vmatprep.subr.mxu0 0.0
    %521 = vmatpush1.msra.mxu0 0.0
    %522 = vmatprep.subr.mxu0 0.0
    %523 = vmatpush1.msra.mxu0 0.0
    %524 = vmatprep.subr.mxu0 0.0
    %525 = vmatpush1.msra.mxu0 0.0
    %526 = vmatprep.subr.mxu0 0.0
    %527 = vmatpush1.msra.mxu0 0.0
    %528 = vmatprep.subr.mxu0 0.0
    %529 = vmatpush1.msra.mxu0 0.0
    %530 = vmatprep.subr.mxu0 0.0
    %531 = vmatpush1.msra.mxu0 0.0
    %532 = vmatprep.subr.mxu0 0.0
    %533 = vmatpush1.msra.mxu0 0.0
    %534 = vmatprep.subr.mxu0 0.0
    %535 = vmatpush1.msra.mxu0 0.0
    %536 = vmatprep.subr.mxu0 0.0
    %537 = vmatpush1.msra.mxu0 0.0
    %538 = vmatprep.subr.mxu0 0.0
    %539 = vmatpush1.msra.mxu0 0.0
    %540 = vmatprep.subr.mxu0 0.0
    %541 = vmatpush1.msra.mxu0 0.0
    %542 = vmatprep.subr.mxu0 0.0
    %543 = vmatpush1.msra.mxu0 0.0
    %544 = vmatprep.subr.mxu0 0.0
    %545 = vmatpush1.msra.mxu0 0.0
    %546 = vmatprep.subr.mxu0 0.0
    %547 = vmatpush1.msra.mxu0 0.0
    %548 = vmatprep.subr.mxu0 0.0
    %549 = vmatpush1.msra.mxu0 0.0
    %550 = vmatprep.subr.mxu0 0.0
    %551 = vmatpush1.msra.mxu0 0.0
    %552 = vmatprep.subr.mxu0 0.0
    %553 = vmatpush1.msra.mxu0 0.0
    %554 = vmatprep.subr.mxu0 0.0
    %555 = vmatpush1.msra.mxu0 0.0
    %556 = vmatprep.subr.mxu0 0.0
    %557 = vmatpush1.msra.mxu0 0.0
    %558 = vmatprep.subr.mxu0 0.0
    %559 = vmatpush1.msra.mxu0 0.0
    %560 = vmatprep.subr.mxu0 0.0
    %561 = vmatpush1.msra.mxu0 0.0
    %562 = vmatprep.subr.mxu0 0.0
    %563 = vmatpush1.msra.mxu0 0.0
    %564 = vmatprep.subr.mxu0 0.0
    %565 = vmatpush1.msra.mxu0 0.0
    %566 = vmatprep.subr.mxu0 0.0
    %567 = vmatpush1.msra.mxu0 0.0
    %568 = vmatprep.subr.mxu0 0.0
    %569 = vmatpush1.msra.mxu0 0.0
    %570 = vmatprep.mubr.f32.mxu0 0.0
    %571 = vmatmul.mubr.f32.gmra.mrb[0].mxu0 %v498
    %v572 = vpop.f32.mrb[0].mxu0
    %v573 = vadd.f32 0.0, %v572
    %v574 = vpop.f32.mrb[0].mxu0
    %575 = vmatprep.mubr.f32.mxu0 0.0
    %576 = vmatmul.mubr.f32.gmra.mrb[0].mxu0 %v501
    %v577 = vpop.f32.mrb[0].mxu0
    %v578 = vadd.f32 0.0, %v577
    %v579 = vpop.f32.mrb[0].mxu0
    %580 = vdwg.mxu0
    %v581 = vadd.f32 %v491, %v573
    %v582 = vadd.f32 %v492, %v578
    %v583 = vmax.f32 %v581, 0.0
    %v584 = vmax.f32 %v582, 0.0
    %v585 = vld [vmem:[#allocation12] sm:$0xf]
    %v586 = vld [vmem:[#allocation13] sm:$0x1]
    %v588 = vlaneseq
    %v589 = vshrl.u32 %v588, 7
    %v590 = vsub.s32 0, %v589
    %v591 = vrot.slane %v586, %v590
    %v594 = vsel %vm303, %v301, 0
    %v597 = vsel %vm303, %v302, 0
    %v600 = vsel %vm322, %v585, 0
    %602 = vmatprep.subr.mxu0 0.0
    %603 = vmatpush1.msra.mxu0 %v600
    %604 = vmatprep.subr.mxu0 0.0
    %605 = vmatpush1.msra.mxu0 0.0
    %606 = vmatprep.subr.mxu0 0.0
    %607 = vmatpush1.msra.mxu0 0.0
    %608 = vmatprep.subr.mxu0 0.0
    %609 = vmatpush1.msra.mxu0 0.0
    %610 = vmatprep.subr.mxu0 0.0
    %611 = vmatpush1.msra.mxu0 0.0
    %612 = vmatprep.subr.mxu0 0.0
    %613 = vmatpush1.msra.mxu0 0.0
    %614 = vmatprep.subr.mxu0 0.0
    %615 = vmatpush1.msra.mxu0 0.0
    %616 = vmatprep.subr.mxu0 0.0
    %617 = vmatpush1.msra.mxu0 0.0
    %618 = vmatprep.subr.mxu0 0.0
    %619 = vmatpush1.msra.mxu0 0.0
    %620 = vmatprep.subr.mxu0 0.0
    %621 = vmatpush1.msra.mxu0 0.0
    %622 = vmatprep.subr.mxu0 0.0
    %623 = vmatpush1.msra.mxu0 0.0
    %624 = vmatprep.subr.mxu0 0.0
    %625 = vmatpush1.msra.mxu0 0.0
    %626 = vmatprep.subr.mxu0 0.0
    %627 = vmatpush1.msra.mxu0 0.0
    %628 = vmatprep.subr.mxu0 0.0
    %629 = vmatpush1.msra.mxu0 0.0
    %630 = vmatprep.subr.mxu0 0.0
    %631 = vmatpush1.msra.mxu0 0.0
    %632 = vmatprep.subr.mxu0 0.0
    %633 = vmatpush1.msra.mxu0 0.0
    %634 = vmatprep.subr.mxu0 0.0
    %635 = vmatpush1.msra.mxu0 0.0
    %636 = vmatprep.subr.mxu0 0.0
    %637 = vmatpush1.msra.mxu0 0.0
    %638 = vmatprep.subr.mxu0 0.0
    %639 = vmatpush1.msra.mxu0 0.0
    %640 = vmatprep.subr.mxu0 0.0
    %641 = vmatpush1.msra.mxu0 0.0
    %642 = vmatprep.subr.mxu0 0.0
    %643 = vmatpush1.msra.mxu0 0.0
    %644 = vmatprep.subr.mxu0 0.0
    %645 = vmatpush1.msra.mxu0 0.0
    %646 = vmatprep.subr.mxu0 0.0
    %647 = vmatpush1.msra.mxu0 0.0
    %648 = vmatprep.subr.mxu0 0.0
    %649 = vmatpush1.msra.mxu0 0.0
    %650 = vmatprep.subr.mxu0 0.0
    %651 = vmatpush1.msra.mxu0 0.0
    %652 = vmatprep.subr.mxu0 0.0
    %653 = vmatpush1.msra.mxu0 0.0
    %654 = vmatprep.subr.mxu0 0.0
    %655 = vmatpush1.msra.mxu0 0.0
    %656 = vmatprep.subr.mxu0 0.0
    %657 = vmatpush1.msra.mxu0 0.0
    %658 = vmatprep.subr.mxu0 0.0
    %659 = vmatpush1.msra.mxu0 0.0
    %660 = vmatprep.subr.mxu0 0.0
    %661 = vmatpush1.msra.mxu0 0.0
    %662 = vmatprep.subr.mxu0 0.0
    %663 = vmatpush1.msra.mxu0 0.0
    %664 = vmatprep.subr.mxu0 0.0
    %665 = vmatpush1.msra.mxu0 0.0
    %666 = vmatprep.mubr.f32.mxu0 0.0
    %667 = vmatmul.mubr.f32.gmra.mrb[0].mxu0 %v594
    %v668 = vpop.f32.mrb[0].mxu0
    %v669 = vadd.f32 %v591, %v668
    %v670 = vpop.f32.mrb[0].mxu0
    %671 = vmatprep.mubr.f32.mxu0 0.0
    %672 = vmatmul.mubr.f32.gmra.mrb[0].mxu0 %v597
    %v673 = vpop.f32.mrb[0].mxu0
    %v674 = vadd.f32 %v591, %v673
    %v675 = vpop.f32.mrb[0].mxu0
    %676 = vdwg.mxu0
    %677 = vst.msk [vmem:[#allocation2 + $0x8] sm:$0xff] %vm297, %v583
    %678 = vst.msk [vmem:[#allocation2 + $0x10] sm:$0xff] %vm297, %v584
    %v679 = vld [vmem:[#allocation10] sm:$0x1]
    %v681 = vlaneseq
    %v682 = vshrl.u32 %v681, 7
    %v683 = vsub.s32 0, %v682
    %v684 = vrot.slane %v679, %v683
    %v686 = vld [vmem:[#allocation2 + $0x4] sm:$0xff]
    %v687 = vld [vmem:[#allocation2 + $0xc] sm:$0xff]
    %v688 = vld [vmem:[#allocation9] sm:$0xff]
    %v690 = vsel %vm297, %v686, 0
    %v693 = vsel %vm297, %v687, 0
    %695 = vmatprep.subr.mxu0 0.0
    %696 = vmatpush1.msra.mxu0 %v688
    %697 = vmatprep.subr.mxu0 0.0
    %698 = vmatpush1.msra.mxu0 0.0
    %699 = vmatprep.subr.mxu0 0.0
    %700 = vmatpush1.msra.mxu0 0.0
    %701 = vmatprep.subr.mxu0 0.0
    %702 = vmatpush1.msra.mxu0 0.0
    %703 = vmatprep.subr.mxu0 0.0
    %704 = vmatpush1.msra.mxu0 0.0
    %705 = vmatprep.subr.mxu0 0.0
    %706 = vmatpush1.msra.mxu0 0.0
    %707 = vmatprep.subr.mxu0 0.0
    %708 = vmatpush1.msra.mxu0 0.0
    %709 = vmatprep.subr.mxu0 0.0
    %710 = vmatpush1.msra.mxu0 0.0
    %711 = vmatprep.subr.mxu0 0.0
    %712 = vmatpush1.msra.mxu0 0.0
    %713 = vmatprep.subr.mxu0 0.0
    %714 = vmatpush1.msra.mxu0 0.0
    %715 = vmatprep.subr.mxu0 0.0
    %716 = vmatpush1.msra.mxu0 0.0
    %717 = vmatprep.subr.mxu0 0.0
    %718 = vmatpush1.msra.mxu0 0.0
    %719 = vmatprep.subr.mxu0 0.0
    %720 = vmatpush1.msra.mxu0 0.0
    %721 = vmatprep.subr.mxu0 0.0
    %722 = vmatpush1.msra.mxu0 0.0
    %723 = vmatprep.subr.mxu0 0.0
    %724 = vmatpush1.msra.mxu0 0.0
    %725 = vmatprep.subr.mxu0 0.0
    %726 = vmatpush1.msra.mxu0 0.0
    %727 = vmatprep.subr.mxu0 0.0
    %728 = vmatpush1.msra.mxu0 0.0
    %729 = vmatprep.subr.mxu0 0.0
    %730 = vmatpush1.msra.mxu0 0.0
    %731 = vmatprep.subr.mxu0 0.0
    %732 = vmatpush1.msra.mxu0 0.0
    %733 = vmatprep.subr.mxu0 0.0
    %734 = vmatpush1.msra.mxu0 0.0
    %735 = vmatprep.subr.mxu0 0.0
    %736 = vmatpush1.msra.mxu0 0.0
    %737 = vmatprep.subr.mxu0 0.0
    %738 = vmatpush1.msra.mxu0 0.0
    %739 = vmatprep.subr.mxu0 0.0
    %740 = vmatpush1.msra.mxu0 0.0
    %741 = vmatprep.subr.mxu0 0.0
    %742 = vmatpush1.msra.mxu0 0.0
    %743 = vmatprep.subr.mxu0 0.0
    %744 = vmatpush1.msra.mxu0 0.0
    %745 = vmatprep.subr.mxu0 0.0
    %746 = vmatpush1.msra.mxu0 0.0
    %747 = vmatprep.subr.mxu0 0.0
    %748 = vmatpush1.msra.mxu0 0.0
    %749 = vmatprep.subr.mxu0 0.0
    %750 = vmatpush1.msra.mxu0 0.0
    %751 = vmatprep.subr.mxu0 0.0
    %752 = vmatpush1.msra.mxu0 0.0
    %753 = vmatprep.subr.mxu0 0.0
    %754 = vmatpush1.msra.mxu0 0.0
    %755 = vmatprep.subr.mxu0 0.0
    %756 = vmatpush1.msra.mxu0 0.0
    %757 = vmatprep.subr.mxu0 0.0
    %758 = vmatpush1.msra.mxu0 0.0
    %759 = vmatprep.mubr.f32.mxu0 0.0
    %760 = vmatmul.mubr.f32.gmra.mrb[0].mxu0 %v690
    %v761 = vpop.f32.mrb[0].mxu0
    %v762 = vadd.f32 0.0, %v761
    %v763 = vpop.f32.mrb[0].mxu0
    %764 = vmatprep.mubr.f32.mxu0 0.0
    %765 = vmatmul.mubr.f32.gmra.mrb[0].mxu0 %v693
    %v766 = vpop.f32.mrb[0].mxu0
    %v767 = vadd.f32 0.0, %v766
    %v768 = vpop.f32.mrb[0].mxu0
    %769 = vdwg.mxu0
    %v770 = vadd.f32 %v684, %v762
    %v771 = vadd.f32 %v684, %v767
    %v772 = vld [vmem:[#allocation2 + $0x6] sm:$0xff]
    %v773 = vld [vmem:[#allocation2 + $0xe] sm:$0xff]
    %s774 = scalar_lea.vmem [#allocation9], 8
    %v775 = vld [vmem:[%s774] sm:$0xff]
    %v777 = vsel %vm297, %v772, 0
    %v780 = vsel %vm297, %v773, 0
    %782 = vmatprep.subr.mxu0 0.0
    %783 = vmatpush1.msra.mxu0 %v775
    %784 = vmatprep.subr.mxu0 0.0
    %785 = vmatpush1.msra.mxu0 0.0
    %786 = vmatprep.subr.mxu0 0.0
    %787 = vmatpush1.msra.mxu0 0.0
    %788 = vmatprep.subr.mxu0 0.0
    %789 = vmatpush1.msra.mxu0 0.0
    %790 = vmatprep.subr.mxu0 0.0
    %791 = vmatpush1.msra.mxu0 0.0
    %792 = vmatprep.subr.mxu0 0.0
    %793 = vmatpush1.msra.mxu0 0.0
    %794 = vmatprep.subr.mxu0 0.0
    %795 = vmatpush1.msra.mxu0 0.0
    %796 = vmatprep.subr.mxu0 0.0
    %797 = vmatpush1.msra.mxu0 0.0
    %798 = vmatprep.subr.mxu0 0.0
    %799 = vmatpush1.msra.mxu0 0.0
    %800 = vmatprep.subr.mxu0 0.0
    %801 = vmatpush1.msra.mxu0 0.0
    %802 = vmatprep.subr.mxu0 0.0
    %803 = vmatpush1.msra.mxu0 0.0
    %804 = vmatprep.subr.mxu0 0.0
    %805 = vmatpush1.msra.mxu0 0.0
    %806 = vmatprep.subr.mxu0 0.0
    %807 = vmatpush1.msra.mxu0 0.0
    %808 = vmatprep.subr.mxu0 0.0
    %809 = vmatpush1.msra.mxu0 0.0
    %810 = vmatprep.subr.mxu0 0.0
    %811 = vmatpush1.msra.mxu0 0.0
    %812 = vmatprep.subr.mxu0 0.0
    %813 = vmatpush1.msra.mxu0 0.0
    %814 = vmatprep.subr.mxu0 0.0
    %815 = vmatpush1.msra.mxu0 0.0
    %816 = vmatprep.subr.mxu0 0.0
    %817 = vmatpush1.msra.mxu0 0.0
    %818 = vmatprep.subr.mxu0 0.0
    %819 = vmatpush1.msra.mxu0 0.0
    %820 = vmatprep.subr.mxu0 0.0
    %821 = vmatpush1.msra.mxu0 0.0
    %822 = vmatprep.subr.mxu0 0.0
    %823 = vmatpush1.msra.mxu0 0.0
    %824 = vmatprep.subr.mxu0 0.0
    %825 = vmatpush1.msra.mxu0 0.0
    %826 = vmatprep.subr.mxu0 0.0
    %827 = vmatpush1.msra.mxu0 0.0
    %828 = vmatprep.subr.mxu0 0.0
    %829 = vmatpush1.msra.mxu0 0.0
    %830 = vmatprep.subr.mxu0 0.0
    %831 = vmatpush1.msra.mxu0 0.0
    %832 = vmatprep.subr.mxu0 0.0
    %833 = vmatpush1.msra.mxu0 0.0
    %834 = vmatprep.subr.mxu0 0.0
    %835 = vmatpush1.msra.mxu0 0.0
    %836 = vmatprep.subr.mxu0 0.0
    %837 = vmatpush1.msra.mxu0 0.0
    %838 = vmatprep.subr.mxu0 0.0
    %839 = vmatpush1.msra.mxu0 0.0
    %840 = vmatprep.subr.mxu0 0.0
    %841 = vmatpush1.msra.mxu0 0.0
    %842 = vmatprep.subr.mxu0 0.0
    %843 = vmatpush1.msra.mxu0 0.0
    %844 = vmatprep.subr.mxu0 0.0
    %845 = vmatpush1.msra.mxu0 0.0
    %846 = vmatprep.mubr.f32.mxu0 0.0
    %847 = vmatmul.mubr.f32.gmra.mrb[0].mxu0 %v777
    %v848 = vpop.f32.mrb[0].mxu0
    %v849 = vadd.f32 0.0, %v848
    %v850 = vpop.f32.mrb[0].mxu0
    %851 = vmatprep.mubr.f32.mxu0 0.0
    %852 = vmatmul.mubr.f32.gmra.mrb[0].mxu0 %v780
    %v853 = vpop.f32.mrb[0].mxu0
    %v854 = vadd.f32 0.0, %v853
    %v855 = vpop.f32.mrb[0].mxu0
    %856 = vdwg.mxu0
    %v857 = vadd.f32 %v770, %v849
    %v858 = vadd.f32 %v771, %v854
    %v859 = vld [vmem:[#allocation2 + $0x8] sm:$0xff]
    %v860 = vld [vmem:[#allocation2 + $0x10] sm:$0xff]
    %s861 = scalar_lea.vmem [#allocation9], 16
    %v862 = vld [vmem:[%s861] sm:$0xff]
    %v864 = vsel %vm297, %v859, 0
    %v867 = vsel %vm297, %v860, 0
    %869 = vmatprep.subr.mxu0 0.0
    %870 = vmatpush1.msra.mxu0 %v862
    %871 = vmatprep.subr.mxu0 0.0
    %872 = vmatpush1.msra.mxu0 0.0
    %873 = vmatprep.subr.mxu0 0.0
    %874 = vmatpush1.msra.mxu0 0.0
    %875 = vmatprep.subr.mxu0 0.0
    %876 = vmatpush1.msra.mxu0 0.0
    %877 = vmatprep.subr.mxu0 0.0
    %878 = vmatpush1.msra.mxu0 0.0
    %879 = vmatprep.subr.mxu0 0.0
    %880 = vmatpush1.msra.mxu0 0.0
    %881 = vmatprep.subr.mxu0 0.0
    %882 = vmatpush1.msra.mxu0 0.0
    %883 = vmatprep.subr.mxu0 0.0
    %884 = vmatpush1.msra.mxu0 0.0
    %885 = vmatprep.subr.mxu0 0.0
    %886 = vmatpush1.msra.mxu0 0.0
    %887 = vmatprep.subr.mxu0 0.0
    %888 = vmatpush1.msra.mxu0 0.0
    %889 = vmatprep.subr.mxu0 0.0
    %890 = vmatpush1.msra.mxu0 0.0
    %891 = vmatprep.subr.mxu0 0.0
    %892 = vmatpush1.msra.mxu0 0.0
    %893 = vmatprep.subr.mxu0 0.0
    %894 = vmatpush1.msra.mxu0 0.0
    %895 = vmatprep.subr.mxu0 0.0
    %896 = vmatpush1.msra.mxu0 0.0
    %897 = vmatprep.subr.mxu0 0.0
    %898 = vmatpush1.msra.mxu0 0.0
    %899 = vmatprep.subr.mxu0 0.0
    %900 = vmatpush1.msra.mxu0 0.0
    %901 = vmatprep.subr.mxu0 0.0
    %902 = vmatpush1.msra.mxu0 0.0
    %903 = vmatprep.subr.mxu0 0.0
    %904 = vmatpush1.msra.mxu0 0.0
    %905 = vmatprep.subr.mxu0 0.0
    %906 = vmatpush1.msra.mxu0 0.0
    %907 = vmatprep.subr.mxu0 0.0
    %908 = vmatpush1.msra.mxu0 0.0
    %909 = vmatprep.subr.mxu0 0.0
    %910 = vmatpush1.msra.mxu0 0.0
    %911 = vmatprep.subr.mxu0 0.0
    %912 = vmatpush1.msra.mxu0 0.0
    %913 = vmatprep.subr.mxu0 0.0
    %914 = vmatpush1.msra.mxu0 0.0
    %915 = vmatprep.subr.mxu0 0.0
    %916 = vmatpush1.msra.mxu0 0.0
    %917 = vmatprep.subr.mxu0 0.0
    %918 = vmatpush1.msra.mxu0 0.0
    %919 = vmatprep.subr.mxu0 0.0
    %920 = vmatpush1.msra.mxu0 0.0
    %921 = vmatprep.subr.mxu0 0.0
    %922 = vmatpush1.msra.mxu0 0.0
    %923 = vmatprep.subr.mxu0 0.0
    %924 = vmatpush1.msra.mxu0 0.0
    %925 = vmatprep.subr.mxu0 0.0
    %926 = vmatpush1.msra.mxu0 0.0
    %927 = vmatprep.subr.mxu0 0.0
    %928 = vmatpush1.msra.mxu0 0.0
    %929 = vmatprep.subr.mxu0 0.0
    %930 = vmatpush1.msra.mxu0 0.0
    %931 = vmatprep.subr.mxu0 0.0
    %932 = vmatpush1.msra.mxu0 0.0
    %933 = vmatprep.mubr.f32.mxu0 0.0
    %934 = vmatmul.mubr.f32.gmra.mrb[0].mxu0 %v864
    %v935 = vpop.f32.mrb[0].mxu0
    %v936 = vadd.f32 0.0, %v935
    %v937 = vpop.f32.mrb[0].mxu0
    %938 = vmatprep.mubr.f32.mxu0 0.0
    %939 = vmatmul.mubr.f32.gmra.mrb[0].mxu0 %v867
    %v940 = vpop.f32.mrb[0].mxu0
    %v941 = vadd.f32 0.0, %v940
    %v942 = vpop.f32.mrb[0].mxu0
    %943 = vdwg.mxu0
    %v944 = vadd.f32 %v857, %v936
    %v945 = vadd.f32 %v858, %v941
    %v946 = vmax.f32 %v944, 0.0
    %v947 = vmax.f32 %v945, 0.0
    %v948 = vadd.f32 %v946, %v669
    %v949 = vadd.f32 %v947, %v674
    %v950 = vmax.f32 %v948, 0.0
    %v951 = vmax.f32 %v949, 0.0
    %952 = vst.msk [vmem:[#allocation2 + $0x8] sm:$0xff] %vm297, %v950
    %953 = vst.msk [vmem:[#allocation2 + $0x10] sm:$0xff] %vm297, %v951
    %v954 = vld [vmem:[#allocation16] sm:$0x1]
    %v956 = vlaneseq
    %v957 = vshrl.u32 %v956, 7
    %v958 = vsub.s32 0, %v957
    %v959 = vrot.slane %v954, %v958
    %v961 = vld [vmem:[#allocation2] sm:$0xff]
    %v962 = vld [vmem:[#allocation2 + $0x8] sm:$0xff]
    %v963 = vld [vmem:[#allocation15] sm:$0xff]
    %v965 = vsel %vm297, %v961, 0
    %v968 = vsel %vm297, %v962, 0
    %970 = vmatprep.subr.mxu0 0.0
    %971 = vmatpush1.msra.mxu0 %v963
    %972 = vmatprep.subr.mxu0 0.0
    %973 = vmatpush1.msra.mxu0 0.0
    %974 = vmatprep.subr.mxu0 0.0
    %975 = vmatpush1.msra.mxu0 0.0
    %976 = vmatprep.subr.mxu0 0.0
    %977 = vmatpush1.msra.mxu0 0.0
    %978 = vmatprep.subr.mxu0 0.0
    %979 = vmatpush1.msra.mxu0 0.0
    %980 = vmatprep.subr.mxu0 0.0
    %981 = vmatpush1.msra.mxu0 0.0
    %982 = vmatprep.subr.mxu0 0.0
    %983 = vmatpush1.msra.mxu0 0.0
    %984 = vmatprep.subr.mxu0 0.0
    %985 = vmatpush1.msra.mxu0 0.0
    %986 = vmatprep.subr.mxu0 0.0
    %987 = vmatpush1.msra.mxu0 0.0
    %988 = vmatprep.subr.mxu0 0.0
    %989 = vmatpush1.msra.mxu0 0.0
    %990 = vmatprep.subr.mxu0 0.0
    %991 = vmatpush1.msra.mxu0 0.0
    %992 = vmatprep.subr.mxu0 0.0
    %993 = vmatpush1.msra.mxu0 0.0
    %994 = vmatprep.subr.mxu0 0.0
    %995 = vmatpush1.msra.mxu0 0.0
    %996 = vmatprep.subr.mxu0 0.0
    %997 = vmatpush1.msra.mxu0 0.0
    %998 = vmatprep.subr.mxu0 0.0
    %999 = vmatpush1.msra.mxu0 0.0
    %1000 = vmatprep.subr.mxu0 0.0
    %1001 = vmatpush1.msra.mxu0 0.0
    %1002 = vmatprep.subr.mxu0 0.0
    %1003 = vmatpush1.msra.mxu0 0.0
    %1004 = vmatprep.subr.mxu0 0.0
    %1005 = vmatpush1.msra.mxu0 0.0
    %1006 = vmatprep.subr.mxu0 0.0
    %1007 = vmatpush1.msra.mxu0 0.0
    %1008 = vmatprep.subr.mxu0 0.0
    %1009 = vmatpush1.msra.mxu0 0.0
    %1010 = vmatprep.subr.mxu0 0.0
    %1011 = vmatpush1.msra.mxu0 0.0
    %1012 = vmatprep.subr.mxu0 0.0
    %1013 = vmatpush1.msra.mxu0 0.0
    %1014 = vmatprep.subr.mxu0 0.0
    %1015 = vmatpush1.msra.mxu0 0.0
    %1016 = vmatprep.subr.mxu0 0.0
    %1017 = vmatpush1.msra.mxu0 0.0
    %1018 = vmatprep.subr.mxu0 0.0
    %1019 = vmatpush1.msra.mxu0 0.0
    %1020 = vmatprep.subr.mxu0 0.0
    %1021 = vmatpush1.msra.mxu0 0.0
    %1022 = vmatprep.subr.mxu0 0.0
    %1023 = vmatpush1.msra.mxu0 0.0
    %1024 = vmatprep.subr.mxu0 0.0
    %1025 = vmatpush1.msra.mxu0 0.0
    %1026 = vmatprep.subr.mxu0 0.0
    %1027 = vmatpush1.msra.mxu0 0.0
    %1028 = vmatprep.subr.mxu0 0.0
    %1029 = vmatpush1.msra.mxu0 0.0
    %1030 = vmatprep.subr.mxu0 0.0
    %1031 = vmatpush1.msra.mxu0 0.0
    %1032 = vmatprep.subr.mxu0 0.0
    %1033 = vmatpush1.msra.mxu0 0.0
    %1034 = vmatprep.mubr.f32.mxu0 0.0
    %1035 = vmatmul.mubr.f32.gmra.mrb[0].mxu0 %v965
    %v1036 = vpop.f32.mrb[0].mxu0
    %v1037 = vadd.f32 0.0, %v1036
    %v1038 = vpop.f32.mrb[0].mxu0
    %1039 = vmatprep.mubr.f32.mxu0 0.0
    %1040 = vmatmul.mubr.f32.gmra.mrb[0].mxu0 %v968
    %v1041 = vpop.f32.mrb[0].mxu0
    %v1042 = vadd.f32 0.0, %v1041
    %v1043 = vpop.f32.mrb[0].mxu0
    %1044 = vdwg.mxu0
    %v1045 = vadd.f32 %v959, %v1037
    %v1046 = vadd.f32 %v959, %v1042
    %v1047 = vld [vmem:[#allocation2 + $0x4] sm:$0xff]
    %v1048 = vld [vmem:[#allocation2 + $0xc] sm:$0xff]
    %s1049 = scalar_lea.vmem [#allocation15], 8
    %v1050 = vld [vmem:[%s1049] sm:$0xff]
    %v1052 = vsel %vm297, %v1047, 0
    %v1055 = vsel %vm297, %v1048, 0
    %1057 = vmatprep.subr.mxu0 0.0
    %1058 = vmatpush1.msra.mxu0 %v1050
    %1059 = vmatprep.subr.mxu0 0.0
    %1060 = vmatpush1.msra.mxu0 0.0
    %1061 = vmatprep.subr.mxu0 0.0
    %1062 = vmatpush1.msra.mxu0 0.0
    %1063 = vmatprep.subr.mxu0 0.0
    %1064 = vmatpush1.msra.mxu0 0.0
    %1065 = vmatprep.subr.mxu0 0.0
    %1066 = vmatpush1.msra.mxu0 0.0
    %1067 = vmatprep.subr.mxu0 0.0
    %1068 = vmatpush1.msra.mxu0 0.0
    %1069 = vmatprep.subr.mxu0 0.0
    %1070 = vmatpush1.msra.mxu0 0.0
    %1071 = vmatprep.subr.mxu0 0.0
    %1072 = vmatpush1.msra.mxu0 0.0
    %1073 = vmatprep.subr.mxu0 0.0
    %1074 = vmatpush1.msra.mxu0 0.0
    %1075 = vmatprep.subr.mxu0 0.0
    %1076 = vmatpush1.msra.mxu0 0.0
    %1077 = vmatprep.subr.mxu0 0.0
    %1078 = vmatpush1.msra.mxu0 0.0
    %1079 = vmatprep.subr.mxu0 0.0
    %1080 = vmatpush1.msra.mxu0 0.0
    %1081 = vmatprep.subr.mxu0 0.0
    %1082 = vmatpush1.msra.mxu0 0.0
    %1083 = vmatprep.subr.mxu0 0.0
    %1084 = vmatpush1.msra.mxu0 0.0
    %1085 = vmatprep.subr.mxu0 0.0
    %1086 = vmatpush1.msra.mxu0 0.0
    %1087 = vmatprep.subr.mxu0 0.0
    %1088 = vmatpush1.msra.mxu0 0.0
    %1089 = vmatprep.subr.mxu0 0.0
    %1090 = vmatpush1.msra.mxu0 0.0
    %1091 = vmatprep.subr.mxu0 0.0
    %1092 = vmatpush1.msra.mxu0 0.0
    %1093 = vmatprep.subr.mxu0 0.0
    %1094 = vmatpush1.msra.mxu0 0.0
    %1095 = vmatprep.subr.mxu0 0.0
    %1096 = vmatpush1.msra.mxu0 0.0
    %1097 = vmatprep.subr.mxu0 0.0
    %1098 = vmatpush1.msra.mxu0 0.0
    %1099 = vmatprep.subr.mxu0 0.0
    %1100 = vmatpush1.msra.mxu0 0.0
    %1101 = vmatprep.subr.mxu0 0.0
    %1102 = vmatpush1.msra.mxu0 0.0
    %1103 = vmatprep.subr.mxu0 0.0
    %1104 = vmatpush1.msra.mxu0 0.0
    %1105 = vmatprep.subr.mxu0 0.0
    %1106 = vmatpush1.msra.mxu0 0.0
    %1107 = vmatprep.subr.mxu0 0.0
    %1108 = vmatpush1.msra.mxu0 0.0
    %1109 = vmatprep.subr.mxu0 0.0
    %1110 = vmatpush1.msra.mxu0 0.0
    %1111 = vmatprep.subr.mxu0 0.0
    %1112 = vmatpush1.msra.mxu0 0.0
    %1113 = vmatprep.subr.mxu0 0.0
    %1114 = vmatpush1.msra.mxu0 0.0
    %1115 = vmatprep.subr.mxu0 0.0
    %1116 = vmatpush1.msra.mxu0 0.0
    %1117 = vmatprep.subr.mxu0 0.0
    %1118 = vmatpush1.msra.mxu0 0.0
    %1119 = vmatprep.subr.mxu0 0.0
    %1120 = vmatpush1.msra.mxu0 0.0
    %1121 = vmatprep.mubr.f32.mxu0 0.0
    %1122 = vmatmul.mubr.f32.gmra.mrb[0].mxu0 %v1052
    %v1123 = vpop.f32.mrb[0].mxu0
    %v1124 = vadd.f32 0.0, %v1123
    %v1125 = vpop.f32.mrb[0].mxu0
    %1126 = vmatprep.mubr.f32.mxu0 0.0
    %1127 = vmatmul.mubr.f32.gmra.mrb[0].mxu0 %v1055
    %v1128 = vpop.f32.mrb[0].mxu0
    %v1129 = vadd.f32 0.0, %v1128
    %v1130 = vpop.f32.mrb[0].mxu0
    %1131 = vdwg.mxu0
    %v1132 = vadd.f32 %v1045, %v1124
    %v1133 = vadd.f32 %v1046, %v1129
    %v1134 = vld [vmem:[#allocation2 + $0x8] sm:$0xff]
    %v1135 = vld [vmem:[#allocation2 + $0x10] sm:$0xff]
    %s1136 = scalar_lea.vmem [#allocation15], 16
    %v1137 = vld [vmem:[%s1136] sm:$0xff]
    %v1139 = vsel %vm297, %v1134, 0
    %v1142 = vsel %vm297, %v1135, 0
    %1144 = vmatprep.subr.mxu0 0.0
    %1145 = vmatpush1.msra.mxu0 %v1137
    %1146 = vmatprep.subr.mxu0 0.0
    %1147 = vmatpush1.msra.mxu0 0.0
    %1148 = vmatprep.subr.mxu0 0.0
    %1149 = vmatpush1.msra.mxu0 0.0
    %1150 = vmatprep.subr.mxu0 0.0
    %1151 = vmatpush1.msra.mxu0 0.0
    %1152 = vmatprep.subr.mxu0 0.0
    %1153 = vmatpush1.msra.mxu0 0.0
    %1154 = vmatprep.subr.mxu0 0.0
    %1155 = vmatpush1.msra.mxu0 0.0
    %1156 = vmatprep.subr.mxu0 0.0
    %1157 = vmatpush1.msra.mxu0 0.0
    %1158 = vmatprep.subr.mxu0 0.0
    %1159 = vmatpush1.msra.mxu0 0.0
    %1160 = vmatprep.subr.mxu0 0.0
    %1161 = vmatpush1.msra.mxu0 0.0
    %1162 = vmatprep.subr.mxu0 0.0
    %1163 = vmatpush1.msra.mxu0 0.0
    %1164 = vmatprep.subr.mxu0 0.0
    %1165 = vmatpush1.msra.mxu0 0.0
    %1166 = vmatprep.subr.mxu0 0.0
    %1167 = vmatpush1.msra.mxu0 0.0
    %1168 = vmatprep.subr.mxu0 0.0
    %1169 = vmatpush1.msra.mxu0 0.0
    %1170 = vmatprep.subr.mxu0 0.0
    %1171 = vmatpush1.msra.mxu0 0.0
    %1172 = vmatprep.subr.mxu0 0.0
    %1173 = vmatpush1.msra.mxu0 0.0
    %1174 = vmatprep.subr.mxu0 0.0
    %1175 = vmatpush1.msra.mxu0 0.0
    %1176 = vmatprep.subr.mxu0 0.0
    %1177 = vmatpush1.msra.mxu0 0.0
    %1178 = vmatprep.subr.mxu0 0.0
    %1179 = vmatpush1.msra.mxu0 0.0
    %1180 = vmatprep.subr.mxu0 0.0
    %1181 = vmatpush1.msra.mxu0 0.0
    %1182 = vmatprep.subr.mxu0 0.0
    %1183 = vmatpush1.msra.mxu0 0.0
    %1184 = vmatprep.subr.mxu0 0.0
    %1185 = vmatpush1.msra.mxu0 0.0
    %1186 = vmatprep.subr.mxu0 0.0
    %1187 = vmatpush1.msra.mxu0 0.0
    %1188 = vmatprep.subr.mxu0 0.0
    %1189 = vmatpush1.msra.mxu0 0.0
    %1190 = vmatprep.subr.mxu0 0.0
    %1191 = vmatpush1.msra.mxu0 0.0
    %1192 = vmatprep.subr.mxu0 0.0
    %1193 = vmatpush1.msra.mxu0 0.0
    %1194 = vmatprep.subr.mxu0 0.0
    %1195 = vmatpush1.msra.mxu0 0.0
    %1196 = vmatprep.subr.mxu0 0.0
    %1197 = vmatpush1.msra.mxu0 0.0
    %1198 = vmatprep.subr.mxu0 0.0
    %1199 = vmatpush1.msra.mxu0 0.0
    %1200 = vmatprep.subr.mxu0 0.0
    %1201 = vmatpush1.msra.mxu0 0.0
    %1202 = vmatprep.subr.mxu0 0.0
    %1203 = vmatpush1.msra.mxu0 0.0
    %1204 = vmatprep.subr.mxu0 0.0
    %1205 = vmatpush1.msra.mxu0 0.0
    %1206 = vmatprep.subr.mxu0 0.0
    %1207 = vmatpush1.msra.mxu0 0.0
    %1208 = vmatprep.mubr.f32.mxu0 0.0
    %1209 = vmatmul.mubr.f32.gmra.mrb[0].mxu0 %v1139
    %v1210 = vpop.f32.mrb[0].mxu0
    %v1211 = vadd.f32 0.0, %v1210
    %v1212 = vpop.f32.mrb[0].mxu0
    %1213 = vmatprep.mubr.f32.mxu0 0.0
    %1214 = vmatmul.mubr.f32.gmra.mrb[0].mxu0 %v1142
    %v1215 = vpop.f32.mrb[0].mxu0
    %v1216 = vadd.f32 0.0, %v1215
    %v1217 = vpop.f32.mrb[0].mxu0
    %1218 = vdwg.mxu0
    %v1219 = vadd.f32 %v1132, %v1211
    %v1220 = vadd.f32 %v1133, %v1216
    %v1221 = vmax.f32 %v1219, 0.0
    %v1222 = vmax.f32 %v1220, 0.0
    %1223 = vst.msk [vmem:[#allocation2 + $0x8] sm:$0xff] %vm297, %v1221
    %1224 = vst.msk [vmem:[#allocation2 + $0x10] sm:$0xff] %vm297, %v1222
    %v1225 = vld [vmem:[#allocation19] sm:$0x1]
    %v1227 = vlaneseq
    %v1228 = vshrl.u32 %v1227, 7
    %v1229 = vsub.s32 0, %v1228
    %v1230 = vrot.slane %v1225, %v1229
    %v1232 = vld [vmem:[#allocation2] sm:$0xff]
    %v1233 = vld [vmem:[#allocation2 + $0x8] sm:$0xff]
    %v1234 = vld [vmem:[#allocation18] sm:$0xff]
    %v1236 = vsel %vm297, %v1232, 0
    %v1239 = vsel %vm297, %v1233, 0
    %1241 = vmatprep.subr.mxu0 0.0
    %1242 = vmatpush1.msra.mxu0 %v1234
    %1243 = vmatprep.subr.mxu0 0.0
    %1244 = vmatpush1.msra.mxu0 0.0
    %1245 = vmatprep.subr.mxu0 0.0
    %1246 = vmatpush1.msra.mxu0 0.0
    %1247 = vmatprep.subr.mxu0 0.0
    %1248 = vmatpush1.msra.mxu0 0.0
    %1249 = vmatprep.subr.mxu0 0.0
    %1250 = vmatpush1.msra.mxu0 0.0
    %1251 = vmatprep.subr.mxu0 0.0
    %1252 = vmatpush1.msra.mxu0 0.0
    %1253 = vmatprep.subr.mxu0 0.0
    %1254 = vmatpush1.msra.mxu0 0.0
    %1255 = vmatprep.subr.mxu0 0.0
    %1256 = vmatpush1.msra.mxu0 0.0
    %1257 = vmatprep.subr.mxu0 0.0
    %1258 = vmatpush1.msra.mxu0 0.0
    %1259 = vmatprep.subr.mxu0 0.0
    %1260 = vmatpush1.msra.mxu0 0.0
    %1261 = vmatprep.subr.mxu0 0.0
    %1262 = vmatpush1.msra.mxu0 0.0
    %1263 = vmatprep.subr.mxu0 0.0
    %1264 = vmatpush1.msra.mxu0 0.0
    %1265 = vmatprep.subr.mxu0 0.0
    %1266 = vmatpush1.msra.mxu0 0.0
    %1267 = vmatprep.subr.mxu0 0.0
    %1268 = vmatpush1.msra.mxu0 0.0
    %1269 = vmatprep.subr.mxu0 0.0
    %1270 = vmatpush1.msra.mxu0 0.0
    %1271 = vmatprep.subr.mxu0 0.0
    %1272 = vmatpush1.msra.mxu0 0.0
    %1273 = vmatprep.subr.mxu0 0.0
    %1274 = vmatpush1.msra.mxu0 0.0
    %1275 = vmatprep.subr.mxu0 0.0
    %1276 = vmatpush1.msra.mxu0 0.0
    %1277 = vmatprep.subr.mxu0 0.0
    %1278 = vmatpush1.msra.mxu0 0.0
    %1279 = vmatprep.subr.mxu0 0.0
    %1280 = vmatpush1.msra.mxu0 0.0
    %1281 = vmatprep.subr.mxu0 0.0
    %1282 = vmatpush1.msra.mxu0 0.0
    %1283 = vmatprep.subr.mxu0 0.0
    %1284 = vmatpush1.msra.mxu0 0.0
    %1285 = vmatprep.subr.mxu0 0.0
    %1286 = vmatpush1.msra.mxu0 0.0
    %1287 = vmatprep.subr.mxu0 0.0
    %1288 = vmatpush1.msra.mxu0 0.0
    %1289 = vmatprep.subr.mxu0 0.0
    %1290 = vmatpush1.msra.mxu0 0.0
    %1291 = vmatprep.subr.mxu0 0.0
    %1292 = vmatpush1.msra.mxu0 0.0
    %1293 = vmatprep.subr.mxu0 0.0
    %1294 = vmatpush1.msra.mxu0 0.0
    %1295 = vmatprep.subr.mxu0 0.0
    %1296 = vmatpush1.msra.mxu0 0.0
    %1297 = vmatprep.subr.mxu0 0.0
    %1298 = vmatpush1.msra.mxu0 0.0
    %1299 = vmatprep.subr.mxu0 0.0
    %1300 = vmatpush1.msra.mxu0 0.0
    %1301 = vmatprep.subr.mxu0 0.0
    %1302 = vmatpush1.msra.mxu0 0.0
    %1303 = vmatprep.subr.mxu0 0.0
    %1304 = vmatpush1.msra.mxu0 0.0
    %1305 = vmatprep.mubr.f32.mxu0 0.0
    %1306 = vmatmul.mubr.f32.gmra.mrb[0].mxu0 %v1236
    %v1307 = vpop.f32.mrb[0].mxu0
    %v1308 = vadd.f32 0.0, %v1307
    %v1309 = vpop.f32.mrb[0].mxu0
    %1310 = vmatprep.mubr.f32.mxu0 0.0
    %1311 = vmatmul.mubr.f32.gmra.mrb[0].mxu0 %v1239
    %v1312 = vpop.f32.mrb[0].mxu0
    %v1313 = vadd.f32 0.0, %v1312
    %v1314 = vpop.f32.mrb[0].mxu0
    %1315 = vdwg.mxu0
    %v1316 = vadd.f32 %v1230, %v1308
    %v1317 = vadd.f32 %v1230, %v1313
    %v1318 = vld [vmem:[#allocation2 + $0x4] sm:$0xff]
    %v1319 = vld [vmem:[#allocation2 + $0xc] sm:$0xff]
    %s1320 = scalar_lea.vmem [#allocation18], 8
    %v1321 = vld [vmem:[%s1320] sm:$0xff]
    %v1323 = vsel %vm297, %v1318, 0
    %v1326 = vsel %vm297, %v1319, 0
    %1328 = vmatprep.subr.mxu0 0.0
    %1329 = vmatpush1.msra.mxu0 %v1321
    %1330 = vmatprep.subr.mxu0 0.0
    %1331 = vmatpush1.msra.mxu0 0.0
    %1332 = vmatprep.subr.mxu0 0.0
    %1333 = vmatpush1.msra.mxu0 0.0
    %1334 = vmatprep.subr.mxu0 0.0
    %1335 = vmatpush1.msra.mxu0 0.0
    %1336 = vmatprep.subr.mxu0 0.0
    %1337 = vmatpush1.msra.mxu0 0.0
    %1338 = vmatprep.subr.mxu0 0.0
    %1339 = vmatpush1.msra.mxu0 0.0
    %1340 = vmatprep.subr.mxu0 0.0
    %1341 = vmatpush1.msra.mxu0 0.0
    %1342 = vmatprep.subr.mxu0 0.0
    %1343 = vmatpush1.msra.mxu0 0.0
    %1344 = vmatprep.subr.mxu0 0.0
    %1345 = vmatpush1.msra.mxu0 0.0
    %1346 = vmatprep.subr.mxu0 0.0
    %1347 = vmatpush1.msra.mxu0 0.0
    %1348 = vmatprep.subr.mxu0 0.0
    %1349 = vmatpush1.msra.mxu0 0.0
    %1350 = vmatprep.subr.mxu0 0.0
    %1351 = vmatpush1.msra.mxu0 0.0
    %1352 = vmatprep.subr.mxu0 0.0
    %1353 = vmatpush1.msra.mxu0 0.0
    %1354 = vmatprep.subr.mxu0 0.0
    %1355 = vmatpush1.msra.mxu0 0.0
    %1356 = vmatprep.subr.mxu0 0.0
    %1357 = vmatpush1.msra.mxu0 0.0
    %1358 = vmatprep.subr.mxu0 0.0
    %1359 = vmatpush1.msra.mxu0 0.0
    %1360 = vmatprep.subr.mxu0 0.0
    %1361 = vmatpush1.msra.mxu0 0.0
    %1362 = vmatprep.subr.mxu0 0.0
    %1363 = vmatpush1.msra.mxu0 0.0
    %1364 = vmatprep.subr.mxu0 0.0
    %1365 = vmatpush1.msra.mxu0 0.0
    %1366 = vmatprep.subr.mxu0 0.0
    %1367 = vmatpush1.msra.mxu0 0.0
    %1368 = vmatprep.subr.mxu0 0.0
    %1369 = vmatpush1.msra.mxu0 0.0
    %1370 = vmatprep.subr.mxu0 0.0
    %1371 = vmatpush1.msra.mxu0 0.0
    %1372 = vmatprep.subr.mxu0 0.0
    %1373 = vmatpush1.msra.mxu0 0.0
    %1374 = vmatprep.subr.mxu0 0.0
    %1375 = vmatpush1.msra.mxu0 0.0
    %1376 = vmatprep.subr.mxu0 0.0
    %1377 = vmatpush1.msra.mxu0 0.0
    %1378 = vmatprep.subr.mxu0 0.0
    %1379 = vmatpush1.msra.mxu0 0.0
    %1380 = vmatprep.subr.mxu0 0.0
    %1381 = vmatpush1.msra.mxu0 0.0
    %1382 = vmatprep.subr.mxu0 0.0
    %1383 = vmatpush1.msra.mxu0 0.0
    %1384 = vmatprep.subr.mxu0 0.0
    %1385 = vmatpush1.msra.mxu0 0.0
    %1386 = vmatprep.subr.mxu0 0.0
    %1387 = vmatpush1.msra.mxu0 0.0
    %1388 = vmatprep.subr.mxu0 0.0
    %1389 = vmatpush1.msra.mxu0 0.0
    %1390 = vmatprep.subr.mxu0 0.0
    %1391 = vmatpush1.msra.mxu0 0.0
    %1392 = vmatprep.mubr.f32.mxu0 0.0
    %1393 = vmatmul.mubr.f32.gmra.mrb[0].mxu0 %v1323
    %v1394 = vpop.f32.mrb[0].mxu0
    %v1395 = vadd.f32 0.0, %v1394
    %v1396 = vpop.f32.mrb[0].mxu0
    %1397 = vmatprep.mubr.f32.mxu0 0.0
    %1398 = vmatmul.mubr.f32.gmra.mrb[0].mxu0 %v1326
    %v1399 = vpop.f32.mrb[0].mxu0
    %v1400 = vadd.f32 0.0, %v1399
    %v1401 = vpop.f32.mrb[0].mxu0
    %1402 = vdwg.mxu0
    %v1403 = vadd.f32 %v1316, %v1395
    %v1404 = vadd.f32 %v1317, %v1400
    %v1405 = vld [vmem:[#allocation2 + $0x8] sm:$0xff]
    %v1406 = vld [vmem:[#allocation2 + $0x10] sm:$0xff]
    %s1407 = scalar_lea.vmem [#allocation18], 16
    %v1408 = vld [vmem:[%s1407] sm:$0xff]
    %v1410 = vsel %vm297, %v1405, 0
    %v1413 = vsel %vm297, %v1406, 0
    %1415 = vmatprep.subr.mxu0 0.0
    %1416 = vmatpush1.msra.mxu0 %v1408
    %1417 = vmatprep.subr.mxu0 0.0
    %1418 = vmatpush1.msra.mxu0 0.0
    %1419 = vmatprep.subr.mxu0 0.0
    %1420 = vmatpush1.msra.mxu0 0.0
    %1421 = vmatprep.subr.mxu0 0.0
    %1422 = vmatpush1.msra.mxu0 0.0
    %1423 = vmatprep.subr.mxu0 0.0
    %1424 = vmatpush1.msra.mxu0 0.0
    %1425 = vmatprep.subr.mxu0 0.0
    %1426 = vmatpush1.msra.mxu0 0.0
    %1427 = vmatprep.subr.mxu0 0.0
    %1428 = vmatpush1.msra.mxu0 0.0
    %1429 = vmatprep.subr.mxu0 0.0
    %1430 = vmatpush1.msra.mxu0 0.0
    %1431 = vmatprep.subr.mxu0 0.0
    %1432 = vmatpush1.msra.mxu0 0.0
    %1433 = vmatprep.subr.mxu0 0.0
    %1434 = vmatpush1.msra.mxu0 0.0
    %1435 = vmatprep.subr.mxu0 0.0
    %1436 = vmatpush1.msra.mxu0 0.0
    %1437 = vmatprep.subr.mxu0 0.0
    %1438 = vmatpush1.msra.mxu0 0.0
    %1439 = vmatprep.subr.mxu0 0.0
    %1440 = vmatpush1.msra.mxu0 0.0
    %1441 = vmatprep.subr.mxu0 0.0
    %1442 = vmatpush1.msra.mxu0 0.0
    %1443 = vmatprep.subr.mxu0 0.0
    %1444 = vmatpush1.msra.mxu0 0.0
    %1445 = vmatprep.subr.mxu0 0.0
    %1446 = vmatpush1.msra.mxu0 0.0
    %1447 = vmatprep.subr.mxu0 0.0
    %1448 = vmatpush1.msra.mxu0 0.0
    %1449 = vmatprep.subr.mxu0 0.0
    %1450 = vmatpush1.msra.mxu0 0.0
    %1451 = vmatprep.subr.mxu0 0.0
    %1452 = vmatpush1.msra.mxu0 0.0
    %1453 = vmatprep.subr.mxu0 0.0
    %1454 = vmatpush1.msra.mxu0 0.0
    %1455 = vmatprep.subr.mxu0 0.0
    %1456 = vmatpush1.msra.mxu0 0.0
    %1457 = vmatprep.subr.mxu0 0.0
    %1458 = vmatpush1.msra.mxu0 0.0
    %1459 = vmatprep.subr.mxu0 0.0
    %1460 = vmatpush1.msra.mxu0 0.0
    %1461 = vmatprep.subr.mxu0 0.0
    %1462 = vmatpush1.msra.mxu0 0.0
    %1463 = vmatprep.subr.mxu0 0.0
    %1464 = vmatpush1.msra.mxu0 0.0
    %1465 = vmatprep.subr.mxu0 0.0
    %1466 = vmatpush1.msra.mxu0 0.0
    %1467 = vmatprep.subr.mxu0 0.0
    %1468 = vmatpush1.msra.mxu0 0.0
    %1469 = vmatprep.subr.mxu0 0.0
    %1470 = vmatpush1.msra.mxu0 0.0
    %1471 = vmatprep.subr.mxu0 0.0
    %1472 = vmatpush1.msra.mxu0 0.0
    %1473 = vmatprep.subr.mxu0 0.0
    %1474 = vmatpush1.msra.mxu0 0.0
    %1475 = vmatprep.subr.mxu0 0.0
    %1476 = vmatpush1.msra.mxu0 0.0
    %1477 = vmatprep.subr.mxu0 0.0
    %1478 = vmatpush1.msra.mxu0 0.0
    %1479 = vmatprep.mubr.f32.mxu0 0.0
    %1480 = vmatmul.mubr.f32.gmra.mrb[0].mxu0 %v1410
    %v1481 = vpop.f32.mrb[0].mxu0
    %v1482 = vadd.f32 0.0, %v1481
    %v1483 = vpop.f32.mrb[0].mxu0
    %1484 = vmatprep.mubr.f32.mxu0 0.0
    %1485 = vmatmul.mubr.f32.gmra.mrb[0].mxu0 %v1413
    %v1486 = vpop.f32.mrb[0].mxu0
    %v1487 = vadd.f32 0.0, %v1486
    %v1488 = vpop.f32.mrb[0].mxu0
    %1489 = vdwg.mxu0
    %v1490 = vadd.f32 %v1403, %v1482
    %v1491 = vadd.f32 %v1404, %v1487
    %v1492 = vmax.f32 %v1490, 0.0
    %v1493 = vmax.f32 %v1491, 0.0
    %v1494 = vadd.f32 %v1492, %v950
    %v1495 = vadd.f32 %v1493, %v951
    %v1496 = vmax.f32 %v1494, 0.0
    %v1497 = vmax.f32 %v1495, 0.0
    %1498 = vst.msk [vmem:[#allocation3] sm:$0xff] %vm297, %v1496
    %1499 = vst.msk [vmem:[#allocation3 + $0x8] sm:$0xff] %vm297, %v1497
    %s1500 = scalar_lea.vmem %s1, 16
    %v1501 = vld [vmem:[%s1500] sm:$0xff]
    %v1502 = vld [vmem:[%s1500 + $0x8] sm:$0xff]
    %1503 = vst.msk [vmem:[#allocation2 + $0x8] sm:$0xff] %vm303, %v1501
    %1504 = vst.msk [vmem:[#allocation2 + $0x10] sm:$0xff] %vm303, %v1502
    %v1505 = vld [vmem:[#allocation22] sm:$0x1]
    %v1507 = vlaneseq
    %v1508 = vshrl.u32 %v1507, 7
    %v1509 = vsub.s32 0, %v1508
    %v1510 = vrot.slane %v1505, %v1509
    %v1512 = vld [vmem:[#allocation2 + $0x4] sm:$0xff]
    %v1513 = vld [vmem:[#allocation2 + $0xc] sm:$0xff]
    %v1514 = vld [vmem:[#allocation21] sm:$0xf]
    %v1516 = vsel %vm303, %v1512, 0
    %v1519 = vsel %vm303, %v1513, 0
    %v1522 = vsel %vm322, %v1514, 0
    %1524 = vmatprep.subr.mxu0 0.0
    %1525 = vmatpush1.msra.mxu0 %v1522
    %1526 = vmatprep.subr.mxu0 0.0
    %1527 = vmatpush1.msra.mxu0 0.0
    %1528 = vmatprep.subr.mxu0 0.0
    %1529 = vmatpush1.msra.mxu0 0.0
    %1530 = vmatprep.subr.mxu0 0.0
    %1531 = vmatpush1.msra.mxu0 0.0
    %1532 = vmatprep.subr.mxu0 0.0
    %1533 = vmatpush1.msra.mxu0 0.0
    %1534 = vmatprep.subr.mxu0 0.0
    %1535 = vmatpush1.msra.mxu0 0.0
    %1536 = vmatprep.subr.mxu0 0.0
    %1537 = vmatpush1.msra.mxu0 0.0
    %1538 = vmatprep.subr.mxu0 0.0
    %1539 = vmatpush1.msra.mxu0 0.0
    %1540 = vmatprep.subr.mxu0 0.0
    %1541 = vmatpush1.msra.mxu0 0.0
    %1542 = vmatprep.subr.mxu0 0.0
    %1543 = vmatpush1.msra.mxu0 0.0
    %1544 = vmatprep.subr.mxu0 0.0
    %1545 = vmatpush1.msra.mxu0 0.0
    %1546 = vmatprep.subr.mxu0 0.0
    %1547 = vmatpush1.msra.mxu0 0.0
    %1548 = vmatprep.subr.mxu0 0.0
    %1549 = vmatpush1.msra.mxu0 0.0
    %1550 = vmatprep.subr.mxu0 0.0
    %1551 = vmatpush1.msra.mxu0 0.0
    %1552 = vmatprep.subr.mxu0 0.0
    %1553 = vmatpush1.msra.mxu0 0.0
    %1554 = vmatprep.subr.mxu0 0.0
    %1555 = vmatpush1.msra.mxu0 0.0
    %1556 = vmatprep.subr.mxu0 0.0
    %1557 = vmatpush1.msra.mxu0 0.0
    %1558 = vmatprep.subr.mxu0 0.0
    %1559 = vmatpush1.msra.mxu0 0.0
    %1560 = vmatprep.subr.mxu0 0.0
    %1561 = vmatpush1.msra.mxu0 0.0
    %1562 = vmatprep.subr.mxu0 0.0
    %1563 = vmatpush1.msra.mxu0 0.0
    %1564 = vmatprep.subr.mxu0 0.0
    %1565 = vmatpush1.msra.mxu0 0.0
    %1566 = vmatprep.subr.mxu0 0.0
    %1567 = vmatpush1.msra.mxu0 0.0
    %1568 = vmatprep.subr.mxu0 0.0
    %1569 = vmatpush1.msra.mxu0 0.0
    %1570 = vmatprep.subr.mxu0 0.0
    %1571 = vmatpush1.msra.mxu0 0.0
    %1572 = vmatprep.subr.mxu0 0.0
    %1573 = vmatpush1.msra.mxu0 0.0
    %1574 = vmatprep.subr.mxu0 0.0
    %1575 = vmatpush1.msra.mxu0 0.0
    %1576 = vmatprep.subr.mxu0 0.0
    %1577 = vmatpush1.msra.mxu0 0.0
    %1578 = vmatprep.subr.mxu0 0.0
    %1579 = vmatpush1.msra.mxu0 0.0
    %1580 = vmatprep.subr.mxu0 0.0
    %1581 = vmatpush1.msra.mxu0 0.0
    %1582 = vmatprep.subr.mxu0 0.0
    %1583 = vmatpush1.msra.mxu0 0.0
    %1584 = vmatprep.subr.mxu0 0.0
    %1585 = vmatpush1.msra.mxu0 0.0
    %1586 = vmatprep.subr.mxu0 0.0
    %1587 = vmatpush1.msra.mxu0 0.0
    %1588 = vmatprep.mubr.f32.mxu0 0.0
    %1589 = vmatmul.mubr.f32.gmra.mrb[0].mxu0 %v1516
    %v1590 = vpop.f32.mrb[0].mxu0
    %v1591 = vadd.f32 0.0, %v1590
    %v1592 = vpop.f32.mrb[0].mxu0
    %1593 = vmatprep.mubr.f32.mxu0 0.0
    %1594 = vmatmul.mubr.f32.gmra.mrb[0].mxu0 %v1519
    %v1595 = vpop.f32.mrb[0].mxu0
    %v1596 = vadd.f32 0.0, %v1595
    %v1597 = vpop.f32.mrb[0].mxu0
    %1598 = vdwg.mxu0
    %v1599 = vadd.f32 %v1510, %v1591
    %v1600 = vadd.f32 %v1510, %v1596
    %v1601 = vld [vmem:[#allocation2 + $0x6] sm:$0xff]
    %v1602 = vld [vmem:[#allocation2 + $0xe] sm:$0xff]
    %s1603 = scalar_lea.vmem [#allocation21], 4
    %v1604 = vld [vmem:[%s1603] sm:$0xf]
    %v1606 = vsel %vm303, %v1601, 0
    %v1609 = vsel %vm303, %v1602, 0
    %v1612 = vsel %vm322, %v1604, 0
    %1614 = vmatprep.subr.mxu0 0.0
    %1615 = vmatpush1.msra.mxu0 %v1612
    %1616 = vmatprep.subr.mxu0 0.0
    %1617 = vmatpush1.msra.mxu0 0.0
    %1618 = vmatprep.subr.mxu0 0.0
    %1619 = vmatpush1.msra.mxu0 0.0
    %1620 = vmatprep.subr.mxu0 0.0
    %1621 = vmatpush1.msra.mxu0 0.0
    %1622 = vmatprep.subr.mxu0 0.0
    %1623 = vmatpush1.msra.mxu0 0.0
    %1624 = vmatprep.subr.mxu0 0.0
    %1625 = vmatpush1.msra.mxu0 0.0
    %1626 = vmatprep.subr.mxu0 0.0
    %1627 = vmatpush1.msra.mxu0 0.0
    %1628 = vmatprep.subr.mxu0 0.0
    %1629 = vmatpush1.msra.mxu0 0.0
    %1630 = vmatprep.subr.mxu0 0.0
    %1631 = vmatpush1.msra.mxu0 0.0
    %1632 = vmatprep.subr.mxu0 0.0
    %1633 = vmatpush1.msra.mxu0 0.0
    %1634 = vmatprep.subr.mxu0 0.0
    %1635 = vmatpush1.msra.mxu0 0.0
    %1636 = vmatprep.subr.mxu0 0.0
    %1637 = vmatpush1.msra.mxu0 0.0
    %1638 = vmatprep.subr.mxu0 0.0
    %1639 = vmatpush1.msra.mxu0 0.0
    %1640 = vmatprep.subr.mxu0 0.0
    %1641 = vmatpush1.msra.mxu0 0.0
    %1642 = vmatprep.subr.mxu0 0.0
    %1643 = vmatpush1.msra.mxu0 0.0
    %1644 = vmatprep.subr.mxu0 0.0
    %1645 = vmatpush1.msra.mxu0 0.0
    %1646 = vmatprep.subr.mxu0 0.0
    %1647 = vmatpush1.msra.mxu0 0.0
    %1648 = vmatprep.subr.mxu0 0.0
    %1649 = vmatpush1.msra.mxu0 0.0
    %1650 = vmatprep.subr.mxu0 0.0
    %1651 = vmatpush1.msra.mxu0 0.0
    %1652 = vmatprep.subr.mxu0 0.0
    %1653 = vmatpush1.msra.mxu0 0.0
    %1654 = vmatprep.subr.mxu0 0.0
    %1655 = vmatpush1.msra.mxu0 0.0
    %1656 = vmatprep.subr.mxu0 0.0
    %1657 = vmatpush1.msra.mxu0 0.0
    %1658 = vmatprep.subr.mxu0 0.0
    %1659 = vmatpush1.msra.mxu0 0.0
    %1660 = vmatprep.subr.mxu0 0.0
    %1661 = vmatpush1.msra.mxu0 0.0
    %1662 = vmatprep.subr.mxu0 0.0
    %1663 = vmatpush1.msra.mxu0 0.0
    %1664 = vmatprep.subr.mxu0 0.0
    %1665 = vmatpush1.msra.mxu0 0.0
    %1666 = vmatprep.subr.mxu0 0.0
    %1667 = vmatpush1.msra.mxu0 0.0
    %1668 = vmatprep.subr.mxu0 0.0
    %1669 = vmatpush1.msra.mxu0 0.0
    %1670 = vmatprep.subr.mxu0 0.0
    %1671 = vmatpush1.msra.mxu0 0.0
    %1672 = vmatprep.subr.mxu0 0.0
    %1673 = vmatpush1.msra.mxu0 0.0
    %1674 = vmatprep.subr.mxu0 0.0
    %1675 = vmatpush1.msra.mxu0 0.0
    %1676 = vmatprep.subr.mxu0 0.0
    %1677 = vmatpush1.msra.mxu0 0.0
    %1678 = vmatprep.mubr.f32.mxu0 0.0
    %1679 = vmatmul.mubr.f32.gmra.mrb[0].mxu0 %v1606
    %v1680 = vpop.f32.mrb[0].mxu0
    %v1681 = vadd.f32 0.0, %v1680
    %v1682 = vpop.f32.mrb[0].mxu0
    %1683 = vmatprep.mubr.f32.mxu0 0.0
    %1684 = vmatmul.mubr.f32.gmra.mrb[0].mxu0 %v1609
    %v1685 = vpop.f32.mrb[0].mxu0
    %v1686 = vadd.f32 0.0, %v1685
    %v1687 = vpop.f32.mrb[0].mxu0
    %1688 = vdwg.mxu0
    %v1689 = vadd.f32 %v1599, %v1681
    %v1690 = vadd.f32 %v1600, %v1686
    %v1691 = vld [vmem:[#allocation2 + $0x8] sm:$0xff]
    %v1692 = vld [vmem:[#allocation2 + $0x10] sm:$0xff]
    %s1693 = scalar_lea.vmem [#allocation21], 8
    %v1694 = vld [vmem:[%s1693] sm:$0xf]
    %v1696 = vsel %vm303, %v1691, 0
    %v1699 = vsel %vm303, %v1692, 0
    %v1702 = vsel %vm322, %v1694, 0
    %1704 = vmatprep.subr.mxu0 0.0
    %1705 = vmatpush1.msra.mxu0 %v1702
    %1706 = vmatprep.subr.mxu0 0.0
    %1707 = vmatpush1.msra.mxu0 0.0
    %1708 = vmatprep.subr.mxu0 0.0
    %1709 = vmatpush1.msra.mxu0 0.0
    %1710 = vmatprep.subr.mxu0 0.0
    %1711 = vmatpush1.msra.mxu0 0.0
    %1712 = vmatprep.subr.mxu0 0.0
    %1713 = vmatpush1.msra.mxu0 0.0
    %1714 = vmatprep.subr.mxu0 0.0
    %1715 = vmatpush1.msra.mxu0 0.0
    %1716 = vmatprep.subr.mxu0 0.0
    %1717 = vmatpush1.msra.mxu0 0.0
    %1718 = vmatprep.subr.mxu0 0.0
    %1719 = vmatpush1.msra.mxu0 0.0
    %1720 = vmatprep.subr.mxu0 0.0
    %1721 = vmatpush1.msra.mxu0 0.0
    %1722 = vmatprep.subr.mxu0 0.0
    %1723 = vmatpush1.msra.mxu0 0.0
    %1724 = vmatprep.subr.mxu0 0.0
    %1725 = vmatpush1.msra.mxu0 0.0
    %1726 = vmatprep.subr.mxu0 0.0
    %1727 = vmatpush1.msra.mxu0 0.0
    %1728 = vmatprep.subr.mxu0 0.0
    %1729 = vmatpush1.msra.mxu0 0.0
    %1730 = vmatprep.subr.mxu0 0.0
    %1731 = vmatpush1.msra.mxu0 0.0
    %1732 = vmatprep.subr.mxu0 0.0
    %1733 = vmatpush1.msra.mxu0 0.0
    %1734 = vmatprep.subr.mxu0 0.0
    %1735 = vmatpush1.msra.mxu0 0.0
    %1736 = vmatprep.subr.mxu0 0.0
    %1737 = vmatpush1.msra.mxu0 0.0
    %1738 = vmatprep.subr.mxu0 0.0
    %1739 = vmatpush1.msra.mxu0 0.0
    %1740 = vmatprep.subr.mxu0 0.0
    %1741 = vmatpush1.msra.mxu0 0.0
    %1742 = vmatprep.subr.mxu0 0.0
    %1743 = vmatpush1.msra.mxu0 0.0
    %1744 = vmatprep.subr.mxu0 0.0
    %1745 = vmatpush1.msra.mxu0 0.0
    %1746 = vmatprep.subr.mxu0 0.0
    %1747 = vmatpush1.msra.mxu0 0.0
    %1748 = vmatprep.subr.mxu0 0.0
    %1749 = vmatpush1.msra.mxu0 0.0
    %1750 = vmatprep.subr.mxu0 0.0
    %1751 = vmatpush1.msra.mxu0 0.0
    %1752 = vmatprep.subr.mxu0 0.0
    %1753 = vmatpush1.msra.mxu0 0.0
    %1754 = vmatprep.subr.mxu0 0.0
    %1755 = vmatpush1.msra.mxu0 0.0
    %1756 = vmatprep.subr.mxu0 0.0
    %1757 = vmatpush1.msra.mxu0 0.0
    %1758 = vmatprep.subr.mxu0 0.0
    %1759 = vmatpush1.msra.mxu0 0.0
    %1760 = vmatprep.subr.mxu0 0.0
    %1761 = vmatpush1.msra.mxu0 0.0
    %1762 = vmatprep.subr.mxu0 0.0
    %1763 = vmatpush1.msra.mxu0 0.0
    %1764 = vmatprep.subr.mxu0 0.0
    %1765 = vmatpush1.msra.mxu0 0.0
    %1766 = vmatprep.subr.mxu0 0.0
    %1767 = vmatpush1.msra.mxu0 0.0
    %1768 = vmatprep.mubr.f32.mxu0 0.0
    %1769 = vmatmul.mubr.f32.gmra.mrb[0].mxu0 %v1696
    %v1770 = vpop.f32.mrb[0].mxu0
    %v1771 = vadd.f32 0.0, %v1770
    %v1772 = vpop.f32.mrb[0].mxu0
    %1773 = vmatprep.mubr.f32.mxu0 0.0
    %1774 = vmatmul.mubr.f32.gmra.mrb[0].mxu0 %v1699
    %v1775 = vpop.f32.mrb[0].mxu0
    %v1776 = vadd.f32 0.0, %v1775
    %v1777 = vpop.f32.mrb[0].mxu0
    %1778 = vdwg.mxu0
    %v1779 = vadd.f32 %v1689, %v1771
    %v1780 = vadd.f32 %v1690, %v1776
    %v1781 = vmax.f32 %v1779, 0.0
    %v1782 = vmax.f32 %v1780, 0.0
    %v1783 = vld [vmem:[%s31] sm:$0xf]
    %v1784 = vld [vmem:[%s33] sm:$0x1]
    %v1786 = vlaneseq
    %v1787 = vshrl.u32 %v1786, 7
    %v1788 = vsub.s32 0, %v1787
    %v1789 = vrot.slane %v1784, %v1788
    %v1792 = vsel %vm303, %v1501, 0
    %v1795 = vsel %vm303, %v1502, 0
    %v1798 = vsel %vm322, %v1783, 0
    %1800 = vmatprep.subr.mxu0 0.0
    %1801 = vmatpush1.msra.mxu0 %v1798
    %1802 = vmatprep.subr.mxu0 0.0
    %1803 = vmatpush1.msra.mxu0 0.0
    %1804 = vmatprep.subr.mxu0 0.0
    %1805 = vmatpush1.msra.mxu0 0.0
    %1806 = vmatprep.subr.mxu0 0.0
    %1807 = vmatpush1.msra.mxu0 0.0
    %1808 = vmatprep.subr.mxu0 0.0
    %1809 = vmatpush1.msra.mxu0 0.0
    %1810 = vmatprep.subr.mxu0 0.0
    %1811 = vmatpush1.msra.mxu0 0.0
    %1812 = vmatprep.subr.mxu0 0.0
    %1813 = vmatpush1.msra.mxu0 0.0
    %1814 = vmatprep.subr.mxu0 0.0
    %1815 = vmatpush1.msra.mxu0 0.0
    %1816 = vmatprep.subr.mxu0 0.0
    %1817 = vmatpush1.msra.mxu0 0.0
    %1818 = vmatprep.subr.mxu0 0.0
    %1819 = vmatpush1.msra.mxu0 0.0
    %1820 = vmatprep.subr.mxu0 0.0
    %1821 = vmatpush1.msra.mxu0 0.0
    %1822 = vmatprep.subr.mxu0 0.0
    %1823 = vmatpush1.msra.mxu0 0.0
    %1824 = vmatprep.subr.mxu0 0.0
    %1825 = vmatpush1.msra.mxu0 0.0
    %1826 = vmatprep.subr.mxu0 0.0
    %1827 = vmatpush1.msra.mxu0 0.0
    %1828 = vmatprep.subr.mxu0 0.0
    %1829 = vmatpush1.msra.mxu0 0.0
    %1830 = vmatprep.subr.mxu0 0.0
    %1831 = vmatpush1.msra.mxu0 0.0
    %1832 = vmatprep.subr.mxu0 0.0
    %1833 = vmatpush1.msra.mxu0 0.0
    %1834 = vmatprep.subr.mxu0 0.0
    %1835 = vmatpush1.msra.mxu0 0.0
    %1836 = vmatprep.subr.mxu0 0.0
    %1837 = vmatpush1.msra.mxu0 0.0
    %1838 = vmatprep.subr.mxu0 0.0
    %1839 = vmatpush1.msra.mxu0 0.0
    %1840 = vmatprep.subr.mxu0 0.0
    %1841 = vmatpush1.msra.mxu0 0.0
    %1842 = vmatprep.subr.mxu0 0.0
    %1843 = vmatpush1.msra.mxu0 0.0
    %1844 = vmatprep.subr.mxu0 0.0
    %1845 = vmatpush1.msra.mxu0 0.0
    %1846 = vmatprep.subr.mxu0 0.0
    %1847 = vmatpush1.msra.mxu0 0.0
    %1848 = vmatprep.subr.mxu0 0.0
    %1849 = vmatpush1.msra.mxu0 0.0
    %1850 = vmatprep.subr.mxu0 0.0
    %1851 = vmatpush1.msra.mxu0 0.0
    %1852 = vmatprep.subr.mxu0 0.0
    %1853 = vmatpush1.msra.mxu0 0.0
    %1854 = vmatprep.subr.mxu0 0.0
    %1855 = vmatpush1.msra.mxu0 0.0
    %1856 = vmatprep.subr.mxu0 0.0
    %1857 = vmatpush1.msra.mxu0 0.0
    %1858 = vmatprep.subr.mxu0 0.0
    %1859 = vmatpush1.msra.mxu0 0.0
    %1860 = vmatprep.subr.mxu0 0.0
    %1861 = vmatpush1.msra.mxu0 0.0
    %1862 = vmatprep.subr.mxu0 0.0
    %1863 = vmatpush1.msra.mxu0 0.0
    %1864 = vmatprep.mubr.f32.mxu0 0.0
    %1865 = vmatmul.mubr.f32.gmra.mrb[0].mxu0 %v1792
    %v1866 = vpop.f32.mrb[0].mxu0
    %v1867 = vadd.f32 %v1789, %v1866
    %v1868 = vpop.f32.mrb[0].mxu0
    %1869 = vmatprep.mubr.f32.mxu0 0.0
    %1870 = vmatmul.mubr.f32.gmra.mrb[0].mxu0 %v1795
    %v1871 = vpop.f32.mrb[0].mxu0
    %v1872 = vadd.f32 %v1789, %v1871
    %v1873 = vpop.f32.mrb[0].mxu0
    %1874 = vdwg.mxu0
    %1875 = vst.msk [vmem:[#allocation2 + $0x8] sm:$0xff] %vm297, %v1781
    %1876 = vst.msk [vmem:[#allocation2 + $0x10] sm:$0xff] %vm297, %v1782
    %v1877 = vld [vmem:[#allocation24] sm:$0x1]
    %v1879 = vlaneseq
    %v1880 = vshrl.u32 %v1879, 7
    %v1881 = vsub.s32 0, %v1880
    %v1882 = vrot.slane %v1877, %v1881
    %v1884 = vld [vmem:[#allocation2 + $0x4] sm:$0xff]
    %v1885 = vld [vmem:[#allocation2 + $0xc] sm:$0xff]
    %v1886 = vld [vmem:[%s27] sm:$0xff]
    %v1888 = vsel %vm297, %v1884, 0
    %v1891 = vsel %vm297, %v1885, 0
    %1893 = vmatprep.subr.mxu0 0.0
    %1894 = vmatpush1.msra.mxu0 %v1886
    %1895 = vmatprep.subr.mxu0 0.0
    %1896 = vmatpush1.msra.mxu0 0.0
    %1897 = vmatprep.subr.mxu0 0.0
    %1898 = vmatpush1.msra.mxu0 0.0
    %1899 = vmatprep.subr.mxu0 0.0
    %1900 = vmatpush1.msra.mxu0 0.0
    %1901 = vmatprep.subr.mxu0 0.0
    %1902 = vmatpush1.msra.mxu0 0.0
    %1903 = vmatprep.subr.mxu0 0.0
    %1904 = vmatpush1.msra.mxu0 0.0
    %1905 = vmatprep.subr.mxu0 0.0
    %1906 = vmatpush1.msra.mxu0 0.0
    %1907 = vmatprep.subr.mxu0 0.0
    %1908 = vmatpush1.msra.mxu0 0.0
    %1909 = vmatprep.subr.mxu0 0.0
    %1910 = vmatpush1.msra.mxu0 0.0
    %1911 = vmatprep.subr.mxu0 0.0
    %1912 = vmatpush1.msra.mxu0 0.0
    %1913 = vmatprep.subr.mxu0 0.0
    %1914 = vmatpush1.msra.mxu0 0.0
    %1915 = vmatprep.subr.mxu0 0.0
    %1916 = vmatpush1.msra.mxu0 0.0
    %1917 = vmatprep.subr.mxu0 0.0
    %1918 = vmatpush1.msra.mxu0 0.0
    %1919 = vmatprep.subr.mxu0 0.0
    %1920 = vmatpush1.msra.mxu0 0.0
    %1921 = vmatprep.subr.mxu0 0.0
    %1922 = vmatpush1.msra.mxu0 0.0
    %1923 = vmatprep.subr.mxu0 0.0
    %1924 = vmatpush1.msra.mxu0 0.0
    %1925 = vmatprep.subr.mxu0 0.0
    %1926 = vmatpush1.msra.mxu0 0.0
    %1927 = vmatprep.subr.mxu0 0.0
    %1928 = vmatpush1.msra.mxu0 0.0
    %1929 = vmatprep.subr.mxu0 0.0
    %1930 = vmatpush1.msra.mxu0 0.0
    %1931 = vmatprep.subr.mxu0 0.0
    %1932 = vmatpush1.msra.mxu0 0.0
    %1933 = vmatprep.subr.mxu0 0.0
    %1934 = vmatpush1.msra.mxu0 0.0
    %1935 = vmatprep.subr.mxu0 0.0
    %1936 = vmatpush1.msra.mxu0 0.0
    %1937 = vmatprep.subr.mxu0 0.0
    %1938 = vmatpush1.msra.mxu0 0.0
    %1939 = vmatprep.subr.mxu0 0.0
    %1940 = vmatpush1.msra.mxu0 0.0
    %1941 = vmatprep.subr.mxu0 0.0
    %1942 = vmatpush1.msra.mxu0 0.0
    %1943 = vmatprep.subr.mxu0 0.0
    %1944 = vmatpush1.msra.mxu0 0.0
    %1945 = vmatprep.subr.mxu0 0.0
    %1946 = vmatpush1.msra.mxu0 0.0
    %1947 = vmatprep.subr.mxu0 0.0
    %1948 = vmatpush1.msra.mxu0 0.0
    %1949 = vmatprep.subr.mxu0 0.0
    %1950 = vmatpush1.msra.mxu0 0.0
    %1951 = vmatprep.subr.mxu0 0.0
    %1952 = vmatpush1.msra.mxu0 0.0
    %1953 = vmatprep.subr.mxu0 0.0
    %1954 = vmatpush1.msra.mxu0 0.0
    %1955 = vmatprep.subr.mxu0 0.0
    %1956 = vmatpush1.msra.mxu0 0.0
    %1957 = vmatprep.mubr.f32.mxu0 0.0
    %1958 = vmatmul.mubr.f32.gmra.mrb[0].mxu0 %v1888
    %v1959 = vpop.f32.mrb[0].mxu0
    %v1960 = vadd.f32 0.0, %v1959
    %v1961 = vpop.f32.mrb[0].mxu0
    %1962 = vmatprep.mubr.f32.mxu0 0.0
    %1963 = vmatmul.mubr.f32.gmra.mrb[0].mxu0 %v1891
    %v1964 = vpop.f32.mrb[0].mxu0
    %v1965 = vadd.f32 0.0, %v1964
    %v1966 = vpop.f32.mrb[0].mxu0
    %1967 = vdwg.mxu0
    %v1968 = vadd.f32 %v1882, %v1960
    %v1969 = vadd.f32 %v1882, %v1965
    %v1970 = vld [vmem:[#allocation2 + $0x6] sm:$0xff]
    %v1971 = vld [vmem:[#allocation2 + $0xe] sm:$0xff]
    %s1972 = scalar_lea.vmem %s27, 8
    %v1973 = vld [vmem:[%s1972] sm:$0xff]
    %v1975 = vsel %vm297, %v1970, 0
    %v1978 = vsel %vm297, %v1971, 0
    %1980 = vmatprep.subr.mxu0 0.0
    %1981 = vmatpush1.msra.mxu0 %v1973
    %1982 = vmatprep.subr.mxu0 0.0
    %1983 = vmatpush1.msra.mxu0 0.0
    %1984 = vmatprep.subr.mxu0 0.0
    %1985 = vmatpush1.msra.mxu0 0.0
    %1986 = vmatprep.subr.mxu0 0.0
    %1987 = vmatpush1.msra.mxu0 0.0
    %1988 = vmatprep.subr.mxu0 0.0
    %1989 = vmatpush1.msra.mxu0 0.0
    %1990 = vmatprep.subr.mxu0 0.0
    %1991 = vmatpush1.msra.mxu0 0.0
    %1992 = vmatprep.subr.mxu0 0.0
    %1993 = vmatpush1.msra.mxu0 0.0
    %1994 = vmatprep.subr.mxu0 0.0
    %1995 = vmatpush1.msra.mxu0 0.0
    %1996 = vmatprep.subr.mxu0 0.0
    %1997 = vmatpush1.msra.mxu0 0.0
    %1998 = vmatprep.subr.mxu0 0.0
    %1999 = vmatpush1.msra.mxu0 0.0
    %2000 = vmatprep.subr.mxu0 0.0
    %2001 = vmatpush1.msra.mxu0 0.0
    %2002 = vmatprep.subr.mxu0 0.0
    %2003 = vmatpush1.msra.mxu0 0.0
    %2004 = vmatprep.subr.mxu0 0.0
    %2005 = vmatpush1.msra.mxu0 0.0
    %2006 = vmatprep.subr.mxu0 0.0
    %2007 = vmatpush1.msra.mxu0 0.0
    %2008 = vmatprep.subr.mxu0 0.0
    %2009 = vmatpush1.msra.mxu0 0.0
    %2010 = vmatprep.subr.mxu0 0.0
    %2011 = vmatpush1.msra.mxu0 0.0
    %2012 = vmatprep.subr.mxu0 0.0
    %2013 = vmatpush1.msra.mxu0 0.0
    %2014 = vmatprep.subr.mxu0 0.0
    %2015 = vmatpush1.msra.mxu0 0.0
    %2016 = vmatprep.subr.mxu0 0.0
    %2017 = vmatpush1.msra.mxu0 0.0
    %2018 = vmatprep.subr.mxu0 0.0
    %2019 = vmatpush1.msra.mxu0 0.0
    %2020 = vmatprep.subr.mxu0 0.0
    %2021 = vmatpush1.msra.mxu0 0.0
    %2022 = vmatprep.subr.mxu0 0.0
    %2023 = vmatpush1.msra.mxu0 0.0
    %2024 = vmatprep.subr.mxu0 0.0
    %2025 = vmatpush1.msra.mxu0 0.0
    %2026 = vmatprep.subr.mxu0 0.0
    %2027 = vmatpush1.msra.mxu0 0.0
    %2028 = vmatprep.subr.mxu0 0.0
    %2029 = vmatpush1.msra.mxu0 0.0
    %2030 = vmatprep.subr.mxu0 0.0
    %2031 = vmatpush1.msra.mxu0 0.0
    %2032 = vmatprep.subr.mxu0 0.0
    %2033 = vmatpush1.msra.mxu0 0.0
    %2034 = vmatprep.subr.mxu0 0.0
    %2035 = vmatpush1.msra.mxu0 0.0
    %2036 = vmatprep.subr.mxu0 0.0
    %2037 = vmatpush1.msra.mxu0 0.0
    %2038 = vmatprep.subr.mxu0 0.0
    %2039 = vmatpush1.msra.mxu0 0.0
    %2040 = vmatprep.subr.mxu0 0.0
    %2041 = vmatpush1.msra.mxu0 0.0
    %2042 = vmatprep.subr.mxu0 0.0
    %2043 = vmatpush1.msra.mxu0 0.0
    %2044 = vmatprep.mubr.f32.mxu0 0.0
    %2045 = vmatmul.mubr.f32.gmra.mrb[0].mxu0 %v1975
    %v2046 = vpop.f32.mrb[0].mxu0
    %v2047 = vadd.f32 0.0, %v2046
    %v2048 = vpop.f32.mrb[0].mxu0
    %2049 = vmatprep.mubr.f32.mxu0 0.0
    %2050 = vmatmul.mubr.f32.gmra.mrb[0].mxu0 %v1978
    %v2051 = vpop.f32.mrb[0].mxu0
    %v2052 = vadd.f32 0.0, %v2051
    %v2053 = vpop.f32.mrb[0].mxu0
    %2054 = vdwg.mxu0
    %v2055 = vadd.f32 %v1968, %v2047
    %v2056 = vadd.f32 %v1969, %v2052
    %v2057 = vld [vmem:[#allocation2 + $0x8] sm:$0xff]
    %v2058 = vld [vmem:[#allocation2 + $0x10] sm:$0xff]
    %s2059 = scalar_lea.vmem %s27, 16
    %v2060 = vld [vmem:[%s2059] sm:$0xff]
    %v2062 = vsel %vm297, %v2057, 0
    %v2065 = vsel %vm297, %v2058, 0
    %2067 = vmatprep.subr.mxu0 0.0
    %2068 = vmatpush1.msra.mxu0 %v2060
    %2069 = vmatprep.subr.mxu0 0.0
    %2070 = vmatpush1.msra.mxu0 0.0
    %2071 = vmatprep.subr.mxu0 0.0
    %2072 = vmatpush1.msra.mxu0 0.0
    %2073 = vmatprep.subr.mxu0 0.0
    %2074 = vmatpush1.msra.mxu0 0.0
    %2075 = vmatprep.subr.mxu0 0.0
    %2076 = vmatpush1.msra.mxu0 0.0
    %2077 = vmatprep.subr.mxu0 0.0
    %2078 = vmatpush1.msra.mxu0 0.0
    %2079 = vmatprep.subr.mxu0 0.0
    %2080 = vmatpush1.msra.mxu0 0.0
    %2081 = vmatprep.subr.mxu0 0.0
    %2082 = vmatpush1.msra.mxu0 0.0
    %2083 = vmatprep.subr.mxu0 0.0
    %2084 = vmatpush1.msra.mxu0 0.0
    %2085 = vmatprep.subr.mxu0 0.0
    %2086 = vmatpush1.msra.mxu0 0.0
    %2087 = vmatprep.subr.mxu0 0.0
    %2088 = vmatpush1.msra.mxu0 0.0
    %2089 = vmatprep.subr.mxu0 0.0
    %2090 = vmatpush1.msra.mxu0 0.0
    %2091 = vmatprep.subr.mxu0 0.0
    %2092 = vmatpush1.msra.mxu0 0.0
    %2093 = vmatprep.subr.mxu0 0.0
    %2094 = vmatpush1.msra.mxu0 0.0
    %2095 = vmatprep.subr.mxu0 0.0
    %2096 = vmatpush1.msra.mxu0 0.0
    %2097 = vmatprep.subr.mxu0 0.0
    %2098 = vmatpush1.msra.mxu0 0.0
    %2099 = vmatprep.subr.mxu0 0.0
    %2100 = vmatpush1.msra.mxu0 0.0
    %2101 = vmatprep.subr.mxu0 0.0
    %2102 = vmatpush1.msra.mxu0 0.0
    %2103 = vmatprep.subr.mxu0 0.0
    %2104 = vmatpush1.msra.mxu0 0.0
    %2105 = vmatprep.subr.mxu0 0.0
    %2106 = vmatpush1.msra.mxu0 0.0
    %2107 = vmatprep.subr.mxu0 0.0
    %2108 = vmatpush1.msra.mxu0 0.0
    %2109 = vmatprep.subr.mxu0 0.0
    %2110 = vmatpush1.msra.mxu0 0.0
    %2111 = vmatprep.subr.mxu0 0.0
    %2112 = vmatpush1.msra.mxu0 0.0
    %2113 = vmatprep.subr.mxu0 0.0
    %2114 = vmatpush1.msra.mxu0 0.0
    %2115 = vmatprep.subr.mxu0 0.0
    %2116 = vmatpush1.msra.mxu0 0.0
    %2117 = vmatprep.subr.mxu0 0.0
    %2118 = vmatpush1.msra.mxu0 0.0
    %2119 = vmatprep.subr.mxu0 0.0
    %2120 = vmatpush1.msra.mxu0 0.0
    %2121 = vmatprep.subr.mxu0 0.0
    %2122 = vmatpush1.msra.mxu0 0.0
    %2123 = vmatprep.subr.mxu0 0.0
    %2124 = vmatpush1.msra.mxu0 0.0
    %2125 = vmatprep.subr.mxu0 0.0
    %2126 = vmatpush1.msra.mxu0 0.0
    %2127 = vmatprep.subr.mxu0 0.0
    %2128 = vmatpush1.msra.mxu0 0.0
    %2129 = vmatprep.subr.mxu0 0.0
    %2130 = vmatpush1.msra.mxu0 0.0
    %2131 = vmatprep.mubr.f32.mxu0 0.0
    %2132 = vmatmul.mubr.f32.gmra.mrb[0].mxu0 %v2062
    %v2133 = vpop.f32.mrb[0].mxu0
    %v2134 = vadd.f32 0.0, %v2133
    %v2135 = vpop.f32.mrb[0].mxu0
    %2136 = vmatprep.mubr.f32.mxu0 0.0
    %2137 = vmatmul.mubr.f32.gmra.mrb[0].mxu0 %v2065
    %v2138 = vpop.f32.mrb[0].mxu0
    %v2139 = vadd.f32 0.0, %v2138
    %v2140 = vpop.f32.mrb[0].mxu0
    %2141 = vdwg.mxu0
    %v2142 = vadd.f32 %v2055, %v2134
    %v2143 = vadd.f32 %v2056, %v2139
    %v2144 = vmax.f32 %v2142, 0.0
    %v2145 = vmax.f32 %v2143, 0.0
    %v2146 = vadd.f32 %v2144, %v1867
    %v2147 = vadd.f32 %v2145, %v1872
    %v2148 = vmax.f32 %v2146, 0.0
    %v2149 = vmax.f32 %v2147, 0.0
    %2150 = vst.msk [vmem:[#allocation2 + $0x8] sm:$0xff] %vm297, %v2148
    %2151 = vst.msk [vmem:[#allocation2 + $0x10] sm:$0xff] %vm297, %v2149
    %v2152 = vld [vmem:[%s37] sm:$0x1]
    %v2154 = vlaneseq
    %v2155 = vshrl.u32 %v2154, 7
    %v2156 = vsub.s32 0, %v2155
    %v2157 = vrot.slane %v2152, %v2156
    %v2159 = vld [vmem:[#allocation2] sm:$0xff]
    %v2160 = vld [vmem:[#allocation2 + $0x8] sm:$0xff]
    %v2161 = vld [vmem:[%s35] sm:$0xff]
    %v2163 = vsel %vm297, %v2159, 0
    %v2166 = vsel %vm297, %v2160, 0
    %2168 = vmatprep.subr.mxu0 0.0
    %2169 = vmatpush1.msra.mxu0 %v2161
    %2170 = vmatprep.subr.mxu0 0.0
    %2171 = vmatpush1.msra.mxu0 0.0
    %2172 = vmatprep.subr.mxu0 0.0
    %2173 = vmatpush1.msra.mxu0 0.0
    %2174 = vmatprep.subr.mxu0 0.0
    %2175 = vmatpush1.msra.mxu0 0.0
    %2176 = vmatprep.subr.mxu0 0.0
    %2177 = vmatpush1.msra.mxu0 0.0
    %2178 = vmatprep.subr.mxu0 0.0
    %2179 = vmatpush1.msra.mxu0 0.0
    %2180 = vmatprep.subr.mxu0 0.0
    %2181 = vmatpush1.msra.mxu0 0.0
    %2182 = vmatprep.subr.mxu0 0.0
    %2183 = vmatpush1.msra.mxu0 0.0
    %2184 = vmatprep.subr.mxu0 0.0
    %2185 = vmatpush1.msra.mxu0 0.0
    %2186 = vmatprep.subr.mxu0 0.0
    %2187 = vmatpush1.msra.mxu0 0.0
    %2188 = vmatprep.subr.mxu0 0.0
    %2189 = vmatpush1.msra.mxu0 0.0
    %2190 = vmatprep.subr.mxu0 0.0
    %2191 = vmatpush1.msra.mxu0 0.0
    %2192 = vmatprep.subr.mxu0 0.0
    %2193 = vmatpush1.msra.mxu0 0.0
    %2194 = vmatprep.subr.mxu0 0.0
    %2195 = vmatpush1.msra.mxu0 0.0
    %2196 = vmatprep.subr.mxu0 0.0
    %2197 = vmatpush1.msra.mxu0 0.0
    %2198 = vmatprep.subr.mxu0 0.0
    %2199 = vmatpush1.msra.mxu0 0.0
    %2200 = vmatprep.subr.mxu0 0.0
    %2201 = vmatpush1.msra.mxu0 0.0
    %2202 = vmatprep.subr.mxu0 0.0
    %2203 = vmatpush1.msra.mxu0 0.0
    %2204 = vmatprep.subr.mxu0 0.0
    %2205 = vmatpush1.msra.mxu0 0.0
    %2206 = vmatprep.subr.mxu0 0.0
    %2207 = vmatpush1.msra.mxu0 0.0
    %2208 = vmatprep.subr.mxu0 0.0
    %2209 = vmatpush1.msra.mxu0 0.0
    %2210 = vmatprep.subr.mxu0 0.0
    %2211 = vmatpush1.msra.mxu0 0.0
    %2212 = vmatprep.subr.mxu0 0.0
    %2213 = vmatpush1.msra.mxu0 0.0
    %2214 = vmatprep.subr.mxu0 0.0
    %2215 = vmatpush1.msra.mxu0 0.0
    %2216 = vmatprep.subr.mxu0 0.0
    %2217 = vmatpush1.msra.mxu0 0.0
    %2218 = vmatprep.subr.mxu0 0.0
    %2219 = vmatpush1.msra.mxu0 0.0
    %2220 = vmatprep.subr.mxu0 0.0
    %2221 = vmatpush1.msra.mxu0 0.0
    %2222 = vmatprep.subr.mxu0 0.0
    %2223 = vmatpush1.msra.mxu0 0.0
    %2224 = vmatprep.subr.mxu0 0.0
    %2225 = vmatpush1.msra.mxu0 0.0
    %2226 = vmatprep.subr.mxu0 0.0
    %2227 = vmatpush1.msra.mxu0 0.0
    %2228 = vmatprep.subr.mxu0 0.0
    %2229 = vmatpush1.msra.mxu0 0.0
    %2230 = vmatprep.subr.mxu0 0.0
    %2231 = vmatpush1.msra.mxu0 0.0
    %2232 = vmatprep.mubr.f32.mxu0 0.0
    %2233 = vmatmul.mubr.f32.gmra.mrb[0].mxu0 %v2163
    %v2234 = vpop.f32.mrb[0].mxu0
    %v2235 = vadd.f32 0.0, %v2234
    %v2236 = vpop.f32.mrb[0].mxu0
    %2237 = vmatprep.mubr.f32.mxu0 0.0
    %2238 = vmatmul.mubr.f32.gmra.mrb[0].mxu0 %v2166
    %v2239 = vpop.f32.mrb[0].mxu0
    %v2240 = vadd.f32 0.0, %v2239
    %v2241 = vpop.f32.mrb[0].mxu0
    %2242 = vdwg.mxu0
    %v2243 = vadd.f32 %v2157, %v2235
    %v2244 = vadd.f32 %v2157, %v2240
    %v2245 = vld [vmem:[#allocation2 + $0x4] sm:$0xff]
    %v2246 = vld [vmem:[#allocation2 + $0xc] sm:$0xff]
    %s2247 = scalar_lea.vmem %s35, 8
    %v2248 = vld [vmem:[%s2247] sm:$0xff]
    %v2250 = vsel %vm297, %v2245, 0
    %v2253 = vsel %vm297, %v2246, 0
    %2255 = vmatprep.subr.mxu0 0.0
    %2256 = vmatpush1.msra.mxu0 %v2248
    %2257 = vmatprep.subr.mxu0 0.0
    %2258 = vmatpush1.msra.mxu0 0.0
    %2259 = vmatprep.subr.mxu0 0.0
    %2260 = vmatpush1.msra.mxu0 0.0
    %2261 = vmatprep.subr.mxu0 0.0
    %2262 = vmatpush1.msra.mxu0 0.0
    %2263 = vmatprep.subr.mxu0 0.0
    %2264 = vmatpush1.msra.mxu0 0.0
    %2265 = vmatprep.subr.mxu0 0.0
    %2266 = vmatpush1.msra.mxu0 0.0
    %2267 = vmatprep.subr.mxu0 0.0
    %2268 = vmatpush1.msra.mxu0 0.0
    %2269 = vmatprep.subr.mxu0 0.0
    %2270 = vmatpush1.msra.mxu0 0.0
    %2271 = vmatprep.subr.mxu0 0.0
    %2272 = vmatpush1.msra.mxu0 0.0
    %2273 = vmatprep.subr.mxu0 0.0
    %2274 = vmatpush1.msra.mxu0 0.0
    %2275 = vmatprep.subr.mxu0 0.0
    %2276 = vmatpush1.msra.mxu0 0.0
    %2277 = vmatprep.subr.mxu0 0.0
    %2278 = vmatpush1.msra.mxu0 0.0
    %2279 = vmatprep.subr.mxu0 0.0
    %2280 = vmatpush1.msra.mxu0 0.0
    %2281 = vmatprep.subr.mxu0 0.0
    %2282 = vmatpush1.msra.mxu0 0.0
    %2283 = vmatprep.subr.mxu0 0.0
    %2284 = vmatpush1.msra.mxu0 0.0
    %2285 = vmatprep.subr.mxu0 0.0
    %2286 = vmatpush1.msra.mxu0 0.0
    %2287 = vmatprep.subr.mxu0 0.0
    %2288 = vmatpush1.msra.mxu0 0.0
    %2289 = vmatprep.subr.mxu0 0.0
    %2290 = vmatpush1.msra.mxu0 0.0
    %2291 = vmatprep.subr.mxu0 0.0
    %2292 = vmatpush1.msra.mxu0 0.0
    %2293 = vmatprep.subr.mxu0 0.0
    %2294 = vmatpush1.msra.mxu0 0.0
    %2295 = vmatprep.subr.mxu0 0.0
    %2296 = vmatpush1.msra.mxu0 0.0
    %2297 = vmatprep.subr.mxu0 0.0
    %2298 = vmatpush1.msra.mxu0 0.0
    %2299 = vmatprep.subr.mxu0 0.0
    %2300 = vmatpush1.msra.mxu0 0.0
    %2301 = vmatprep.subr.mxu0 0.0
    %2302 = vmatpush1.msra.mxu0 0.0
    %2303 = vmatprep.subr.mxu0 0.0
    %2304 = vmatpush1.msra.mxu0 0.0
    %2305 = vmatprep.subr.mxu0 0.0
    %2306 = vmatpush1.msra.mxu0 0.0
    %2307 = vmatprep.subr.mxu0 0.0
    %2308 = vmatpush1.msra.mxu0 0.0
    %2309 = vmatprep.subr.mxu0 0.0
    %2310 = vmatpush1.msra.mxu0 0.0
    %2311 = vmatprep.subr.mxu0 0.0
    %2312 = vmatpush1.msra.mxu0 0.0
    %2313 = vmatprep.subr.mxu0 0.0
    %2314 = vmatpush1.msra.mxu0 0.0
    %2315 = vmatprep.subr.mxu0 0.0
    %2316 = vmatpush1.msra.mxu0 0.0
    %2317 = vmatprep.subr.mxu0 0.0
    %2318 = vmatpush1.msra.mxu0 0.0
    %2319 = vmatprep.mubr.f32.mxu0 0.0
    %2320 = vmatmul.mubr.f32.gmra.mrb[0].mxu0 %v2250
    %v2321 = vpop.f32.mrb[0].mxu0
    %v2322 = vadd.f32 0.0, %v2321
    %v2323 = vpop.f32.mrb[0].mxu0
    %2324 = vmatprep.mubr.f32.mxu0 0.0
    %2325 = vmatmul.mubr.f32.gmra.mrb[0].mxu0 %v2253
    %v2326 = vpop.f32.mrb[0].mxu0
    %v2327 = vadd.f32 0.0, %v2326
    %v2328 = vpop.f32.mrb[0].mxu0
    %2329 = vdwg.mxu0
    %v2330 = vadd.f32 %v2243, %v2322
    %v2331 = vadd.f32 %v2244, %v2327
    %v2332 = vld [vmem:[#allocation2 + $0x8] sm:$0xff]
    %v2333 = vld [vmem:[#allocation2 + $0x10] sm:$0xff]
    %s2334 = scalar_lea.vmem %s35, 16
    %v2335 = vld [vmem:[%s2334] sm:$0xff]
    %v2337 = vsel %vm297, %v2332, 0
    %v2340 = vsel %vm297, %v2333, 0
    %2342 = vmatprep.subr.mxu0 0.0
    %2343 = vmatpush1.msra.mxu0 %v2335
    %2344 = vmatprep.subr.mxu0 0.0
    %2345 = vmatpush1.msra.mxu0 0.0
    %2346 = vmatprep.subr.mxu0 0.0
    %2347 = vmatpush1.msra.mxu0 0.0
    %2348 = vmatprep.subr.mxu0 0.0
    %2349 = vmatpush1.msra.mxu0 0.0
    %2350 = vmatprep.subr.mxu0 0.0
    %2351 = vmatpush1.msra.mxu0 0.0
    %2352 = vmatprep.subr.mxu0 0.0
    %2353 = vmatpush1.msra.mxu0 0.0
    %2354 = vmatprep.subr.mxu0 0.0
    %2355 = vmatpush1.msra.mxu0 0.0
    %2356 = vmatprep.subr.mxu0 0.0
    %2357 = vmatpush1.msra.mxu0 0.0
    %2358 = vmatprep.subr.mxu0 0.0
    %2359 = vmatpush1.msra.mxu0 0.0
    %2360 = vmatprep.subr.mxu0 0.0
    %2361 = vmatpush1.msra.mxu0 0.0
    %2362 = vmatprep.subr.mxu0 0.0
    %2363 = vmatpush1.msra.mxu0 0.0
    %2364 = vmatprep.subr.mxu0 0.0
    %2365 = vmatpush1.msra.mxu0 0.0
    %2366 = vmatprep.subr.mxu0 0.0
    %2367 = vmatpush1.msra.mxu0 0.0
    %2368 = vmatprep.subr.mxu0 0.0
    %2369 = vmatpush1.msra.mxu0 0.0
    %2370 = vmatprep.subr.mxu0 0.0
    %2371 = vmatpush1.msra.mxu0 0.0
    %2372 = vmatprep.subr.mxu0 0.0
    %2373 = vmatpush1.msra.mxu0 0.0
    %2374 = vmatprep.subr.mxu0 0.0
    %2375 = vmatpush1.msra.mxu0 0.0
    %2376 = vmatprep.subr.mxu0 0.0
    %2377 = vmatpush1.msra.mxu0 0.0
    %2378 = vmatprep.subr.mxu0 0.0
    %2379 = vmatpush1.msra.mxu0 0.0
    %2380 = vmatprep.subr.mxu0 0.0
    %2381 = vmatpush1.msra.mxu0 0.0
    %2382 = vmatprep.subr.mxu0 0.0
    %2383 = vmatpush1.msra.mxu0 0.0
    %2384 = vmatprep.subr.mxu0 0.0
    %2385 = vmatpush1.msra.mxu0 0.0
    %2386 = vmatprep.subr.mxu0 0.0
    %2387 = vmatpush1.msra.mxu0 0.0
    %2388 = vmatprep.subr.mxu0 0.0
    %2389 = vmatpush1.msra.mxu0 0.0
    %2390 = vmatprep.subr.mxu0 0.0
    %2391 = vmatpush1.msra.mxu0 0.0
    %2392 = vmatprep.subr.mxu0 0.0
    %2393 = vmatpush1.msra.mxu0 0.0
    %2394 = vmatprep.subr.mxu0 0.0
    %2395 = vmatpush1.msra.mxu0 0.0
    %2396 = vmatprep.subr.mxu0 0.0
    %2397 = vmatpush1.msra.mxu0 0.0
    %2398 = vmatprep.subr.mxu0 0.0
    %2399 = vmatpush1.msra.mxu0 0.0
    %2400 = vmatprep.subr.mxu0 0.0
    %2401 = vmatpush1.msra.mxu0 0.0
    %2402 = vmatprep.subr.mxu0 0.0
    %2403 = vmatpush1.msra.mxu0 0.0
    %2404 = vmatprep.subr.mxu0 0.0
    %2405 = vmatpush1.msra.mxu0 0.0
    %2406 = vmatprep.mubr.f32.mxu0 0.0
    %2407 = vmatmul.mubr.f32.gmra.mrb[0].mxu0 %v2337
    %v2408 = vpop.f32.mrb[0].mxu0
    %v2409 = vadd.f32 0.0, %v2408
    %v2410 = vpop.f32.mrb[0].mxu0
    %2411 = vmatprep.mubr.f32.mxu0 0.0
    %2412 = vmatmul.mubr.f32.gmra.mrb[0].mxu0 %v2340
    %v2413 = vpop.f32.mrb[0].mxu0
    %v2414 = vadd.f32 0.0, %v2413
    %v2415 = vpop.f32.mrb[0].mxu0
    %2416 = vdwg.mxu0
    %v2417 = vadd.f32 %v2330, %v2409
    %v2418 = vadd.f32 %v2331, %v2414
    %v2419 = vmax.f32 %v2417, 0.0
    %v2420 = vmax.f32 %v2418, 0.0
    %2421 = vst.msk [vmem:[#allocation2 + $0x8] sm:$0xff] %vm297, %v2419
    %2422 = vst.msk [vmem:[#allocation2 + $0x10] sm:$0xff] %vm297, %v2420
    %v2423 = vld [vmem:[%s41] sm:$0x1]
    %v2425 = vlaneseq
    %v2426 = vshrl.u32 %v2425, 7
    %v2427 = vsub.s32 0, %v2426
    %v2428 = vrot.slane %v2423, %v2427
    %v2430 = vld [vmem:[#allocation2] sm:$0xff]
    %v2431 = vld [vmem:[#allocation2 + $0x8] sm:$0xff]
    %v2432 = vld [vmem:[%s39] sm:$0xff]
    %v2434 = vsel %vm297, %v2430, 0
    %v2437 = vsel %vm297, %v2431, 0
    %2439 = vmatprep.subr.mxu0 0.0
    %2440 = vmatpush1.msra.mxu0 %v2432
    %2441 = vmatprep.subr.mxu0 0.0
    %2442 = vmatpush1.msra.mxu0 0.0
    %2443 = vmatprep.subr.mxu0 0.0
    %2444 = vmatpush1.msra.mxu0 0.0
    %2445 = vmatprep.subr.mxu0 0.0
    %2446 = vmatpush1.msra.mxu0 0.0
    %2447 = vmatprep.subr.mxu0 0.0
    %2448 = vmatpush1.msra.mxu0 0.0
    %2449 = vmatprep.subr.mxu0 0.0
    %2450 = vmatpush1.msra.mxu0 0.0
    %2451 = vmatprep.subr.mxu0 0.0
    %2452 = vmatpush1.msra.mxu0 0.0
    %2453 = vmatprep.subr.mxu0 0.0
    %2454 = vmatpush1.msra.mxu0 0.0
    %2455 = vmatprep.subr.mxu0 0.0
    %2456 = vmatpush1.msra.mxu0 0.0
    %2457 = vmatprep.subr.mxu0 0.0
    %2458 = vmatpush1.msra.mxu0 0.0
    %2459 = vmatprep.subr.mxu0 0.0
    %2460 = vmatpush1.msra.mxu0 0.0
    %2461 = vmatprep.subr.mxu0 0.0
    %2462 = vmatpush1.msra.mxu0 0.0
    %2463 = vmatprep.subr.mxu0 0.0
    %2464 = vmatpush1.msra.mxu0 0.0
    %2465 = vmatprep.subr.mxu0 0.0
    %2466 = vmatpush1.msra.mxu0 0.0
    %2467 = vmatprep.subr.mxu0 0.0
    %2468 = vmatpush1.msra.mxu0 0.0
    %2469 = vmatprep.subr.mxu0 0.0
    %2470 = vmatpush1.msra.mxu0 0.0
    %2471 = vmatprep.subr.mxu0 0.0
    %2472 = vmatpush1.msra.mxu0 0.0
    %2473 = vmatprep.subr.mxu0 0.0
    %2474 = vmatpush1.msra.mxu0 0.0
    %2475 = vmatprep.subr.mxu0 0.0
    %2476 = vmatpush1.msra.mxu0 0.0
    %2477 = vmatprep.subr.mxu0 0.0
    %2478 = vmatpush1.msra.mxu0 0.0
    %2479 = vmatprep.subr.mxu0 0.0
    %2480 = vmatpush1.msra.mxu0 0.0
    %2481 = vmatprep.subr.mxu0 0.0
    %2482 = vmatpush1.msra.mxu0 0.0
    %2483 = vmatprep.subr.mxu0 0.0
    %2484 = vmatpush1.msra.mxu0 0.0
    %2485 = vmatprep.subr.mxu0 0.0
    %2486 = vmatpush1.msra.mxu0 0.0
    %2487 = vmatprep.subr.mxu0 0.0
    %2488 = vmatpush1.msra.mxu0 0.0
    %2489 = vmatprep.subr.mxu0 0.0
    %2490 = vmatpush1.msra.mxu0 0.0
    %2491 = vmatprep.subr.mxu0 0.0
    %2492 = vmatpush1.msra.mxu0 0.0
    %2493 = vmatprep.subr.mxu0 0.0
    %2494 = vmatpush1.msra.mxu0 0.0
    %2495 = vmatprep.subr.mxu0 0.0
    %2496 = vmatpush1.msra.mxu0 0.0
    %2497 = vmatprep.subr.mxu0 0.0
    %2498 = vmatpush1.msra.mxu0 0.0
    %2499 = vmatprep.subr.mxu0 0.0
    %2500 = vmatpush1.msra.mxu0 0.0
    %2501 = vmatprep.subr.mxu0 0.0
    %2502 = vmatpush1.msra.mxu0 0.0
    %2503 = vmatprep.mubr.f32.mxu0 0.0
    %2504 = vmatmul.mubr.f32.gmra.mrb[0].mxu0 %v2434
    %v2505 = vpop.f32.mrb[0].mxu0
    %v2506 = vadd.f32 0.0, %v2505
    %v2507 = vpop.f32.mrb[0].mxu0
    %2508 = vmatprep.mubr.f32.mxu0 0.0
    %2509 = vmatmul.mubr.f32.gmra.mrb[0].mxu0 %v2437
    %v2510 = vpop.f32.mrb[0].mxu0
    %v2511 = vadd.f32 0.0, %v2510
    %v2512 = vpop.f32.mrb[0].mxu0
    %2513 = vdwg.mxu0
    %v2514 = vadd.f32 %v2428, %v2506
    %v2515 = vadd.f32 %v2428, %v2511
    %v2516 = vld [vmem:[#allocation2 + $0x4] sm:$0xff]
    %v2517 = vld [vmem:[#allocation2 + $0xc] sm:$0xff]
    %s2518 = scalar_lea.vmem %s39, 8
    %v2519 = vld [vmem:[%s2518] sm:$0xff]
    %v2521 = vsel %vm297, %v2516, 0
    %v2524 = vsel %vm297, %v2517, 0
    %2526 = vmatprep.subr.mxu0 0.0
    %2527 = vmatpush1.msra.mxu0 %v2519
    %2528 = vmatprep.subr.mxu0 0.0
    %2529 = vmatpush1.msra.mxu0 0.0
    %2530 = vmatprep.subr.mxu0 0.0
    %2531 = vmatpush1.msra.mxu0 0.0
    %2532 = vmatprep.subr.mxu0 0.0
    %2533 = vmatpush1.msra.mxu0 0.0
    %2534 = vmatprep.subr.mxu0 0.0
    %2535 = vmatpush1.msra.mxu0 0.0
    %2536 = vmatprep.subr.mxu0 0.0
    %2537 = vmatpush1.msra.mxu0 0.0
    %2538 = vmatprep.subr.mxu0 0.0
    %2539 = vmatpush1.msra.mxu0 0.0
    %2540 = vmatprep.subr.mxu0 0.0
    %2541 = vmatpush1.msra.mxu0 0.0
    %2542 = vmatprep.subr.mxu0 0.0
    %2543 = vmatpush1.msra.mxu0 0.0
    %2544 = vmatprep.subr.mxu0 0.0
    %2545 = vmatpush1.msra.mxu0 0.0
    %2546 = vmatprep.subr.mxu0 0.0
    %2547 = vmatpush1.msra.mxu0 0.0
    %2548 = vmatprep.subr.mxu0 0.0
    %2549 = vmatpush1.msra.mxu0 0.0
    %2550 = vmatprep.subr.mxu0 0.0
    %2551 = vmatpush1.msra.mxu0 0.0
    %2552 = vmatprep.subr.mxu0 0.0
    %2553 = vmatpush1.msra.mxu0 0.0
    %2554 = vmatprep.subr.mxu0 0.0
    %2555 = vmatpush1.msra.mxu0 0.0
    %2556 = vmatprep.subr.mxu0 0.0
    %2557 = vmatpush1.msra.mxu0 0.0
    %2558 = vmatprep.subr.mxu0 0.0
    %2559 = vmatpush1.msra.mxu0 0.0
    %2560 = vmatprep.subr.mxu0 0.0
    %2561 = vmatpush1.msra.mxu0 0.0
    %2562 = vmatprep.subr.mxu0 0.0
    %2563 = vmatpush1.msra.mxu0 0.0
    %2564 = vmatprep.subr.mxu0 0.0
    %2565 = vmatpush1.msra.mxu0 0.0
    %2566 = vmatprep.subr.mxu0 0.0
    %2567 = vmatpush1.msra.mxu0 0.0
    %2568 = vmatprep.subr.mxu0 0.0
    %2569 = vmatpush1.msra.mxu0 0.0
    %2570 = vmatprep.subr.mxu0 0.0
    %2571 = vmatpush1.msra.mxu0 0.0
    %2572 = vmatprep.subr.mxu0 0.0
    %2573 = vmatpush1.msra.mxu0 0.0
    %2574 = vmatprep.subr.mxu0 0.0
    %2575 = vmatpush1.msra.mxu0 0.0
    %2576 = vmatprep.subr.mxu0 0.0
    %2577 = vmatpush1.msra.mxu0 0.0
    %2578 = vmatprep.subr.mxu0 0.0
    %2579 = vmatpush1.msra.mxu0 0.0
    %2580 = vmatprep.subr.mxu0 0.0
    %2581 = vmatpush1.msra.mxu0 0.0
    %2582 = vmatprep.subr.mxu0 0.0
    %2583 = vmatpush1.msra.mxu0 0.0
    %2584 = vmatprep.subr.mxu0 0.0
    %2585 = vmatpush1.msra.mxu0 0.0
    %2586 = vmatprep.subr.mxu0 0.0
    %2587 = vmatpush1.msra.mxu0 0.0
    %2588 = vmatprep.subr.mxu0 0.0
    %2589 = vmatpush1.msra.mxu0 0.0
    %2590 = vmatprep.mubr.f32.mxu0 0.0
    %2591 = vmatmul.mubr.f32.gmra.mrb[0].mxu0 %v2521
    %v2592 = vpop.f32.mrb[0].mxu0
    %v2593 = vadd.f32 0.0, %v2592
    %v2594 = vpop.f32.mrb[0].mxu0
    %2595 = vmatprep.mubr.f32.mxu0 0.0
    %2596 = vmatmul.mubr.f32.gmra.mrb[0].mxu0 %v2524
    %v2597 = vpop.f32.mrb[0].mxu0
    %v2598 = vadd.f32 0.0, %v2597
    %v2599 = vpop.f32.mrb[0].mxu0
    %2600 = vdwg.mxu0
    %v2601 = vadd.f32 %v2514, %v2593
    %v2602 = vadd.f32 %v2515, %v2598
    %v2603 = vld [vmem:[#allocation2 + $0x8] sm:$0xff]
    %v2604 = vld [vmem:[#allocation2 + $0x10] sm:$0xff]
    %s2605 = scalar_lea.vmem %s39, 16
    %v2606 = vld [vmem:[%s2605] sm:$0xff]
    %v2608 = vsel %vm297, %v2603, 0
    %v2611 = vsel %vm297, %v2604, 0
    %2613 = vmatprep.subr.mxu0 0.0
    %2614 = vmatpush1.msra.mxu0 %v2606
    %2615 = vmatprep.subr.mxu0 0.0
    %2616 = vmatpush1.msra.mxu0 0.0
    %2617 = vmatprep.subr.mxu0 0.0
    %2618 = vmatpush1.msra.mxu0 0.0
    %2619 = vmatprep.subr.mxu0 0.0
    %2620 = vmatpush1.msra.mxu0 0.0
    %2621 = vmatprep.subr.mxu0 0.0
    %2622 = vmatpush1.msra.mxu0 0.0
    %2623 = vmatprep.subr.mxu0 0.0
    %2624 = vmatpush1.msra.mxu0 0.0
    %2625 = vmatprep.subr.mxu0 0.0
    %2626 = vmatpush1.msra.mxu0 0.0
    %2627 = vmatprep.subr.mxu0 0.0
    %2628 = vmatpush1.msra.mxu0 0.0
    %2629 = vmatprep.subr.mxu0 0.0
    %2630 = vmatpush1.msra.mxu0 0.0
    %2631 = vmatprep.subr.mxu0 0.0
    %2632 = vmatpush1.msra.mxu0 0.0
    %2633 = vmatprep.subr.mxu0 0.0
    %2634 = vmatpush1.msra.mxu0 0.0
    %2635 = vmatprep.subr.mxu0 0.0
    %2636 = vmatpush1.msra.mxu0 0.0
    %2637 = vmatprep.subr.mxu0 0.0
    %2638 = vmatpush1.msra.mxu0 0.0
    %2639 = vmatprep.subr.mxu0 0.0
    %2640 = vmatpush1.msra.mxu0 0.0
    %2641 = vmatprep.subr.mxu0 0.0
    %2642 = vmatpush1.msra.mxu0 0.0
    %2643 = vmatprep.subr.mxu0 0.0
    %2644 = vmatpush1.msra.mxu0 0.0
    %2645 = vmatprep.subr.mxu0 0.0
    %2646 = vmatpush1.msra.mxu0 0.0
    %2647 = vmatprep.subr.mxu0 0.0
    %2648 = vmatpush1.msra.mxu0 0.0
    %2649 = vmatprep.subr.mxu0 0.0
    %2650 = vmatpush1.msra.mxu0 0.0
    %2651 = vmatprep.subr.mxu0 0.0
    %2652 = vmatpush1.msra.mxu0 0.0
    %2653 = vmatprep.subr.mxu0 0.0
    %2654 = vmatpush1.msra.mxu0 0.0
    %2655 = vmatprep.subr.mxu0 0.0
    %2656 = vmatpush1.msra.mxu0 0.0
    %2657 = vmatprep.subr.mxu0 0.0
    %2658 = vmatpush1.msra.mxu0 0.0
    %2659 = vmatprep.subr.mxu0 0.0
    %2660 = vmatpush1.msra.mxu0 0.0
    %2661 = vmatprep.subr.mxu0 0.0
    %2662 = vmatpush1.msra.mxu0 0.0
    %2663 = vmatprep.subr.mxu0 0.0
    %2664 = vmatpush1.msra.mxu0 0.0
    %2665 = vmatprep.subr.mxu0 0.0
    %2666 = vmatpush1.msra.mxu0 0.0
    %2667 = vmatprep.subr.mxu0 0.0
    %2668 = vmatpush1.msra.mxu0 0.0
    %2669 = vmatprep.subr.mxu0 0.0
    %2670 = vmatpush1.msra.mxu0 0.0
    %2671 = vmatprep.subr.mxu0 0.0
    %2672 = vmatpush1.msra.mxu0 0.0
    %2673 = vmatprep.subr.mxu0 0.0
    %2674 = vmatpush1.msra.mxu0 0.0
    %2675 = vmatprep.subr.mxu0 0.0
    %2676 = vmatpush1.msra.mxu0 0.0
    %2677 = vmatprep.mubr.f32.mxu0 0.0
    %2678 = vmatmul.mubr.f32.gmra.mrb[0].mxu0 %v2608
    %v2679 = vpop.f32.mrb[0].mxu0
    %v2680 = vadd.f32 0.0, %v2679
    %v2681 = vpop.f32.mrb[0].mxu0
    %2682 = vmatprep.mubr.f32.mxu0 0.0
    %2683 = vmatmul.mubr.f32.gmra.mrb[0].mxu0 %v2611
    %v2684 = vpop.f32.mrb[0].mxu0
    %v2685 = vadd.f32 0.0, %v2684
    %v2686 = vpop.f32.mrb[0].mxu0
    %2687 = vdwg.mxu0
    %v2688 = vadd.f32 %v2601, %v2680
    %v2689 = vadd.f32 %v2602, %v2685
    %v2690 = vmax.f32 %v2688, 0.0
    %v2691 = vmax.f32 %v2689, 0.0
    %v2692 = vadd.f32 %v2690, %v2148
    %v2693 = vadd.f32 %v2691, %v2149
    %v2694 = vmax.f32 %v2692, 0.0
    %v2695 = vmax.f32 %v2693, 0.0
    %2698 = vrot.lane.b32.xlu0 %v2694, 8
    %v2699 = vpop.permute.xlu0 %2698
    %2700 = vrot.lane.b32.xlu0 %v2695, 8
    %v2701 = vpop.permute.xlu0 %2700
    %vm2704 = vcmask 130112
    %2705 = vst.msk [vmem:[#allocation3] sm:$0xff] %vm2704, %v2699
    %2706 = vst.msk [vmem:[#allocation3 + $0x8] sm:$0xff] %vm2704, %v2701
    %v2707 = vld [vmem:[%s45] sm:$0x1]
    %v2709 = vlaneseq
    %v2710 = vshrl.u32 %v2709, 7
    %v2711 = vsub.s32 0, %v2710
    %v2712 = vrot.slane %v2707, %v2711
    %v2714 = vld [vmem:[#allocation3] sm:$0x3]
    %v2715 = vld [vmem:[#allocation25] sm:$0xff]
    %v2716 = vld [vmem:[#allocation25 + $0x8] sm:$0xff]
    %vm2717 = vcmask 130048
    %v2719 = vsel %vm2717, %v2714, 0
    %2721 = vmatprep.subr.mxu0 0.0
    %2722 = vmatpush1.msra.mxu0 %v2715
    %2723 = vmatprep.subr.mxu0 0.0
    %2724 = vmatpush1.msra.mxu0 %v2716
    %2725 = vmatprep.subr.mxu0 0.0
    %2726 = vmatpush1.msra.mxu0 0.0
    %2727 = vmatprep.subr.mxu0 0.0
    %2728 = vmatpush1.msra.mxu0 0.0
    %2729 = vmatprep.subr.mxu0 0.0
    %2730 = vmatpush1.msra.mxu0 0.0
    %2731 = vmatprep.subr.mxu0 0.0
    %2732 = vmatpush1.msra.mxu0 0.0
    %2733 = vmatprep.subr.mxu0 0.0
    %2734 = vmatpush1.msra.mxu0 0.0
    %2735 = vmatprep.subr.mxu0 0.0
    %2736 = vmatpush1.msra.mxu0 0.0
    %2737 = vmatprep.subr.mxu0 0.0
    %2738 = vmatpush1.msra.mxu0 0.0
    %2739 = vmatprep.subr.mxu0 0.0
    %2740 = vmatpush1.msra.mxu0 0.0
    %2741 = vmatprep.subr.mxu0 0.0
    %2742 = vmatpush1.msra.mxu0 0.0
    %2743 = vmatprep.subr.mxu0 0.0
    %2744 = vmatpush1.msra.mxu0 0.0
    %2745 = vmatprep.subr.mxu0 0.0
    %2746 = vmatpush1.msra.mxu0 0.0
    %2747 = vmatprep.subr.mxu0 0.0
    %2748 = vmatpush1.msra.mxu0 0.0
    %2749 = vmatprep.subr.mxu0 0.0
    %2750 = vmatpush1.msra.mxu0 0.0
    %2751 = vmatprep.subr.mxu0 0.0
    %2752 = vmatpush1.msra.mxu0 0.0
    %2753 = vmatprep.subr.mxu0 0.0
    %2754 = vmatpush1.msra.mxu0 0.0
    %2755 = vmatprep.subr.mxu0 0.0
    %2756 = vmatpush1.msra.mxu0 0.0
    %2757 = vmatprep.subr.mxu0 0.0
    %2758 = vmatpush1.msra.mxu0 0.0
    %2759 = vmatprep.subr.mxu0 0.0
    %2760 = vmatpush1.msra.mxu0 0.0
    %2761 = vmatprep.subr.mxu0 0.0
    %2762 = vmatpush1.msra.mxu0 0.0
    %2763 = vmatprep.subr.mxu0 0.0
    %2764 = vmatpush1.msra.mxu0 0.0
    %2765 = vmatprep.subr.mxu0 0.0
    %2766 = vmatpush1.msra.mxu0 0.0
    %2767 = vmatprep.subr.mxu0 0.0
    %2768 = vmatpush1.msra.mxu0 0.0
    %2769 = vmatprep.subr.mxu0 0.0
    %2770 = vmatpush1.msra.mxu0 0.0
    %2771 = vmatprep.subr.mxu0 0.0
    %2772 = vmatpush1.msra.mxu0 0.0
    %2773 = vmatprep.subr.mxu0 0.0
    %2774 = vmatpush1.msra.mxu0 0.0
    %2775 = vmatprep.subr.mxu0 0.0
    %2776 = vmatpush1.msra.mxu0 0.0
    %2777 = vmatprep.subr.mxu0 0.0
    %2778 = vmatpush1.msra.mxu0 0.0
    %2779 = vmatprep.subr.mxu0 0.0
    %2780 = vmatpush1.msra.mxu0 0.0
    %2781 = vmatprep.subr.mxu0 0.0
    %2782 = vmatpush1.msra.mxu0 0.0
    %2783 = vmatprep.subr.mxu0 0.0
    %2784 = vmatpush1.msra.mxu0 0.0
    %2785 = vmatprep.mubr.f32.mxu0 0.0
    %2786 = vmatmul.mubr.f32.gmra.mrb[0].mxu0 %v2719
    %v2787 = vpop.f32.mrb[0].mxu0
    %v2788 = vadd.f32 0.0, %v2787
    %v2789 = vpop.f32.mrb[0].mxu0
    %2790 = vdwg.mxu0
    %v2791 = vadd.f32 %v2712, %v2788
    %v2792 = vld [vmem:[#allocation3 + $0x2] sm:$0x3]
    %s2793 = scalar_lea.vmem [#allocation25], 16
    %v2794 = vld [vmem:[%s2793] sm:$0xff]
    %v2795 = vld [vmem:[%s2793 + $0x8] sm:$0xff]
    %v2797 = vsel %vm2717, %v2792, 0
    %2799 = vmatprep.subr.mxu0 0.0
    %2800 = vmatpush1.msra.mxu0 %v2794
    %2801 = vmatprep.subr.mxu0 0.0
    %2802 = vmatpush1.msra.mxu0 %v2795
    %2803 = vmatprep.subr.mxu0 0.0
    %2804 = vmatpush1.msra.mxu0 0.0
    %2805 = vmatprep.subr.mxu0 0.0
    %2806 = vmatpush1.msra.mxu0 0.0
    %2807 = vmatprep.subr.mxu0 0.0
    %2808 = vmatpush1.msra.mxu0 0.0
    %2809 = vmatprep.subr.mxu0 0.0
    %2810 = vmatpush1.msra.mxu0 0.0
    %2811 = vmatprep.subr.mxu0 0.0
    %2812 = vmatpush1.msra.mxu0 0.0
    %2813 = vmatprep.subr.mxu0 0.0
    %2814 = vmatpush1.msra.mxu0 0.0
    %2815 = vmatprep.subr.mxu0 0.0
    %2816 = vmatpush1.msra.mxu0 0.0
    %2817 = vmatprep.subr.mxu0 0.0
    %2818 = vmatpush1.msra.mxu0 0.0
    %2819 = vmatprep.subr.mxu0 0.0
    %2820 = vmatpush1.msra.mxu0 0.0
    %2821 = vmatprep.subr.mxu0 0.0
    %2822 = vmatpush1.msra.mxu0 0.0
    %2823 = vmatprep.subr.mxu0 0.0
    %2824 = vmatpush1.msra.mxu0 0.0
    %2825 = vmatprep.subr.mxu0 0.0
    %2826 = vmatpush1.msra.mxu0 0.0
    %2827 = vmatprep.subr.mxu0 0.0
    %2828 = vmatpush1.msra.mxu0 0.0
    %2829 = vmatprep.subr.mxu0 0.0
    %2830 = vmatpush1.msra.mxu0 0.0
    %2831 = vmatprep.subr.mxu0 0.0
    %2832 = vmatpush1.msra.mxu0 0.0
    %2833 = vmatprep.subr.mxu0 0.0
    %2834 = vmatpush1.msra.mxu0 0.0
    %2835 = vmatprep.subr.mxu0 0.0
    %2836 = vmatpush1.msra.mxu0 0.0
    %2837 = vmatprep.subr.mxu0 0.0
    %2838 = vmatpush1.msra.mxu0 0.0
    %2839 = vmatprep.subr.mxu0 0.0
    %2840 = vmatpush1.msra.mxu0 0.0
    %2841 = vmatprep.subr.mxu0 0.0
    %2842 = vmatpush1.msra.mxu0 0.0
    %2843 = vmatprep.subr.mxu0 0.0
    %2844 = vmatpush1.msra.mxu0 0.0
    %2845 = vmatprep.subr.mxu0 0.0
    %2846 = vmatpush1.msra.mxu0 0.0
    %2847 = vmatprep.subr.mxu0 0.0
    %2848 = vmatpush1.msra.mxu0 0.0
    %2849 = vmatprep.subr.mxu0 0.0
    %2850 = vmatpush1.msra.mxu0 0.0
    %2851 = vmatprep.subr.mxu0 0.0
    %2852 = vmatpush1.msra.mxu0 0.0
    %2853 = vmatprep.subr.mxu0 0.0
    %2854 = vmatpush1.msra.mxu0 0.0
    %2855 = vmatprep.subr.mxu0 0.0
    %2856 = vmatpush1.msra.mxu0 0.0
    %2857 = vmatprep.subr.mxu0 0.0
    %2858 = vmatpush1.msra.mxu0 0.0
    %2859 = vmatprep.subr.mxu0 0.0
    %2860 = vmatpush1.msra.mxu0 0.0
    %2861 = vmatprep.subr.mxu0 0.0
    %2862 = vmatpush1.msra.mxu0 0.0
    %2863 = vmatprep.mubr.f32.mxu0 0.0
    %2864 = vmatmul.mubr.f32.gmra.mrb[0].mxu0 %v2797
    %v2865 = vpop.f32.mrb[0].mxu0
    %v2866 = vadd.f32 0.0, %v2865
    %v2867 = vpop.f32.mrb[0].mxu0
    %2868 = vdwg.mxu0
    %v2869 = vadd.f32 %v2791, %v2866
    %v2870 = vld [vmem:[#allocation3 + $0x4] sm:$0x3]
    %s2871 = scalar_lea.vmem [#allocation25], 32
    %v2872 = vld [vmem:[%s2871] sm:$0xff]
    %v2873 = vld [vmem:[%s2871 + $0x8] sm:$0xff]
    %v2875 = vsel %vm2717, %v2870, 0
    %2877 = vmatprep.subr.mxu0 0.0
    %2878 = vmatpush1.msra.mxu0 %v2872
    %2879 = vmatprep.subr.mxu0 0.0
    %2880 = vmatpush1.msra.mxu0 %v2873
    %2881 = vmatprep.subr.mxu0 0.0
    %2882 = vmatpush1.msra.mxu0 0.0
    %2883 = vmatprep.subr.mxu0 0.0
    %2884 = vmatpush1.msra.mxu0 0.0
    %2885 = vmatprep.subr.mxu0 0.0
    %2886 = vmatpush1.msra.mxu0 0.0
    %2887 = vmatprep.subr.mxu0 0.0
    %2888 = vmatpush1.msra.mxu0 0.0
    %2889 = vmatprep.subr.mxu0 0.0
    %2890 = vmatpush1.msra.mxu0 0.0
    %2891 = vmatprep.subr.mxu0 0.0
    %2892 = vmatpush1.msra.mxu0 0.0
    %2893 = vmatprep.subr.mxu0 0.0
    %2894 = vmatpush1.msra.mxu0 0.0
    %2895 = vmatprep.subr.mxu0 0.0
    %2896 = vmatpush1.msra.mxu0 0.0
    %2897 = vmatprep.subr.mxu0 0.0
    %2898 = vmatpush1.msra.mxu0 0.0
    %2899 = vmatprep.subr.mxu0 0.0
    %2900 = vmatpush1.msra.mxu0 0.0
    %2901 = vmatprep.subr.mxu0 0.0
    %2902 = vmatpush1.msra.mxu0 0.0
    %2903 = vmatprep.subr.mxu0 0.0
    %2904 = vmatpush1.msra.mxu0 0.0
    %2905 = vmatprep.subr.mxu0 0.0
    %2906 = vmatpush1.msra.mxu0 0.0
    %2907 = vmatprep.subr.mxu0 0.0
    %2908 = vmatpush1.msra.mxu0 0.0
    %2909 = vmatprep.subr.mxu0 0.0
    %2910 = vmatpush1.msra.mxu0 0.0
    %2911 = vmatprep.subr.mxu0 0.0
    %2912 = vmatpush1.msra.mxu0 0.0
    %2913 = vmatprep.subr.mxu0 0.0
    %2914 = vmatpush1.msra.mxu0 0.0
    %2915 = vmatprep.subr.mxu0 0.0
    %2916 = vmatpush1.msra.mxu0 0.0
    %2917 = vmatprep.subr.mxu0 0.0
    %2918 = vmatpush1.msra.mxu0 0.0
    %2919 = vmatprep.subr.mxu0 0.0
    %2920 = vmatpush1.msra.mxu0 0.0
    %2921 = vmatprep.subr.mxu0 0.0
    %2922 = vmatpush1.msra.mxu0 0.0
    %2923 = vmatprep.subr.mxu0 0.0
    %2924 = vmatpush1.msra.mxu0 0.0
    %2925 = vmatprep.subr.mxu0 0.0
    %2926 = vmatpush1.msra.mxu0 0.0
    %2927 = vmatprep.subr.mxu0 0.0
    %2928 = vmatpush1.msra.mxu0 0.0
    %2929 = vmatprep.subr.mxu0 0.0
    %2930 = vmatpush1.msra.mxu0 0.0
    %2931 = vmatprep.subr.mxu0 0.0
    %2932 = vmatpush1.msra.mxu0 0.0
    %2933 = vmatprep.subr.mxu0 0.0
    %2934 = vmatpush1.msra.mxu0 0.0
    %2935 = vmatprep.subr.mxu0 0.0
    %2936 = vmatpush1.msra.mxu0 0.0
    %2937 = vmatprep.subr.mxu0 0.0
    %2938 = vmatpush1.msra.mxu0 0.0
    %2939 = vmatprep.subr.mxu0 0.0
    %2940 = vmatpush1.msra.mxu0 0.0
    %2941 = vmatprep.mubr.f32.mxu0 0.0
    %2942 = vmatmul.mubr.f32.gmra.mrb[0].mxu0 %v2875
    %v2943 = vpop.f32.mrb[0].mxu0
    %v2944 = vadd.f32 0.0, %v2943
    %v2945 = vpop.f32.mrb[0].mxu0
    %2946 = vdwg.mxu0
    %v2947 = vadd.f32 %v2869, %v2944
    %v2948 = vld [vmem:[#allocation3 + $0x6] sm:$0x3]
    %s2949 = scalar_lea.vmem [#allocation25], 48
    %v2950 = vld [vmem:[%s2949] sm:$0xff]
    %v2951 = vld [vmem:[%s2949 + $0x8] sm:$0xff]
    %v2953 = vsel %vm2717, %v2948, 0
    %2955 = vmatprep.subr.mxu0 0.0
    %2956 = vmatpush1.msra.mxu0 %v2950
    %2957 = vmatprep.subr.mxu0 0.0
    %2958 = vmatpush1.msra.mxu0 %v2951
    %2959 = vmatprep.subr.mxu0 0.0
    %2960 = vmatpush1.msra.mxu0 0.0
    %2961 = vmatprep.subr.mxu0 0.0
    %2962 = vmatpush1.msra.mxu0 0.0
    %2963 = vmatprep.subr.mxu0 0.0
    %2964 = vmatpush1.msra.mxu0 0.0
    %2965 = vmatprep.subr.mxu0 0.0
    %2966 = vmatpush1.msra.mxu0 0.0
    %2967 = vmatprep.subr.mxu0 0.0
    %2968 = vmatpush1.msra.mxu0 0.0
    %2969 = vmatprep.subr.mxu0 0.0
    %2970 = vmatpush1.msra.mxu0 0.0
    %2971 = vmatprep.subr.mxu0 0.0
    %2972 = vmatpush1.msra.mxu0 0.0
    %2973 = vmatprep.subr.mxu0 0.0
    %2974 = vmatpush1.msra.mxu0 0.0
    %2975 = vmatprep.subr.mxu0 0.0
    %2976 = vmatpush1.msra.mxu0 0.0
    %2977 = vmatprep.subr.mxu0 0.0
    %2978 = vmatpush1.msra.mxu0 0.0
    %2979 = vmatprep.subr.mxu0 0.0
    %2980 = vmatpush1.msra.mxu0 0.0
    %2981 = vmatprep.subr.mxu0 0.0
    %2982 = vmatpush1.msra.mxu0 0.0
    %2983 = vmatprep.subr.mxu0 0.0
    %2984 = vmatpush1.msra.mxu0 0.0
    %2985 = vmatprep.subr.mxu0 0.0
    %2986 = vmatpush1.msra.mxu0 0.0
    %2987 = vmatprep.subr.mxu0 0.0
    %2988 = vmatpush1.msra.mxu0 0.0
    %2989 = vmatprep.subr.mxu0 0.0
    %2990 = vmatpush1.msra.mxu0 0.0
    %2991 = vmatprep.subr.mxu0 0.0
    %2992 = vmatpush1.msra.mxu0 0.0
    %2993 = vmatprep.subr.mxu0 0.0
    %2994 = vmatpush1.msra.mxu0 0.0
    %2995 = vmatprep.subr.mxu0 0.0
    %2996 = vmatpush1.msra.mxu0 0.0
    %2997 = vmatprep.subr.mxu0 0.0
    %2998 = vmatpush1.msra.mxu0 0.0
    %2999 = vmatprep.subr.mxu0 0.0
    %3000 = vmatpush1.msra.mxu0 0.0
    %3001 = vmatprep.subr.mxu0 0.0
    %3002 = vmatpush1.msra.mxu0 0.0
    %3003 = vmatprep.subr.mxu0 0.0
    %3004 = vmatpush1.msra.mxu0 0.0
    %3005 = vmatprep.subr.mxu0 0.0
    %3006 = vmatpush1.msra.mxu0 0.0
    %3007 = vmatprep.subr.mxu0 0.0
    %3008 = vmatpush1.msra.mxu0 0.0
    %3009 = vmatprep.subr.mxu0 0.0
    %3010 = vmatpush1.msra.mxu0 0.0
    %3011 = vmatprep.subr.mxu0 0.0
    %3012 = vmatpush1.msra.mxu0 0.0
    %3013 = vmatprep.subr.mxu0 0.0
    %3014 = vmatpush1.msra.mxu0 0.0
    %3015 = vmatprep.subr.mxu0 0.0
    %3016 = vmatpush1.msra.mxu0 0.0
    %3017 = vmatprep.subr.mxu0 0.0
    %3018 = vmatpush1.msra.mxu0 0.0
    %3019 = vmatprep.mubr.f32.mxu0 0.0
    %3020 = vmatmul.mubr.f32.gmra.mrb[0].mxu0 %v2953
    %v3021 = vpop.f32.mrb[0].mxu0
    %v3022 = vadd.f32 0.0, %v3021
    %v3023 = vpop.f32.mrb[0].mxu0
    %3024 = vdwg.mxu0
    %v3025 = vadd.f32 %v2947, %v3022
    %v3026 = vld [vmem:[#allocation3 + $0x8] sm:$0x3]
    %s3027 = scalar_lea.vmem [#allocation25], 64
    %v3028 = vld [vmem:[%s3027] sm:$0xff]
    %v3029 = vld [vmem:[%s3027 + $0x8] sm:$0xff]
    %v3031 = vsel %vm2717, %v3026, 0
    %3033 = vmatprep.subr.mxu0 0.0
    %3034 = vmatpush1.msra.mxu0 %v3028
    %3035 = vmatprep.subr.mxu0 0.0
    %3036 = vmatpush1.msra.mxu0 %v3029
    %3037 = vmatprep.subr.mxu0 0.0
    %3038 = vmatpush1.msra.mxu0 0.0
    %3039 = vmatprep.subr.mxu0 0.0
    %3040 = vmatpush1.msra.mxu0 0.0
    %3041 = vmatprep.subr.mxu0 0.0
    %3042 = vmatpush1.msra.mxu0 0.0
    %3043 = vmatprep.subr.mxu0 0.0
    %3044 = vmatpush1.msra.mxu0 0.0
    %3045 = vmatprep.subr.mxu0 0.0
    %3046 = vmatpush1.msra.mxu0 0.0
    %3047 = vmatprep.subr.mxu0 0.0
    %3048 = vmatpush1.msra.mxu0 0.0
    %3049 = vmatprep.subr.mxu0 0.0
    %3050 = vmatpush1.msra.mxu0 0.0
    %3051 = vmatprep.subr.mxu0 0.0
    %3052 = vmatpush1.msra.mxu0 0.0
    %3053 = vmatprep.subr.mxu0 0.0
    %3054 = vmatpush1.msra.mxu0 0.0
    %3055 = vmatprep.subr.mxu0 0.0
    %3056 = vmatpush1.msra.mxu0 0.0
    %3057 = vmatprep.subr.mxu0 0.0
    %3058 = vmatpush1.msra.mxu0 0.0
    %3059 = vmatprep.subr.mxu0 0.0
    %3060 = vmatpush1.msra.mxu0 0.0
    %3061 = vmatprep.subr.mxu0 0.0
    %3062 = vmatpush1.msra.mxu0 0.0
    %3063 = vmatprep.subr.mxu0 0.0
    %3064 = vmatpush1.msra.mxu0 0.0
    %3065 = vmatprep.subr.mxu0 0.0
    %3066 = vmatpush1.msra.mxu0 0.0
    %3067 = vmatprep.subr.mxu0 0.0
    %3068 = vmatpush1.msra.mxu0 0.0
    %3069 = vmatprep.subr.mxu0 0.0
    %3070 = vmatpush1.msra.mxu0 0.0
    %3071 = vmatprep.subr.mxu0 0.0
    %3072 = vmatpush1.msra.mxu0 0.0
    %3073 = vmatprep.subr.mxu0 0.0
    %3074 = vmatpush1.msra.mxu0 0.0
    %3075 = vmatprep.subr.mxu0 0.0
    %3076 = vmatpush1.msra.mxu0 0.0
    %3077 = vmatprep.subr.mxu0 0.0
    %3078 = vmatpush1.msra.mxu0 0.0
    %3079 = vmatprep.subr.mxu0 0.0
    %3080 = vmatpush1.msra.mxu0 0.0
    %3081 = vmatprep.subr.mxu0 0.0
    %3082 = vmatpush1.msra.mxu0 0.0
    %3083 = vmatprep.subr.mxu0 0.0
    %3084 = vmatpush1.msra.mxu0 0.0
    %3085 = vmatprep.subr.mxu0 0.0
    %3086 = vmatpush1.msra.mxu0 0.0
    %3087 = vmatprep.subr.mxu0 0.0
    %3088 = vmatpush1.msra.mxu0 0.0
    %3089 = vmatprep.subr.mxu0 0.0
    %3090 = vmatpush1.msra.mxu0 0.0
    %3091 = vmatprep.subr.mxu0 0.0
    %3092 = vmatpush1.msra.mxu0 0.0
    %3093 = vmatprep.subr.mxu0 0.0
    %3094 = vmatpush1.msra.mxu0 0.0
    %3095 = vmatprep.subr.mxu0 0.0
    %3096 = vmatpush1.msra.mxu0 0.0
    %3097 = vmatprep.mubr.f32.mxu0 0.0
    %3098 = vmatmul.mubr.f32.gmra.mrb[0].mxu0 %v3031
    %v3099 = vpop.f32.mrb[0].mxu0
    %v3100 = vadd.f32 0.0, %v3099
    %v3101 = vpop.f32.mrb[0].mxu0
    %3102 = vdwg.mxu0
    %v3103 = vadd.f32 %v3025, %v3100
    %v3104 = vld [vmem:[#allocation3 + $0xa] sm:$0x3]
    %s3105 = scalar_lea.vmem [#allocation25], 80
    %v3106 = vld [vmem:[%s3105] sm:$0xff]
    %v3107 = vld [vmem:[%s3105 + $0x8] sm:$0xff]
    %v3109 = vsel %vm2717, %v3104, 0
    %3111 = vmatprep.subr.mxu0 0.0
    %3112 = vmatpush1.msra.mxu0 %v3106
    %3113 = vmatprep.subr.mxu0 0.0
    %3114 = vmatpush1.msra.mxu0 %v3107
    %3115 = vmatprep.subr.mxu0 0.0
    %3116 = vmatpush1.msra.mxu0 0.0
    %3117 = vmatprep.subr.mxu0 0.0
    %3118 = vmatpush1.msra.mxu0 0.0
    %3119 = vmatprep.subr.mxu0 0.0
    %3120 = vmatpush1.msra.mxu0 0.0
    %3121 = vmatprep.subr.mxu0 0.0
    %3122 = vmatpush1.msra.mxu0 0.0
    %3123 = vmatprep.subr.mxu0 0.0
    %3124 = vmatpush1.msra.mxu0 0.0
    %3125 = vmatprep.subr.mxu0 0.0
    %3126 = vmatpush1.msra.mxu0 0.0
    %3127 = vmatprep.subr.mxu0 0.0
    %3128 = vmatpush1.msra.mxu0 0.0
    %3129 = vmatprep.subr.mxu0 0.0
    %3130 = vmatpush1.msra.mxu0 0.0
    %3131 = vmatprep.subr.mxu0 0.0
    %3132 = vmatpush1.msra.mxu0 0.0
    %3133 = vmatprep.subr.mxu0 0.0
    %3134 = vmatpush1.msra.mxu0 0.0
    %3135 = vmatprep.subr.mxu0 0.0
    %3136 = vmatpush1.msra.mxu0 0.0
    %3137 = vmatprep.subr.mxu0 0.0
    %3138 = vmatpush1.msra.mxu0 0.0
    %3139 = vmatprep.subr.mxu0 0.0
    %3140 = vmatpush1.msra.mxu0 0.0
    %3141 = vmatprep.subr.mxu0 0.0
    %3142 = vmatpush1.msra.mxu0 0.0
    %3143 = vmatprep.subr.mxu0 0.0
    %3144 = vmatpush1.msra.mxu0 0.0
    %3145 = vmatprep.subr.mxu0 0.0
    %3146 = vmatpush1.msra.mxu0 0.0
    %3147 = vmatprep.subr.mxu0 0.0
    %3148 = vmatpush1.msra.mxu0 0.0
    %3149 = vmatprep.subr.mxu0 0.0
    %3150 = vmatpush1.msra.mxu0 0.0
    %3151 = vmatprep.subr.mxu0 0.0
    %3152 = vmatpush1.msra.mxu0 0.0
    %3153 = vmatprep.subr.mxu0 0.0
    %3154 = vmatpush1.msra.mxu0 0.0
    %3155 = vmatprep.subr.mxu0 0.0
    %3156 = vmatpush1.msra.mxu0 0.0
    %3157 = vmatprep.subr.mxu0 0.0
    %3158 = vmatpush1.msra.mxu0 0.0
    %3159 = vmatprep.subr.mxu0 0.0
    %3160 = vmatpush1.msra.mxu0 0.0
    %3161 = vmatprep.subr.mxu0 0.0
    %3162 = vmatpush1.msra.mxu0 0.0
    %3163 = vmatprep.subr.mxu0 0.0
    %3164 = vmatpush1.msra.mxu0 0.0
    %3165 = vmatprep.subr.mxu0 0.0
    %3166 = vmatpush1.msra.mxu0 0.0
    %3167 = vmatprep.subr.mxu0 0.0
    %3168 = vmatpush1.msra.mxu0 0.0
    %3169 = vmatprep.subr.mxu0 0.0
    %3170 = vmatpush1.msra.mxu0 0.0
    %3171 = vmatprep.subr.mxu0 0.0
    %3172 = vmatpush1.msra.mxu0 0.0
    %3173 = vmatprep.subr.mxu0 0.0
    %3174 = vmatpush1.msra.mxu0 0.0
    %3175 = vmatprep.mubr.f32.mxu0 0.0
    %3176 = vmatmul.mubr.f32.gmra.mrb[0].mxu0 %v3109
    %v3177 = vpop.f32.mrb[0].mxu0
    %v3178 = vadd.f32 0.0, %v3177
    %v3179 = vpop.f32.mrb[0].mxu0
    %3180 = vdwg.mxu0
    %v3181 = vadd.f32 %v3103, %v3178
    %v3182 = vld [vmem:[#allocation3 + $0xc] sm:$0x3]
    %s3183 = scalar_lea.vmem [#allocation25], 96
    %v3184 = vld [vmem:[%s3183] sm:$0xff]
    %v3185 = vld [vmem:[%s3183 + $0x8] sm:$0xff]
    %v3187 = vsel %vm2717, %v3182, 0
    %3189 = vmatprep.subr.mxu0 0.0
    %3190 = vmatpush1.msra.mxu0 %v3184
    %3191 = vmatprep.subr.mxu0 0.0
    %3192 = vmatpush1.msra.mxu0 %v3185
    %3193 = vmatprep.subr.mxu0 0.0
    %3194 = vmatpush1.msra.mxu0 0.0
    %3195 = vmatprep.subr.mxu0 0.0
    %3196 = vmatpush1.msra.mxu0 0.0
    %3197 = vmatprep.subr.mxu0 0.0
    %3198 = vmatpush1.msra.mxu0 0.0
    %3199 = vmatprep.subr.mxu0 0.0
    %3200 = vmatpush1.msra.mxu0 0.0
    %3201 = vmatprep.subr.mxu0 0.0
    %3202 = vmatpush1.msra.mxu0 0.0
    %3203 = vmatprep.subr.mxu0 0.0
    %3204 = vmatpush1.msra.mxu0 0.0
    %3205 = vmatprep.subr.mxu0 0.0
    %3206 = vmatpush1.msra.mxu0 0.0
    %3207 = vmatprep.subr.mxu0 0.0
    %3208 = vmatpush1.msra.mxu0 0.0
    %3209 = vmatprep.subr.mxu0 0.0
    %3210 = vmatpush1.msra.mxu0 0.0
    %3211 = vmatprep.subr.mxu0 0.0
    %3212 = vmatpush1.msra.mxu0 0.0
    %3213 = vmatprep.subr.mxu0 0.0
    %3214 = vmatpush1.msra.mxu0 0.0
    %3215 = vmatprep.subr.mxu0 0.0
    %3216 = vmatpush1.msra.mxu0 0.0
    %3217 = vmatprep.subr.mxu0 0.0
    %3218 = vmatpush1.msra.mxu0 0.0
    %3219 = vmatprep.subr.mxu0 0.0
    %3220 = vmatpush1.msra.mxu0 0.0
    %3221 = vmatprep.subr.mxu0 0.0
    %3222 = vmatpush1.msra.mxu0 0.0
    %3223 = vmatprep.subr.mxu0 0.0
    %3224 = vmatpush1.msra.mxu0 0.0
    %3225 = vmatprep.subr.mxu0 0.0
    %3226 = vmatpush1.msra.mxu0 0.0
    %3227 = vmatprep.subr.mxu0 0.0
    %3228 = vmatpush1.msra.mxu0 0.0
    %3229 = vmatprep.subr.mxu0 0.0
    %3230 = vmatpush1.msra.mxu0 0.0
    %3231 = vmatprep.subr.mxu0 0.0
    %3232 = vmatpush1.msra.mxu0 0.0
    %3233 = vmatprep.subr.mxu0 0.0
    %3234 = vmatpush1.msra.mxu0 0.0
    %3235 = vmatprep.subr.mxu0 0.0
    %3236 = vmatpush1.msra.mxu0 0.0
    %3237 = vmatprep.subr.mxu0 0.0
    %3238 = vmatpush1.msra.mxu0 0.0
    %3239 = vmatprep.subr.mxu0 0.0
    %3240 = vmatpush1.msra.mxu0 0.0
    %3241 = vmatprep.subr.mxu0 0.0
    %3242 = vmatpush1.msra.mxu0 0.0
    %3243 = vmatprep.subr.mxu0 0.0
    %3244 = vmatpush1.msra.mxu0 0.0
    %3245 = vmatprep.subr.mxu0 0.0
    %3246 = vmatpush1.msra.mxu0 0.0
    %3247 = vmatprep.subr.mxu0 0.0
    %3248 = vmatpush1.msra.mxu0 0.0
    %3249 = vmatprep.subr.mxu0 0.0
    %3250 = vmatpush1.msra.mxu0 0.0
    %3251 = vmatprep.subr.mxu0 0.0
    %3252 = vmatpush1.msra.mxu0 0.0
    %3253 = vmatprep.mubr.f32.mxu0 0.0
    %3254 = vmatmul.mubr.f32.gmra.mrb[0].mxu0 %v3187
    %v3255 = vpop.f32.mrb[0].mxu0
    %v3256 = vadd.f32 0.0, %v3255
    %v3257 = vpop.f32.mrb[0].mxu0
    %3258 = vdwg.mxu0
    %v3259 = vadd.f32 %v3181, %v3256
    %v3260 = vld [vmem:[#allocation3 + $0xe] sm:$0x3]
    %s3261 = scalar_lea.vmem [#allocation25], 112
    %v3262 = vld [vmem:[%s3261] sm:$0xff]
    %v3263 = vld [vmem:[%s3261 + $0x8] sm:$0xff]
    %v3265 = vsel %vm2717, %v3260, 0
    %3267 = vmatprep.subr.mxu0 0.0
    %3268 = vmatpush1.msra.mxu0 %v3262
    %3269 = vmatprep.subr.mxu0 0.0
    %3270 = vmatpush1.msra.mxu0 %v3263
    %3271 = vmatprep.subr.mxu0 0.0
    %3272 = vmatpush1.msra.mxu0 0.0
    %3273 = vmatprep.subr.mxu0 0.0
    %3274 = vmatpush1.msra.mxu0 0.0
    %3275 = vmatprep.subr.mxu0 0.0
    %3276 = vmatpush1.msra.mxu0 0.0
    %3277 = vmatprep.subr.mxu0 0.0
    %3278 = vmatpush1.msra.mxu0 0.0
    %3279 = vmatprep.subr.mxu0 0.0
    %3280 = vmatpush1.msra.mxu0 0.0
    %3281 = vmatprep.subr.mxu0 0.0
    %3282 = vmatpush1.msra.mxu0 0.0
    %3283 = vmatprep.subr.mxu0 0.0
    %3284 = vmatpush1.msra.mxu0 0.0
    %3285 = vmatprep.subr.mxu0 0.0
    %3286 = vmatpush1.msra.mxu0 0.0
    %3287 = vmatprep.subr.mxu0 0.0
    %3288 = vmatpush1.msra.mxu0 0.0
    %3289 = vmatprep.subr.mxu0 0.0
    %3290 = vmatpush1.msra.mxu0 0.0
    %3291 = vmatprep.subr.mxu0 0.0
    %3292 = vmatpush1.msra.mxu0 0.0
    %3293 = vmatprep.subr.mxu0 0.0
    %3294 = vmatpush1.msra.mxu0 0.0
    %3295 = vmatprep.subr.mxu0 0.0
    %3296 = vmatpush1.msra.mxu0 0.0
    %3297 = vmatprep.subr.mxu0 0.0
    %3298 = vmatpush1.msra.mxu0 0.0
    %3299 = vmatprep.subr.mxu0 0.0
    %3300 = vmatpush1.msra.mxu0 0.0
    %3301 = vmatprep.subr.mxu0 0.0
    %3302 = vmatpush1.msra.mxu0 0.0
    %3303 = vmatprep.subr.mxu0 0.0
    %3304 = vmatpush1.msra.mxu0 0.0
    %3305 = vmatprep.subr.mxu0 0.0
    %3306 = vmatpush1.msra.mxu0 0.0
    %3307 = vmatprep.subr.mxu0 0.0
    %3308 = vmatpush1.msra.mxu0 0.0
    %3309 = vmatprep.subr.mxu0 0.0
    %3310 = vmatpush1.msra.mxu0 0.0
    %3311 = vmatprep.subr.mxu0 0.0
    %3312 = vmatpush1.msra.mxu0 0.0
    %3313 = vmatprep.subr.mxu0 0.0
    %3314 = vmatpush1.msra.mxu0 0.0
    %3315 = vmatprep.subr.mxu0 0.0
    %3316 = vmatpush1.msra.mxu0 0.0
    %3317 = vmatprep.subr.mxu0 0.0
    %3318 = vmatpush1.msra.mxu0 0.0
    %3319 = vmatprep.subr.mxu0 0.0
    %3320 = vmatpush1.msra.mxu0 0.0
    %3321 = vmatprep.subr.mxu0 0.0
    %3322 = vmatpush1.msra.mxu0 0.0
    %3323 = vmatprep.subr.mxu0 0.0
    %3324 = vmatpush1.msra.mxu0 0.0
    %3325 = vmatprep.subr.mxu0 0.0
    %3326 = vmatpush1.msra.mxu0 0.0
    %3327 = vmatprep.subr.mxu0 0.0
    %3328 = vmatpush1.msra.mxu0 0.0
    %3329 = vmatprep.subr.mxu0 0.0
    %3330 = vmatpush1.msra.mxu0 0.0
    %3331 = vmatprep.mubr.f32.mxu0 0.0
    %3332 = vmatmul.mubr.f32.gmra.mrb[0].mxu0 %v3265
    %v3333 = vpop.f32.mrb[0].mxu0
    %v3334 = vadd.f32 0.0, %v3333
    %v3335 = vpop.f32.mrb[0].mxu0
    %3336 = vdwg.mxu0
    %v3337 = vadd.f32 %v3259, %v3334
    %v3338 = vld [vmem:[%s47] sm:$0xff]
    %v3339 = vld [vmem:[%s47 + $0x8] sm:$0xff]
    %v3340 = vld [vmem:[%s47 + $0x10] sm:$0xff]
    %v3341 = vld [vmem:[%s47 + $0x18] sm:$0xff]
    %v3342 = vld [vmem:[%s49] sm:$0x1]
    %v3344 = vlaneseq
    %v3345 = vshrl.u32 %v3344, 7
    %v3346 = vsub.s32 0, %v3345
    %v3347 = vrot.slane %v3342, %v3346
    %vm3349 = vcmask 261120
    %v3351 = vsel %vm3349, %v3337, 0
    %3353 = vmatprep.subr.mxu0 0.0
    %3354 = vmatpush1.msra.mxu0 %v3338
    %3355 = vmatprep.subr.mxu0 0.0
    %3356 = vmatpush1.msra.mxu0 %v3339
    %3357 = vmatprep.subr.mxu0 0.0
    %3358 = vmatpush1.msra.mxu0 %v3340
    %3359 = vmatprep.subr.mxu0 0.0
    %3360 = vmatpush1.msra.mxu0 %v3341
    %3361 = vmatprep.subr.mxu0 0.0
    %3362 = vmatpush1.msra.mxu0 0.0
    %3363 = vmatprep.subr.mxu0 0.0
    %3364 = vmatpush1.msra.mxu0 0.0
    %3365 = vmatprep.subr.mxu0 0.0
    %3366 = vmatpush1.msra.mxu0 0.0
    %3367 = vmatprep.subr.mxu0 0.0
    %3368 = vmatpush1.msra.mxu0 0.0
    %3369 = vmatprep.subr.mxu0 0.0
    %3370 = vmatpush1.msra.mxu0 0.0
    %3371 = vmatprep.subr.mxu0 0.0
    %3372 = vmatpush1.msra.mxu0 0.0
    %3373 = vmatprep.subr.mxu0 0.0
    %3374 = vmatpush1.msra.mxu0 0.0
    %3375 = vmatprep.subr.mxu0 0.0
    %3376 = vmatpush1.msra.mxu0 0.0
    %3377 = vmatprep.subr.mxu0 0.0
    %3378 = vmatpush1.msra.mxu0 0.0
    %3379 = vmatprep.subr.mxu0 0.0
    %3380 = vmatpush1.msra.mxu0 0.0
    %3381 = vmatprep.subr.mxu0 0.0
    %3382 = vmatpush1.msra.mxu0 0.0
    %3383 = vmatprep.subr.mxu0 0.0
    %3384 = vmatpush1.msra.mxu0 0.0
    %3385 = vmatprep.subr.mxu0 0.0
    %3386 = vmatpush1.msra.mxu0 0.0
    %3387 = vmatprep.subr.mxu0 0.0
    %3388 = vmatpush1.msra.mxu0 0.0
    %3389 = vmatprep.subr.mxu0 0.0
    %3390 = vmatpush1.msra.mxu0 0.0
    %3391 = vmatprep.subr.mxu0 0.0
    %3392 = vmatpush1.msra.mxu0 0.0
    %3393 = vmatprep.subr.mxu0 0.0
    %3394 = vmatpush1.msra.mxu0 0.0
    %3395 = vmatprep.subr.mxu0 0.0
    %3396 = vmatpush1.msra.mxu0 0.0
    %3397 = vmatprep.subr.mxu0 0.0
    %3398 = vmatpush1.msra.mxu0 0.0
    %3399 = vmatprep.subr.mxu0 0.0
    %3400 = vmatpush1.msra.mxu0 0.0
    %3401 = vmatprep.subr.mxu0 0.0
    %3402 = vmatpush1.msra.mxu0 0.0
    %3403 = vmatprep.subr.mxu0 0.0
    %3404 = vmatpush1.msra.mxu0 0.0
    %3405 = vmatprep.subr.mxu0 0.0
    %3406 = vmatpush1.msra.mxu0 0.0
    %3407 = vmatprep.subr.mxu0 0.0
    %3408 = vmatpush1.msra.mxu0 0.0
    %3409 = vmatprep.subr.mxu0 0.0
    %3410 = vmatpush1.msra.mxu0 0.0
    %3411 = vmatprep.subr.mxu0 0.0
    %3412 = vmatpush1.msra.mxu0 0.0
    %3413 = vmatprep.subr.mxu0 0.0
    %3414 = vmatpush1.msra.mxu0 0.0
    %3415 = vmatprep.subr.mxu0 0.0
    %3416 = vmatpush1.msra.mxu0 0.0
    %3417 = vmatprep.mubr.f32.mxu0 0.0
    %3418 = vmatmul.mubr.f32.gmra.mrb[0].mxu0 %v3351
    %v3419 = vpop.f32.mrb[0].mxu0
    %v3420 = vadd.f32 %v3347, %v3419
    %v3421 = vpop.f32.mrb[0].mxu0
    %3422 = vdwg.mxu0
    %v3423 = vld [vmem:[%s51] sm:$0xff]
    %v3424 = vld [vmem:[%s51 + $0x8] sm:$0xff]
    %v3425 = vld [vmem:[%s53] sm:$0x1]
    %v3427 = vlaneseq
    %v3428 = vshrl.u32 %v3427, 7
    %v3429 = vsub.s32 0, %v3428
    %v3430 = vrot.slane %v3425, %v3429
    %v3433 = vsel %vm2717, %v3420, 0
    %3435 = vmatprep.subr.mxu0 0.0
    %3436 = vmatpush1.msra.mxu0 %v3423
    %3437 = vmatprep.subr.mxu0 0.0
    %3438 = vmatpush1.msra.mxu0 %v3424
    %3439 = vmatprep.subr.mxu0 0.0
    %3440 = vmatpush1.msra.mxu0 0.0
    %3441 = vmatprep.subr.mxu0 0.0
    %3442 = vmatpush1.msra.mxu0 0.0
    %3443 = vmatprep.subr.mxu0 0.0
    %3444 = vmatpush1.msra.mxu0 0.0
    %3445 = vmatprep.subr.mxu0 0.0
    %3446 = vmatpush1.msra.mxu0 0.0
    %3447 = vmatprep.subr.mxu0 0.0
    %3448 = vmatpush1.msra.mxu0 0.0
    %3449 = vmatprep.subr.mxu0 0.0
    %3450 = vmatpush1.msra.mxu0 0.0
    %3451 = vmatprep.subr.mxu0 0.0
    %3452 = vmatpush1.msra.mxu0 0.0
    %3453 = vmatprep.subr.mxu0 0.0
    %3454 = vmatpush1.msra.mxu0 0.0
    %3455 = vmatprep.subr.mxu0 0.0
    %3456 = vmatpush1.msra.mxu0 0.0
    %3457 = vmatprep.subr.mxu0 0.0
    %3458 = vmatpush1.msra.mxu0 0.0
    %3459 = vmatprep.subr.mxu0 0.0
    %3460 = vmatpush1.msra.mxu0 0.0
    %3461 = vmatprep.subr.mxu0 0.0
    %3462 = vmatpush1.msra.mxu0 0.0
    %3463 = vmatprep.subr.mxu0 0.0
    %3464 = vmatpush1.msra.mxu0 0.0
    %3465 = vmatprep.subr.mxu0 0.0
    %3466 = vmatpush1.msra.mxu0 0.0
    %3467 = vmatprep.subr.mxu0 0.0
    %3468 = vmatpush1.msra.mxu0 0.0
    %3469 = vmatprep.subr.mxu0 0.0
    %3470 = vmatpush1.msra.mxu0 0.0
    %3471 = vmatprep.subr.mxu0 0.0
    %3472 = vmatpush1.msra.mxu0 0.0
    %3473 = vmatprep.subr.mxu0 0.0
    %3474 = vmatpush1.msra.mxu0 0.0
    %3475 = vmatprep.subr.mxu0 0.0
    %3476 = vmatpush1.msra.mxu0 0.0
    %3477 = vmatprep.subr.mxu0 0.0
    %3478 = vmatpush1.msra.mxu0 0.0
    %3479 = vmatprep.subr.mxu0 0.0
    %3480 = vmatpush1.msra.mxu0 0.0
    %3481 = vmatprep.subr.mxu0 0.0
    %3482 = vmatpush1.msra.mxu0 0.0
    %3483 = vmatprep.subr.mxu0 0.0
    %3484 = vmatpush1.msra.mxu0 0.0
    %3485 = vmatprep.subr.mxu0 0.0
    %3486 = vmatpush1.msra.mxu0 0.0
    %3487 = vmatprep.subr.mxu0 0.0
    %3488 = vmatpush1.msra.mxu0 0.0
    %3489 = vmatprep.subr.mxu0 0.0
    %3490 = vmatpush1.msra.mxu0 0.0
    %3491 = vmatprep.subr.mxu0 0.0
    %3492 = vmatpush1.msra.mxu0 0.0
    %3493 = vmatprep.subr.mxu0 0.0
    %3494 = vmatpush1.msra.mxu0 0.0
    %3495 = vmatprep.subr.mxu0 0.0
    %3496 = vmatpush1.msra.mxu0 0.0
    %3497 = vmatprep.subr.mxu0 0.0
    %3498 = vmatpush1.msra.mxu0 0.0
    %3499 = vmatprep.mubr.f32.mxu0 0.0
    %3500 = vmatmul.mubr.f32.gmra.mrb[0].mxu0 %v3433
    %v3501 = vpop.f32.mrb[0].mxu0
    %v3502 = vadd.f32 %v3430, %v3501
    %v3503 = vpop.f32.mrb[0].mxu0
    %3504 = vdwg.mxu0
    %v3505 = vld [vmem:[%s55] sm:$0xff]
    %v3506 = vld [vmem:[%s57] sm:$0x1]
    %v3508 = vlaneseq
    %v3509 = vshrl.u32 %v3508, 7
    %v3510 = vsub.s32 0, %v3509
    %v3511 = vrot.slane %v3506, %v3510
    %v3514 = vsel %vm297, %v3502, 0
    %3516 = vmatprep.subr.mxu0 0.0
    %3517 = vmatpush1.msra.mxu0 %v3505
    %3518 = vmatprep.subr.mxu0 0.0
    %3519 = vmatpush1.msra.mxu0 0.0
    %3520 = vmatprep.subr.mxu0 0.0
    %3521 = vmatpush1.msra.mxu0 0.0
    %3522 = vmatprep.subr.mxu0 0.0
    %3523 = vmatpush1.msra.mxu0 0.0
    %3524 = vmatprep.subr.mxu0 0.0
    %3525 = vmatpush1.msra.mxu0 0.0
    %3526 = vmatprep.subr.mxu0 0.0
    %3527 = vmatpush1.msra.mxu0 0.0
    %3528 = vmatprep.subr.mxu0 0.0
    %3529 = vmatpush1.msra.mxu0 0.0
    %3530 = vmatprep.subr.mxu0 0.0
    %3531 = vmatpush1.msra.mxu0 0.0
    %3532 = vmatprep.subr.mxu0 0.0
    %3533 = vmatpush1.msra.mxu0 0.0
    %3534 = vmatprep.subr.mxu0 0.0
    %3535 = vmatpush1.msra.mxu0 0.0
    %3536 = vmatprep.subr.mxu0 0.0
    %3537 = vmatpush1.msra.mxu0 0.0
    %3538 = vmatprep.subr.mxu0 0.0
    %3539 = vmatpush1.msra.mxu0 0.0
    %3540 = vmatprep.subr.mxu0 0.0
    %3541 = vmatpush1.msra.mxu0 0.0
    %3542 = vmatprep.subr.mxu0 0.0
    %3543 = vmatpush1.msra.mxu0 0.0
    %3544 = vmatprep.subr.mxu0 0.0
    %3545 = vmatpush1.msra.mxu0 0.0
    %3546 = vmatprep.subr.mxu0 0.0
    %3547 = vmatpush1.msra.mxu0 0.0
    %3548 = vmatprep.subr.mxu0 0.0
    %3549 = vmatpush1.msra.mxu0 0.0
    %3550 = vmatprep.subr.mxu0 0.0
    %3551 = vmatpush1.msra.mxu0 0.0
    %3552 = vmatprep.subr.mxu0 0.0
    %3553 = vmatpush1.msra.mxu0 0.0
    %3554 = vmatprep.subr.mxu0 0.0
    %3555 = vmatpush1.msra.mxu0 0.0
    %3556 = vmatprep.subr.mxu0 0.0
    %3557 = vmatpush1.msra.mxu0 0.0
    %3558 = vmatprep.subr.mxu0 0.0
    %3559 = vmatpush1.msra.mxu0 0.0
    %3560 = vmatprep.subr.mxu0 0.0
    %3561 = vmatpush1.msra.mxu0 0.0
    %3562 = vmatprep.subr.mxu0 0.0
    %3563 = vmatpush1.msra.mxu0 0.0
    %3564 = vmatprep.subr.mxu0 0.0
    %3565 = vmatpush1.msra.mxu0 0.0
    %3566 = vmatprep.subr.mxu0 0.0
    %3567 = vmatpush1.msra.mxu0 0.0
    %3568 = vmatprep.subr.mxu0 0.0
    %3569 = vmatpush1.msra.mxu0 0.0
    %3570 = vmatprep.subr.mxu0 0.0
    %3571 = vmatpush1.msra.mxu0 0.0
    %3572 = vmatprep.subr.mxu0 0.0
    %3573 = vmatpush1.msra.mxu0 0.0
    %3574 = vmatprep.subr.mxu0 0.0
    %3575 = vmatpush1.msra.mxu0 0.0
    %3576 = vmatprep.subr.mxu0 0.0
    %3577 = vmatpush1.msra.mxu0 0.0
    %3578 = vmatprep.subr.mxu0 0.0
    %3579 = vmatpush1.msra.mxu0 0.0
    %3580 = vmatprep.mubr.f32.mxu0 0.0
    %3581 = vmatmul.mubr.f32.gmra.mrb[0].mxu0 %v3514
    %v3582 = vpop.f32.mrb[0].mxu0
    %v3583 = vadd.f32 %v3511, %v3582
    %v3584 = vpop.f32.mrb[0].mxu0
    %3585 = vdwg.mxu0
    %vm3586 = vcmask 9216
    %3587 = vst.msk [vmem:[#allocation27] sm:$0x3] %vm3586, %v3583
    // Predicated region
    $region174: #{res_fork_net.1} parent=1 // pred_check
      _
    $region175: #{res_fork_net.1} parent=1 // pred_check_branch
      %3589 = sbr.rel (0) target = $region177
    $region176: #{res_fork_net.1} parent=1 // pred_region
      %s3591 = ssub.s32 32, 32
      %3592 = vsyncadd [#allocation6], %s3591
      %s3594 = sshll.u32 [#allocation27], 4
      %s3595 = int_to_ptr.vmem [resolvable:$true] %s3594
      %3597 = dma.vmem_to_hbm [thread:$0]  %s3595, 32, %s59, [#allocation6]
    $region177: #{res_fork_net.1} parent=1 // pred_fallthru
      _
    // Predicated region
    $region178: #{res_fork_net.1} parent=1 // pred_check
      _
    $region179: #{res_fork_net.1} parent=1 // pred_check_branch
      %3599 = sbr.rel (0) target = $region181
    $region180: #{res_fork_net.1} parent=1 // pred_region
      %3600 = dma.done [#allocation6], 32
    $region181: #{res_fork_net.1} parent=1 // pred_fallthru
      _
    %3601 = vsyncpa [#allocation5], 1
    %3602 = vsyncpa [#allocation8], 1
    %3603 = vsyncpa [#allocation11], 1
    %3604 = vsyncpa [#allocation14], 1
    %3605 = vsyncpa [#allocation17], 1
    %3606 = vsyncpa [#allocation20], 1
    %3607 = vsyncpa [#allocation23], 1
    %3608 = vsyncpa [#allocation26], 1
    %3609 = vsyncpa [#allocation6], 1

</llo_original>
